<compile_context>
chip_gen: v6e
topology: v6e:2x2x1
jax: 0.10.0
libtpu: 0.0.40
codegen_flags: <defaults>
</compile_context>

<pallas_src>
import functools

import numpy as np
import jax
import jax.numpy as jnp
from jax import lax
from jax.experimental import pallas as pl
from jax.experimental.pallas import tpu as pltpu

EPS = 1e-5                    # PyTorch BatchNorm2d default
K, STRIDE = 5, 2              # Conv2d(kernel_size=5, stride=2) throughout
CPAD = 128                    # conv outputs lane-padded to 128 channels
CHANS = (4, 16, 32, 64)       # conv channel progression from the module
HIDDEN = 512                  # Linear hidden width from the module


def _conv_out(s):
    return (s - (K - 1) - 1) // STRIDE + 1


def _round_up(x, m):
    return (x + m - 1) // m * m


def _parity_count(size, p):
    """#{i in [0, size) : i % 2 == p}."""
    return (size - p + 1) // 2


# ------------------------------ Pallas kernel --------------------------------


def _bn(y, g, b):
    """Training-mode BatchNorm over the row axis (batch*spatial), per lane."""
    m = y.shape[0]
    mean = jnp.sum(y, axis=0, keepdims=True) * (1.0 / m)
    var = jnp.maximum(jnp.sum(y * y, axis=0, keepdims=True) * (1.0 / m)
                      - mean * mean, 0.0)
    return (y - mean) * lax.rsqrt(var + EPS) * g + b


def _conv_lhs(x, n, oh, ow, tap_group):
    """Assemble the [oh*ow*n, 25*C] im2col LHS for one 5x5/stride-2 conv.

    x rows hold the conv-input positions grouped by spatial parity, with
    within-group row order (hy, hx, batch).  tap_group(i, j) returns
    (group_row_offset, group_row_width_Ws, hy_offset, hx_offset) for tap (i,j),
    so each output row q of the tap block is one contiguous row slice of x.
    Output rows are ordered (q, r, batch); lanes ordered (kh, kw, cin).
    """
    taps = []
    for i in range(K):
        for j in range(K):
            off, ws, oy, ox = tap_group(i, j)
            chunks = []
            for q in range(oh):
                st = off + ((oy + q) * ws + ox) * n
                chunks.append(x[st:st + ow * n, :])
            taps.append(chunks[0] if len(chunks) == 1
                        else jnp.concatenate(chunks, axis=0))
    return jnp.concatenate(taps, axis=1)


def _dqn_kernel(p0_ref, w0_ref, g0_ref, b0_ref,
                w1_ref, g1_ref, b1_ref,
                w2_ref, g2_ref, b2_ref,
                wl1_ref, bl1_ref, wl2_ref, bl2_ref,
                o_ref, *, geom):
    n = geom["n"]
    c0, c1, c2 = geom["c0"], geom["c1"], geom["c2"]
    oh1, ow1, oh2, ow2 = geom["oh1"], geom["ow1"], geom["oh2"], geom["ow2"]
    g4 = geom["g4"]                       # (gy,gx) -> (row_off, Hs, Ws) of y0 rows
    s2 = oh2 * ow2

    # ---- conv0: ONE [m0, 128] @ [128, 128] MXU matmul + BN0 -------------------
    y0 = jnp.dot(p0_ref[...], w0_ref[...], preferred_element_type=jnp.float32)
    y0c = _bn(y0, g0_ref[...], b0_ref[...])[:, :c0]          # f32, real channels

    # ---- conv1 + BN1: one K=25*c0 matmul per output-parity quadrant -----------
    # y0 rows are in mod-4 polyphase order of conv0's output grid, so every
    # (quadrant, tap) block is a stack of contiguous static row slices.
    w1 = w1_ref[...]
    parts = []
    grp2 = {}                              # conv1-output polyphase group table
    off = 0
    for qp in range(2):
        ohq = _parity_count(oh1, qp)
        for rp in range(2):
            owq = _parity_count(ow1, rp)

            def tap_group(i, j, qp=qp, rp=rp):
                ay, ax = 2 * qp + i, 2 * rp + j
                goff, _, ws = g4[(ay % 4, ax % 4)]
                return goff, ws, ay // 4, ax // 4

            lhs = _conv_lhs(y0c, n, ohq, owq, tap_group)      # [ohq*owq*n, 400]
            parts.append(jnp.dot(lhs.astype(jnp.bfloat16), w1,
                                 preferred_element_type=jnp.float32))
            grp2[(qp, rp)] = (off, ohq, owq)
            off += ohq * owq * n
    y1 = jnp.concatenate(parts, axis=0)                       # [m1, 128]
    y1c = _bn(y1, g1_ref[...], b1_ref[...])[:, :c1]

    # ---- conv2 + BN2: ONE [m2, 25*c1=800] @ [800, 128] matmul ------------------
    def tap_group2(i, j):
        goff, _, ws = grp2[(i % 2, j % 2)]
        return goff, ws, i // 2, j // 2

    lhs2 = _conv_lhs(y1c, n, oh2, ow2, tap_group2)            # [m2, 800]
    y2 = jnp.dot(lhs2.astype(jnp.bfloat16), w2_ref[...],
                 preferred_element_type=jnp.float32)
    y2c = _bn(y2, g2_ref[...], b2_ref[...])[:, :c2]           # rows = (spatial, batch)

    # ---- flatten + Linear1 (ONE K=s2*c2 matmul) + ReLU + Linear2 ---------------
    # y2 rows are (spatial, batch)-ordered, so the flatten is a lane concat of
    # s2 contiguous row blocks; the (spatial, channel) vs PyTorch (channel,
    # spatial) reordering is folded into wl1's rows at init time.
    lin = jnp.concatenate([y2c[s * n:(s + 1) * n, :] for s in range(s2)], axis=1)
    h = jnp.maximum(jnp.dot(lin.astype(jnp.bfloat16), wl1_ref[...],
                            preferred_element_type=jnp.float32) + bl1_ref[...], 0.0)
    o_ref[...] = (jnp.dot(h.astype(jnp.bfloat16), wl2_ref[...],
                          preferred_element_type=jnp.float32) + bl2_ref[...])


# --------------------------------- model glue --------------------------------


def _im2col_conv0_poly4(x_nhwc):
    """im2col for conv0 with rows emitted in mod-4 polyphase order of conv0's
    output grid (group (y%4, x%4), within-group order (y//4, x//4, batch)).
    Feature columns are (kh, kw, cin); the K dim is zero-padded to 128 lanes.
    Returns (p0, group_table, oh0, ow0)."""
    n, h, w, c = x_nhwc.shape
    oh, ow = _conv_out(h), _conv_out(w)
    rows_i = []
    for i in range(K):
        cols_j = []
        for j in range(K):
            cols_j.append(
                x_nhwc[:, i:i + STRIDE * oh:STRIDE, j:j + STRIDE * ow:STRIDE, :])
        rows_i.append(jnp.stack(cols_j, axis=3))               # [n, oh, ow, K, c]
    p = jnp.stack(rows_i, axis=3)                              # [n, oh, ow, K, K, c]
    p = jnp.transpose(p, (1, 2, 0, 3, 4, 5))                   # [oh, ow, n, K, K, c]
    slabs, g4, off = [], {}, 0
    for gy in range(4):
        for gx in range(4):
            blk = p[gy::4, gx::4]                              # [hs, ws, n, K, K, c]
            hs, ws = blk.shape[0], blk.shape[1]
            slabs.append(blk.reshape(hs * ws * n, K * K * c))
            g4[(gy, gx)] = (off, hs, ws)
            off += hs * ws * n
    p0 = jnp.concatenate(slabs, axis=0)                        # [m0, 100]
    kpad = _round_up(K * K * c, 128)
    p0 = jnp.pad(p0, ((0, 0), (0, kpad - K * K * c)))
    return p0, g4, oh, ow


def make_dqn_forward(num_actions):
    """Returns forward(params, img_nchw) -> Q-values [N, num_actions]."""

    def forward(params, img_nchw):
        c0, c1, c2 = CHANS[1], CHANS[2], CHANS[3]
        # NCHW -> NHWC, cast to bf16 early so the im2col glue moves half the bytes.
        x = jnp.transpose(img_nchw, (0, 2, 3, 1)).astype(jnp.bfloat16)
        n = x.shape[0]

        p0, g4, oh0, ow0 = _im2col_conv0_poly4(x)
        oh1, ow1 = _conv_out(oh0), _conv_out(ow0)
        oh2, ow2 = _conv_out(oh1), _conv_out(ow1)
        geom = dict(n=n, c0=c0, c1=c1, c2=c2,
                    oh1=oh1, ow1=ow1, oh2=oh2, ow2=ow2, g4=g4)

        lp = params["linear"]
        args = (p0,
                params["conv0"]["w"], params["conv0"]["gamma"], params["conv0"]["beta"],
                params["conv1"]["w"], params["conv1"]["gamma"], params["conv1"]["beta"],
                params["conv2"]["w"], params["conv2"]["gamma"], params["conv2"]["beta"],
                lp["w1"], lp["b1"], lp["w2"], lp["b2"])

        m0, m1, m2 = p0.shape[0], n * oh1 * ow1, n * oh2 * ow2
        apad = lp["w2"].shape[1]
        flops = 2 * (m0 * p0.shape[1] * CPAD
                     + m1 * (K * K * c0) * CPAD
                     + m2 * (K * K * c1) * CPAD
                     + n * (oh2 * ow2 * c2) * HIDDEN
                     + n * HIDDEN * apad)
        cost = pl.CostEstimate(
            flops=int(flops), transcendentals=0,
            bytes_accessed=int(sum(a.size * a.dtype.itemsize for a in args)
                               + n * apad * 4))

        kern = functools.partial(_dqn_kernel, geom=geom)
        q = pl.pallas_call(
            kern,
            out_shape=jax.ShapeDtypeStruct((n, apad), jnp.float32),
            grid=(1,),
            in_specs=[pl.BlockSpec(a.shape, lambda i, nd=a.ndim: (0,) * nd)
                      for a in args],
            out_specs=pl.BlockSpec((n, apad), lambda i: (0, 0)),
            compiler_params=pltpu.CompilerParams(dimension_semantics=("arbitrary",)),
            cost_estimate=cost,
        )(*args)
        return q[:, :num_actions]

    return forward


# --------------------------------- parameters --------------------------------


def init_params(key, img_shape, num_actions):
    """PyTorch-equivalent random init, pre-converted (once) to kernel layouts."""
    keys = jax.random.split(key, 10)
    convh, convw = img_shape
    params = {}
    for li in range(3):
        cin, cout = CHANS[li], CHANS[li + 1]
        fan_in = cin * K * K
        w_pt = (jax.random.normal(keys[2 * li], (cout, cin, K, K), jnp.float32)
                / np.sqrt(float(fan_in)))
        # NOTE: the Conv2d bias is dropped on purpose -- training-mode
        # BatchNorm2d subtracts the per-channel batch mean, which exactly
        # cancels a constant per-channel bias.
        wmat = jnp.transpose(w_pt, (2, 3, 1, 0)).reshape(K * K * cin, cout)
        krows = _round_up(K * K * cin, 128) if li == 0 else K * K * cin
        wmat = jnp.pad(wmat, ((0, krows - K * K * cin), (0, CPAD - cout)))
        params[f"conv{li}"] = dict(
            w=wmat.astype(jnp.bfloat16),
            gamma=jnp.pad(jnp.ones((1, cout), jnp.float32), ((0, 0), (0, CPAD - cout))),
            beta=jnp.zeros((1, CPAD), jnp.float32),
        )
        convh, convw = _conv_out(convh), _conv_out(convw)
    c2 = CHANS[-1]
    s2 = convh * convw
    lin_in = s2 * c2
    w1_pt = jax.random.normal(keys[6], (HIDDEN, lin_in), jnp.float32) / np.sqrt(float(lin_in))
    b1 = 0.01 * jax.random.normal(keys[7], (HIDDEN,), jnp.float32)
    w2_pt = jax.random.normal(keys[8], (num_actions, HIDDEN), jnp.float32) / np.sqrt(float(HIDDEN))
    b2 = 0.01 * jax.random.normal(keys[9], (num_actions,), jnp.float32)
    # Linear1 pre-transposed and row-permuted from PyTorch's NCHW flatten order
    # (channel, spatial) to the kernel's (spatial, channel) flatten order;
    # Linear2 pre-transposed and lane-padded to 128 outputs.
    f = np.arange(lin_in)
    perm = (f % c2) * s2 + (f // c2)
    apad = _round_up(num_actions, 128)
    params["linear"] = dict(
        w1=jnp.asarray(w1_pt.T)[perm].astype(jnp.bfloat16),        # [lin_in, 512]
        b1=b1.reshape(1, HIDDEN),
        w2=jnp.pad(w2_pt.T, ((0, 0), (0, apad - num_actions))).astype(jnp.bfloat16),
        b2=jnp.pad(b2, (0, apad - num_actions)).reshape(1, apad),
    )
    return params


# ----------------------------------- driver ----------------------------------

if __name__ == "__main__":
    # Three 5x5 stride-2 convs need spatial >= 29: 40 -> 18 -> 7 -> 2,
    # so linear_input_size = 2*2*64 = 256 (smallest valid DQN geometry).
    BATCH, IN_CH, IMG, NUM_ACTIONS = 2, 4, 40, 6

    key = jax.random.PRNGKey(0)
    pkey, xkey = jax.random.split(key)
    params = init_params(pkey, (IMG, IMG), NUM_ACTIONS)
    x = jax.random.normal(xkey, (BATCH, IN_CH, IMG, IMG), jnp.float32)   # NCHW

    forward = jax.jit(make_dqn_forward(NUM_ACTIONS))
    q = jax.block_until_ready(forward(params, x))

    assert q.shape == (BATCH, NUM_ACTIONS), q.shape
    assert bool(jnp.all(jnp.isfinite(q)))
    # TODO(synk): DQN._selectAction (host-side numpy epsilon-greedy) is control
    # flow, not a kernel; only forward() is implemented here.
    print("KERNEL_OK")
</pallas_src>

<mosaic_0001>
module attributes {stable_mosaic.version = 11 : i64} {
  func.func @_dqn_kernel(%arg0: i32, %arg1: memref<648x128xbf16, #tpu.memory_space<vmem>>, %arg2: memref<128x128xbf16, #tpu.memory_space<vmem>>, %arg3: memref<1x128xf32, #tpu.memory_space<vmem>>, %arg4: memref<1x128xf32, #tpu.memory_space<vmem>>, %arg5: memref<400x128xbf16, #tpu.memory_space<vmem>>, %arg6: memref<1x128xf32, #tpu.memory_space<vmem>>, %arg7: memref<1x128xf32, #tpu.memory_space<vmem>>, %arg8: memref<800x128xbf16, #tpu.memory_space<vmem>>, %arg9: memref<1x128xf32, #tpu.memory_space<vmem>>, %arg10: memref<1x128xf32, #tpu.memory_space<vmem>>, %arg11: memref<256x512xbf16, #tpu.memory_space<vmem>>, %arg12: memref<1x512xf32, #tpu.memory_space<vmem>>, %arg13: memref<512x128xbf16, #tpu.memory_space<vmem>>, %arg14: memref<1x128xf32, #tpu.memory_space<vmem>>, %arg15: memref<2x128xf32, #tpu.memory_space<vmem>>) attributes {dimension_semantics = [#tpu.dimension_semantics<arbitrary>], iteration_bounds = array<i64: 1>, scalar_prefetch = 0 : i64, scratch_operands = 0 : i64, tpu.core_type = #tpu.core_type<tc>, window_params = [{pipeline_mode = #tpu.pipeline_mode<synchronous>, transform_indices = @transform_0, window_bounds = array<i64: 648, 128>}, {pipeline_mode = #tpu.pipeline_mode<synchronous>, transform_indices = @transform_1, window_bounds = array<i64: 128, 128>}, {pipeline_mode = #tpu.pipeline_mode<synchronous>, transform_indices = @transform_2, window_bounds = array<i64: 1, 128>}, {pipeline_mode = #tpu.pipeline_mode<synchronous>, transform_indices = @transform_3, window_bounds = array<i64: 1, 128>}, {pipeline_mode = #tpu.pipeline_mode<synchronous>, transform_indices = @transform_4, window_bounds = array<i64: 400, 128>}, {pipeline_mode = #tpu.pipeline_mode<synchronous>, transform_indices = @transform_5, window_bounds = array<i64: 1, 128>}, {pipeline_mode = #tpu.pipeline_mode<synchronous>, transform_indices = @transform_6, window_bounds = array<i64: 1, 128>}, {pipeline_mode = #tpu.pipeline_mode<synchronous>, transform_indices = @transform_7, window_bounds = array<i64: 800, 128>}, {pipeline_mode = #tpu.pipeline_mode<synchronous>, transform_indices = @transform_8, window_bounds = array<i64: 1, 128>}, {pipeline_mode = #tpu.pipeline_mode<synchronous>, transform_indices = @transform_9, window_bounds = array<i64: 1, 128>}, {pipeline_mode = #tpu.pipeline_mode<synchronous>, transform_indices = @transform_10, window_bounds = array<i64: 256, 512>}, {pipeline_mode = #tpu.pipeline_mode<synchronous>, transform_indices = @transform_11, window_bounds = array<i64: 1, 512>}, {pipeline_mode = #tpu.pipeline_mode<synchronous>, transform_indices = @transform_12, window_bounds = array<i64: 512, 128>}, {pipeline_mode = #tpu.pipeline_mode<synchronous>, transform_indices = @transform_13, window_bounds = array<i64: 1, 128>}, {pipeline_mode = #tpu.pipeline_mode<synchronous>, transform_indices = @transform_14, window_bounds = array<i64: 2, 128>}]} {
    %c0 = arith.constant 0 : index
    %c0_0 = arith.constant 0 : index
    %0 = vector.load %arg1[%c0, %c0_0] : memref<648x128xbf16, #tpu.memory_space<vmem>>, vector<648x128xbf16>
    %c0_1 = arith.constant 0 : index
    %c0_2 = arith.constant 0 : index
    %1 = vector.load %arg2[%c0_1, %c0_2] : memref<128x128xbf16, #tpu.memory_space<vmem>>, vector<128x128xbf16>
    %cst = arith.constant dense<0.000000e+00> : vector<648x128xf32>
    %2 = tpu.matmul %0, %1, %cst {dimension_numbers = #tpu.dot_dimension_numbers<[1], [0], [0], [1], [0, 0, 1, 1], [], []>} : vector<648x128xbf16>, vector<128x128xbf16>, vector<648x128xf32> -> vector<648x128xf32>
    %c0_3 = arith.constant 0 : index
    %c0_4 = arith.constant 0 : index
    %3 = vector.load %arg3[%c0_3, %c0_4] : memref<1x128xf32, #tpu.memory_space<vmem>>, vector<1x128xf32>
    %c0_5 = arith.constant 0 : index
    %c0_6 = arith.constant 0 : index
    %4 = vector.load %arg4[%c0_5, %c0_6] : memref<1x128xf32, #tpu.memory_space<vmem>>, vector<1x128xf32>
    %cst_7 = arith.constant dense<0.000000e+00> : vector<128xf32>
    %5 = vector.multi_reduction <add>, %2, %cst_7 [0] : vector<648x128xf32> to vector<128xf32>
    %6 = vector.shape_cast %5 : vector<128xf32> to vector<1x128xf32>
    %cst_8 = arith.constant 0.00154320989 : f32
    %7 = vector.broadcast %cst_8 : f32 to vector<1x128xf32>
    %8 = arith.mulf %6, %7 : vector<1x128xf32>
    %9 = arith.mulf %2, %2 : vector<648x128xf32>
    %cst_9 = arith.constant dense<0.000000e+00> : vector<128xf32>
    %10 = vector.multi_reduction <add>, %9, %cst_9 [0] : vector<648x128xf32> to vector<128xf32>
    %11 = vector.shape_cast %10 : vector<128xf32> to vector<1x128xf32>
    %cst_10 = arith.constant 0.00154320989 : f32
    %12 = vector.broadcast %cst_10 : f32 to vector<1x128xf32>
    %13 = arith.mulf %11, %12 : vector<1x128xf32>
    %14 = arith.mulf %8, %8 : vector<1x128xf32>
    %15 = arith.subf %13, %14 : vector<1x128xf32>
    %cst_11 = arith.constant 0.000000e+00 : f32
    %16 = vector.broadcast %cst_11 : f32 to vector<1x128xf32>
    %17 = arith.maximumf %15, %16 : vector<1x128xf32>
    %18 = vector.broadcast %8 : vector<1x128xf32> to vector<648x128xf32>
    %19 = arith.subf %2, %18 : vector<648x128xf32>
    %cst_12 = arith.constant 9.99999974E-6 : f32
    %20 = vector.broadcast %cst_12 : f32 to vector<1x128xf32>
    %21 = arith.addf %17, %20 : vector<1x128xf32>
    %22 = math.rsqrt %21 : vector<1x128xf32>
    %23 = vector.broadcast %22 : vector<1x128xf32> to vector<648x128xf32>
    %24 = arith.mulf %19, %23 : vector<648x128xf32>
    %25 = vector.broadcast %3 : vector<1x128xf32> to vector<648x128xf32>
    %26 = arith.mulf %24, %25 : vector<648x128xf32>
    %27 = vector.broadcast %4 : vector<1x128xf32> to vector<648x128xf32>
    %28 = arith.addf %26, %27 : vector<648x128xf32>
    %29 = vector.extract_strided_slice %28 {offsets = [0, 0], sizes = [648, 16], strides = [1, 1]} : vector<648x128xf32> to vector<648x16xf32>
    %c0_13 = arith.constant 0 : index
    %c0_14 = arith.constant 0 : index
    %30 = vector.load %arg5[%c0_13, %c0_14] : memref<400x128xbf16, #tpu.memory_space<vmem>>, vector<400x128xbf16>
    %31 = vector.extract_strided_slice %29 {offsets = [0, 0], sizes = [8, 16], strides = [1, 1]} : vector<648x16xf32> to vector<8x16xf32>
    %32 = vector.extract_strided_slice %29 {offsets = [10, 0], sizes = [8, 16], strides = [1, 1]} : vector<648x16xf32> to vector<8x16xf32>
    %33 = vector.extract_strided_slice %29 {offsets = [20, 0], sizes = [8, 16], strides = [1, 1]} : vector<648x16xf32> to vector<8x16xf32>
    %34 = vector.extract_strided_slice %29 {offsets = [30, 0], sizes = [8, 16], strides = [1, 1]} : vector<648x16xf32> to vector<8x16xf32>
    %35 = tpu.concatenate %31, %32, %33, %34 in 0 : vector<8x16xf32>, vector<8x16xf32>, vector<8x16xf32>, vector<8x16xf32> -> vector<32x16xf32>
    %36 = vector.extract_strided_slice %29 {offsets = [50, 0], sizes = [8, 16], strides = [1, 1]} : vector<648x16xf32> to vector<8x16xf32>
    %37 = vector.extract_strided_slice %29 {offsets = [60, 0], sizes = [8, 16], strides = [1, 1]} : vector<648x16xf32> to vector<8x16xf32>
    %38 = vector.extract_strided_slice %29 {offsets = [70, 0], sizes = [8, 16], strides = [1, 1]} : vector<648x16xf32> to vector<8x16xf32>
    %39 = vector.extract_strided_slice %29 {offsets = [80, 0], sizes = [8, 16], strides = [1, 1]} : vector<648x16xf32> to vector<8x16xf32>
    %40 = tpu.concatenate %36, %37, %38, %39 in 0 : vector<8x16xf32>, vector<8x16xf32>, vector<8x16xf32>, vector<8x16xf32> -> vector<32x16xf32>
    %41 = vector.extract_strided_slice %29 {offsets = [100, 0], sizes = [8, 16], strides = [1, 1]} : vector<648x16xf32> to vector<8x16xf32>
    %42 = vector.extract_strided_slice %29 {offsets = [108, 0], sizes = [8, 16], strides = [1, 1]} : vector<648x16xf32> to vector<8x16xf32>
    %43 = vector.extract_strided_slice %29 {offsets = [116, 0], sizes = [8, 16], strides = [1, 1]} : vector<648x16xf32> to vector<8x16xf32>
    %44 = vector.extract_strided_slice %29 {offsets = [124, 0], sizes = [8, 16], strides = [1, 1]} : vector<648x16xf32> to vector<8x16xf32>
    %45 = tpu.concatenate %41, %42, %43, %44 in 0 : vector<8x16xf32>, vector<8x16xf32>, vector<8x16xf32>, vector<8x16xf32> -> vector<32x16xf32>
    %46 = vector.extract_strided_slice %29 {offsets = [140, 0], sizes = [8, 16], strides = [1, 1]} : vector<648x16xf32> to vector<8x16xf32>
    %47 = vector.extract_strided_slice %29 {offsets = [148, 0], sizes = [8, 16], strides = [1, 1]} : vector<648x16xf32> to vector<8x16xf32>
    %48 = vector.extract_strided_slice %29 {offsets = [156, 0], sizes = [8, 16], strides = [1, 1]} : vector<648x16xf32> to vector<8x16xf32>
    %49 = vector.extract_strided_slice %29 {offsets = [164, 0], sizes = [8, 16], strides = [1, 1]} : vector<648x16xf32> to vector<8x16xf32>
    %50 = tpu.concatenate %46, %47, %48, %49 in 0 : vector<8x16xf32>, vector<8x16xf32>, vector<8x16xf32>, vector<8x16xf32> -> vector<32x16xf32>
    %51 = vector.extract_strided_slice %29 {offsets = [2, 0], sizes = [8, 16], strides = [1, 1]} : vector<648x16xf32> to vector<8x16xf32>
    %52 = vector.extract_strided_slice %29 {offsets = [12, 0], sizes = [8, 16], strides = [1, 1]} : vector<648x16xf32> to vector<8x16xf32>
    %53 = vector.extract_strided_slice %29 {offsets = [22, 0], sizes = [8, 16], strides = [1, 1]} : vector<648x16xf32> to vector<8x16xf32>
    %54 = vector.extract_strided_slice %29 {offsets = [32, 0], sizes = [8, 16], strides = [1, 1]} : vector<648x16xf32> to vector<8x16xf32>
    %55 = tpu.concatenate %51, %52, %53, %54 in 0 : vector<8x16xf32>, vector<8x16xf32>, vector<8x16xf32>, vector<8x16xf32> -> vector<32x16xf32>
    %56 = vector.extract_strided_slice %29 {offsets = [180, 0], sizes = [8, 16], strides = [1, 1]} : vector<648x16xf32> to vector<8x16xf32>
    %57 = vector.extract_strided_slice %29 {offsets = [190, 0], sizes = [8, 16], strides = [1, 1]} : vector<648x16xf32> to vector<8x16xf32>
    %58 = vector.extract_strided_slice %29 {offsets = [200, 0], sizes = [8, 16], strides = [1, 1]} : vector<648x16xf32> to vector<8x16xf32>
    %59 = vector.extract_strided_slice %29 {offsets = [210, 0], sizes = [8, 16], strides = [1, 1]} : vector<648x16xf32> to vector<8x16xf32>
    %60 = tpu.concatenate %56, %57, %58, %59 in 0 : vector<8x16xf32>, vector<8x16xf32>, vector<8x16xf32>, vector<8x16xf32> -> vector<32x16xf32>
    %61 = vector.extract_strided_slice %29 {offsets = [230, 0], sizes = [8, 16], strides = [1, 1]} : vector<648x16xf32> to vector<8x16xf32>
    %62 = vector.extract_strided_slice %29 {offsets = [240, 0], sizes = [8, 16], strides = [1, 1]} : vector<648x16xf32> to vector<8x16xf32>
    %63 = vector.extract_strided_slice %29 {offsets = [250, 0], sizes = [8, 16], strides = [1, 1]} : vector<648x16xf32> to vector<8x16xf32>
    %64 = vector.extract_strided_slice %29 {offsets = [260, 0], sizes = [8, 16], strides = [1, 1]} : vector<648x16xf32> to vector<8x16xf32>
    %65 = tpu.concatenate %61, %62, %63, %64 in 0 : vector<8x16xf32>, vector<8x16xf32>, vector<8x16xf32>, vector<8x16xf32> -> vector<32x16xf32>
    %66 = vector.extract_strided_slice %29 {offsets = [280, 0], sizes = [8, 16], strides = [1, 1]} : vector<648x16xf32> to vector<8x16xf32>
    %67 = vector.extract_strided_slice %29 {offsets = [288, 0], sizes = [8, 16], strides = [1, 1]} : vector<648x16xf32> to vector<8x16xf32>
    %68 = vector.extract_strided_slice %29 {offsets = [296, 0], sizes = [8, 16], strides = [1, 1]} : vector<648x16xf32> to vector<8x16xf32>
    %69 = vector.extract_strided_slice %29 {offsets = [304, 0], sizes = [8, 16], strides = [1, 1]} : vector<648x16xf32> to vector<8x16xf32>
    %70 = tpu.concatenate %66, %67, %68, %69 in 0 : vector<8x16xf32>, vector<8x16xf32>, vector<8x16xf32>, vector<8x16xf32> -> vector<32x16xf32>
    %71 = vector.extract_strided_slice %29 {offsets = [320, 0], sizes = [8, 16], strides = [1, 1]} : vector<648x16xf32> to vector<8x16xf32>
    %72 = vector.extract_strided_slice %29 {offsets = [328, 0], sizes = [8, 16], strides = [1, 1]} : vector<648x16xf32> to vector<8x16xf32>
    %73 = vector.extract_strided_slice %29 {offsets = [336, 0], sizes = [8, 16], strides = [1, 1]} : vector<648x16xf32> to vector<8x16xf32>
    %74 = vector.extract_strided_slice %29 {offsets = [344, 0], sizes = [8, 16], strides = [1, 1]} : vector<648x16xf32> to vector<8x16xf32>
    %75 = tpu.concatenate %71, %72, %73, %74 in 0 : vector<8x16xf32>, vector<8x16xf32>, vector<8x16xf32>, vector<8x16xf32> -> vector<32x16xf32>
    %76 = vector.extract_strided_slice %29 {offsets = [182, 0], sizes = [8, 16], strides = [1, 1]} : vector<648x16xf32> to vector<8x16xf32>
    %77 = vector.extract_strided_slice %29 {offsets = [192, 0], sizes = [8, 16], strides = [1, 1]} : vector<648x16xf32> to vector<8x16xf32>
    %78 = vector.extract_strided_slice %29 {offsets = [202, 0], sizes = [8, 16], strides = [1, 1]} : vector<648x16xf32> to vector<8x16xf32>
    %79 = vector.extract_strided_slice %29 {offsets = [212, 0], sizes = [8, 16], strides = [1, 1]} : vector<648x16xf32> to vector<8x16xf32>
    %80 = tpu.concatenate %76, %77, %78, %79 in 0 : vector<8x16xf32>, vector<8x16xf32>, vector<8x16xf32>, vector<8x16xf32> -> vector<32x16xf32>
    %81 = vector.extract_strided_slice %29 {offsets = [360, 0], sizes = [8, 16], strides = [1, 1]} : vector<648x16xf32> to vector<8x16xf32>
    %82 = vector.extract_strided_slice %29 {offsets = [370, 0], sizes = [8, 16], strides = [1, 1]} : vector<648x16xf32> to vector<8x16xf32>
    %83 = vector.extract_strided_slice %29 {offsets = [380, 0], sizes = [8, 16], strides = [1, 1]} : vector<648x16xf32> to vector<8x16xf32>
    %84 = vector.extract_strided_slice %29 {offsets = [390, 0], sizes = [8, 16], strides = [1, 1]} : vector<648x16xf32> to vector<8x16xf32>
    %85 = tpu.concatenate %81, %82, %83, %84 in 0 : vector<8x16xf32>, vector<8x16xf32>, vector<8x16xf32>, vector<8x16xf32> -> vector<32x16xf32>
    %86 = vector.extract_strided_slice %29 {offsets = [400, 0], sizes = [8, 16], strides = [1, 1]} : vector<648x16xf32> to vector<8x16xf32>
    %87 = vector.extract_strided_slice %29 {offsets = [410, 0], sizes = [8, 16], strides = [1, 1]} : vector<648x16xf32> to vector<8x16xf32>
    %88 = vector.extract_strided_slice %29 {offsets = [420, 0], sizes = [8, 16], strides = [1, 1]} : vector<648x16xf32> to vector<8x16xf32>
    %89 = vector.extract_strided_slice %29 {offsets = [430, 0], sizes = [8, 16], strides = [1, 1]} : vector<648x16xf32> to vector<8x16xf32>
    %90 = tpu.concatenate %86, %87, %88, %89 in 0 : vector<8x16xf32>, vector<8x16xf32>, vector<8x16xf32>, vector<8x16xf32> -> vector<32x16xf32>
    %91 = vector.extract_strided_slice %29 {offsets = [440, 0], sizes = [8, 16], strides = [1, 1]} : vector<648x16xf32> to vector<8x16xf32>
    %92 = vector.extract_strided_slice %29 {offsets = [448, 0], sizes = [8, 16], strides = [1, 1]} : vector<648x16xf32> to vector<8x16xf32>
    %93 = vector.extract_strided_slice %29 {offsets = [456, 0], sizes = [8, 16], strides = [1, 1]} : vector<648x16xf32> to vector<8x16xf32>
    %94 = vector.extract_strided_slice %29 {offsets = [464, 0], sizes = [8, 16], strides = [1, 1]} : vector<648x16xf32> to vector<8x16xf32>
    %95 = tpu.concatenate %91, %92, %93, %94 in 0 : vector<8x16xf32>, vector<8x16xf32>, vector<8x16xf32>, vector<8x16xf32> -> vector<32x16xf32>
    %96 = vector.extract_strided_slice %29 {offsets = [472, 0], sizes = [8, 16], strides = [1, 1]} : vector<648x16xf32> to vector<8x16xf32>
    %97 = vector.extract_strided_slice %29 {offsets = [480, 0], sizes = [8, 16], strides = [1, 1]} : vector<648x16xf32> to vector<8x16xf32>
    %98 = vector.extract_strided_slice %29 {offsets = [488, 0], sizes = [8, 16], strides = [1, 1]} : vector<648x16xf32> to vector<8x16xf32>
    %99 = vector.extract_strided_slice %29 {offsets = [496, 0], sizes = [8, 16], strides = [1, 1]} : vector<648x16xf32> to vector<8x16xf32>
    %100 = tpu.concatenate %96, %97, %98, %99 in 0 : vector<8x16xf32>, vector<8x16xf32>, vector<8x16xf32>, vector<8x16xf32> -> vector<32x16xf32>
    %101 = vector.extract_strided_slice %29 {offsets = [362, 0], sizes = [8, 16], strides = [1, 1]} : vector<648x16xf32> to vector<8x16xf32>
    %102 = vector.extract_strided_slice %29 {offsets = [372, 0], sizes = [8, 16], strides = [1, 1]} : vector<648x16xf32> to vector<8x16xf32>
    %103 = vector.extract_strided_slice %29 {offsets = [382, 0], sizes = [8, 16], strides = [1, 1]} : vector<648x16xf32> to vector<8x16xf32>
    %104 = vector.extract_strided_slice %29 {offsets = [392, 0], sizes = [8, 16], strides = [1, 1]} : vector<648x16xf32> to vector<8x16xf32>
    %105 = tpu.concatenate %101, %102, %103, %104 in 0 : vector<8x16xf32>, vector<8x16xf32>, vector<8x16xf32>, vector<8x16xf32> -> vector<32x16xf32>
    %106 = vector.extract_strided_slice %29 {offsets = [504, 0], sizes = [8, 16], strides = [1, 1]} : vector<648x16xf32> to vector<8x16xf32>
    %107 = vector.extract_strided_slice %29 {offsets = [514, 0], sizes = [8, 16], strides = [1, 1]} : vector<648x16xf32> to vector<8x16xf32>
    %108 = vector.extract_strided_slice %29 {offsets = [524, 0], sizes = [8, 16], strides = [1, 1]} : vector<648x16xf32> to vector<8x16xf32>
    %109 = vector.extract_strided_slice %29 {offsets = [534, 0], sizes = [8, 16], strides = [1, 1]} : vector<648x16xf32> to vector<8x16xf32>
    %110 = tpu.concatenate %106, %107, %108, %109 in 0 : vector<8x16xf32>, vector<8x16xf32>, vector<8x16xf32>, vector<8x16xf32> -> vector<32x16xf32>
    %111 = vector.extract_strided_slice %29 {offsets = [544, 0], sizes = [8, 16], strides = [1, 1]} : vector<648x16xf32> to vector<8x16xf32>
    %112 = vector.extract_strided_slice %29 {offsets = [554, 0], sizes = [8, 16], strides = [1, 1]} : vector<648x16xf32> to vector<8x16xf32>
    %113 = vector.extract_strided_slice %29 {offsets = [564, 0], sizes = [8, 16], strides = [1, 1]} : vector<648x16xf32> to vector<8x16xf32>
    %114 = vector.extract_strided_slice %29 {offsets = [574, 0], sizes = [8, 16], strides = [1, 1]} : vector<648x16xf32> to vector<8x16xf32>
    %115 = tpu.concatenate %111, %112, %113, %114 in 0 : vector<8x16xf32>, vector<8x16xf32>, vector<8x16xf32>, vector<8x16xf32> -> vector<32x16xf32>
    %116 = vector.extract_strided_slice %29 {offsets = [584, 0], sizes = [8, 16], strides = [1, 1]} : vector<648x16xf32> to vector<8x16xf32>
    %117 = vector.extract_strided_slice %29 {offsets = [592, 0], sizes = [8, 16], strides = [1, 1]} : vector<648x16xf32> to vector<8x16xf32>
    %118 = vector.extract_strided_slice %29 {offsets = [600, 0], sizes = [8, 16], strides = [1, 1]} : vector<648x16xf32> to vector<8x16xf32>
    %119 = vector.extract_strided_slice %29 {offsets = [608, 0], sizes = [8, 16], strides = [1, 1]} : vector<648x16xf32> to vector<8x16xf32>
    %120 = tpu.concatenate %116, %117, %118, %119 in 0 : vector<8x16xf32>, vector<8x16xf32>, vector<8x16xf32>, vector<8x16xf32> -> vector<32x16xf32>
    %121 = vector.extract_strided_slice %29 {offsets = [616, 0], sizes = [8, 16], strides = [1, 1]} : vector<648x16xf32> to vector<8x16xf32>
    %122 = vector.extract_strided_slice %29 {offsets = [624, 0], sizes = [8, 16], strides = [1, 1]} : vector<648x16xf32> to vector<8x16xf32>
    %123 = vector.extract_strided_slice %29 {offsets = [632, 0], sizes = [8, 16], strides = [1, 1]} : vector<648x16xf32> to vector<8x16xf32>
    %124 = vector.extract_strided_slice %29 {offsets = [640, 0], sizes = [8, 16], strides = [1, 1]} : vector<648x16xf32> to vector<8x16xf32>
    %125 = tpu.concatenate %121, %122, %123, %124 in 0 : vector<8x16xf32>, vector<8x16xf32>, vector<8x16xf32>, vector<8x16xf32> -> vector<32x16xf32>
    %126 = vector.extract_strided_slice %29 {offsets = [506, 0], sizes = [8, 16], strides = [1, 1]} : vector<648x16xf32> to vector<8x16xf32>
    %127 = vector.extract_strided_slice %29 {offsets = [516, 0], sizes = [8, 16], strides = [1, 1]} : vector<648x16xf32> to vector<8x16xf32>
    %128 = vector.extract_strided_slice %29 {offsets = [526, 0], sizes = [8, 16], strides = [1, 1]} : vector<648x16xf32> to vector<8x16xf32>
    %129 = vector.extract_strided_slice %29 {offsets = [536, 0], sizes = [8, 16], strides = [1, 1]} : vector<648x16xf32> to vector<8x16xf32>
    %130 = tpu.concatenate %126, %127, %128, %129 in 0 : vector<8x16xf32>, vector<8x16xf32>, vector<8x16xf32>, vector<8x16xf32> -> vector<32x16xf32>
    %131 = vector.extract_strided_slice %29 {offsets = [10, 0], sizes = [8, 16], strides = [1, 1]} : vector<648x16xf32> to vector<8x16xf32>
    %132 = vector.extract_strided_slice %29 {offsets = [20, 0], sizes = [8, 16], strides = [1, 1]} : vector<648x16xf32> to vector<8x16xf32>
    %133 = vector.extract_strided_slice %29 {offsets = [30, 0], sizes = [8, 16], strides = [1, 1]} : vector<648x16xf32> to vector<8x16xf32>
    %134 = vector.extract_strided_slice %29 {offsets = [40, 0], sizes = [8, 16], strides = [1, 1]} : vector<648x16xf32> to vector<8x16xf32>
    %135 = tpu.concatenate %131, %132, %133, %134 in 0 : vector<8x16xf32>, vector<8x16xf32>, vector<8x16xf32>, vector<8x16xf32> -> vector<32x16xf32>
    %136 = vector.extract_strided_slice %29 {offsets = [60, 0], sizes = [8, 16], strides = [1, 1]} : vector<648x16xf32> to vector<8x16xf32>
    %137 = vector.extract_strided_slice %29 {offsets = [70, 0], sizes = [8, 16], strides = [1, 1]} : vector<648x16xf32> to vector<8x16xf32>
    %138 = vector.extract_strided_slice %29 {offsets = [80, 0], sizes = [8, 16], strides = [1, 1]} : vector<648x16xf32> to vector<8x16xf32>
    %139 = vector.extract_strided_slice %29 {offsets = [90, 0], sizes = [8, 16], strides = [1, 1]} : vector<648x16xf32> to vector<8x16xf32>
    %140 = tpu.concatenate %136, %137, %138, %139 in 0 : vector<8x16xf32>, vector<8x16xf32>, vector<8x16xf32>, vector<8x16xf32> -> vector<32x16xf32>
    %141 = vector.extract_strided_slice %29 {offsets = [108, 0], sizes = [8, 16], strides = [1, 1]} : vector<648x16xf32> to vector<8x16xf32>
    %142 = vector.extract_strided_slice %29 {offsets = [116, 0], sizes = [8, 16], strides = [1, 1]} : vector<648x16xf32> to vector<8x16xf32>
    %143 = vector.extract_strided_slice %29 {offsets = [124, 0], sizes = [8, 16], strides = [1, 1]} : vector<648x16xf32> to vector<8x16xf32>
    %144 = vector.extract_strided_slice %29 {offsets = [132, 0], sizes = [8, 16], strides = [1, 1]} : vector<648x16xf32> to vector<8x16xf32>
    %145 = tpu.concatenate %141, %142, %143, %144 in 0 : vector<8x16xf32>, vector<8x16xf32>, vector<8x16xf32>, vector<8x16xf32> -> vector<32x16xf32>
    %146 = vector.extract_strided_slice %29 {offsets = [148, 0], sizes = [8, 16], strides = [1, 1]} : vector<648x16xf32> to vector<8x16xf32>
    %147 = vector.extract_strided_slice %29 {offsets = [156, 0], sizes = [8, 16], strides = [1, 1]} : vector<648x16xf32> to vector<8x16xf32>
    %148 = vector.extract_strided_slice %29 {offsets = [164, 0], sizes = [8, 16], strides = [1, 1]} : vector<648x16xf32> to vector<8x16xf32>
    %149 = vector.extract_strided_slice %29 {offsets = [172, 0], sizes = [8, 16], strides = [1, 1]} : vector<648x16xf32> to vector<8x16xf32>
    %150 = tpu.concatenate %146, %147, %148, %149 in 0 : vector<8x16xf32>, vector<8x16xf32>, vector<8x16xf32>, vector<8x16xf32> -> vector<32x16xf32>
    %151 = vector.extract_strided_slice %29 {offsets = [12, 0], sizes = [8, 16], strides = [1, 1]} : vector<648x16xf32> to vector<8x16xf32>
    %152 = vector.extract_strided_slice %29 {offsets = [22, 0], sizes = [8, 16], strides = [1, 1]} : vector<648x16xf32> to vector<8x16xf32>
    %153 = vector.extract_strided_slice %29 {offsets = [32, 0], sizes = [8, 16], strides = [1, 1]} : vector<648x16xf32> to vector<8x16xf32>
    %154 = vector.extract_strided_slice %29 {offsets = [42, 0], sizes = [8, 16], strides = [1, 1]} : vector<648x16xf32> to vector<8x16xf32>
    %155 = tpu.concatenate %151, %152, %153, %154 in 0 : vector<8x16xf32>, vector<8x16xf32>, vector<8x16xf32>, vector<8x16xf32> -> vector<32x16xf32>
    %156 = tpu.concatenate %35, %40, %45, %50, %55, %60, %65, %70, %75, %80, %85, %90, %95, %100, %105, %110 in 1 : vector<32x16xf32>, vector<32x16xf32>, vector<32x16xf32>, vector<32x16xf32>, vector<32x16xf32>, vector<32x16xf32>, vector<32x16xf32>, vector<32x16xf32>, vector<32x16xf32>, vector<32x16xf32>, vector<32x16xf32>, vector<32x16xf32>, vector<32x16xf32>, vector<32x16xf32>, vector<32x16xf32>, vector<32x16xf32> -> vector<32x256xf32>
    %157 = tpu.concatenate %115, %120, %125, %130, %135, %140, %145, %150, %155 in 1 : vector<32x16xf32>, vector<32x16xf32>, vector<32x16xf32>, vector<32x16xf32>, vector<32x16xf32>, vector<32x16xf32>, vector<32x16xf32>, vector<32x16xf32>, vector<32x16xf32> -> vector<32x144xf32>
    %158 = tpu.concatenate %156, %157 in 1 : vector<32x256xf32>, vector<32x144xf32> -> vector<32x400xf32>
    %159 = arith.truncf %158 : vector<32x400xf32> to vector<32x400xbf16>
    %cst_15 = arith.constant dense<0.000000e+00> : vector<32x128xf32>
    %160 = tpu.matmul %159, %30, %cst_15 {dimension_numbers = #tpu.dot_dimension_numbers<[1], [0], [0], [1], [0, 0, 1, 1], [], []>} : vector<32x400xbf16>, vector<400x128xbf16>, vector<32x128xf32> -> vector<32x128xf32>
    %161 = vector.extract_strided_slice %29 {offsets = [100, 0], sizes = [6, 16], strides = [1, 1]} : vector<648x16xf32> to vector<6x16xf32>
    %162 = vector.extract_strided_slice %29 {offsets = [108, 0], sizes = [6, 16], strides = [1, 1]} : vector<648x16xf32> to vector<6x16xf32>
    %163 = vector.extract_strided_slice %29 {offsets = [116, 0], sizes = [6, 16], strides = [1, 1]} : vector<648x16xf32> to vector<6x16xf32>
    %164 = vector.extract_strided_slice %29 {offsets = [124, 0], sizes = [6, 16], strides = [1, 1]} : vector<648x16xf32> to vector<6x16xf32>
    %165 = tpu.concatenate %161, %162, %163, %164 in 0 : vector<6x16xf32>, vector<6x16xf32>, vector<6x16xf32>, vector<6x16xf32> -> vector<24x16xf32>
    %166 = vector.extract_strided_slice %29 {offsets = [140, 0], sizes = [6, 16], strides = [1, 1]} : vector<648x16xf32> to vector<6x16xf32>
    %167 = vector.extract_strided_slice %29 {offsets = [148, 0], sizes = [6, 16], strides = [1, 1]} : vector<648x16xf32> to vector<6x16xf32>
    %168 = vector.extract_strided_slice %29 {offsets = [156, 0], sizes = [6, 16], strides = [1, 1]} : vector<648x16xf32> to vector<6x16xf32>
    %169 = vector.extract_strided_slice %29 {offsets = [164, 0], sizes = [6, 16], strides = [1, 1]} : vector<648x16xf32> to vector<6x16xf32>
    %170 = tpu.concatenate %166, %167, %168, %169 in 0 : vector<6x16xf32>, vector<6x16xf32>, vector<6x16xf32>, vector<6x16xf32> -> vector<24x16xf32>
    %171 = vector.extract_strided_slice %29 {offsets = [2, 0], sizes = [6, 16], strides = [1, 1]} : vector<648x16xf32> to vector<6x16xf32>
    %172 = vector.extract_strided_slice %29 {offsets = [12, 0], sizes = [6, 16], strides = [1, 1]} : vector<648x16xf32> to vector<6x16xf32>
    %173 = vector.extract_strided_slice %29 {offsets = [22, 0], sizes = [6, 16], strides = [1, 1]} : vector<648x16xf32> to vector<6x16xf32>
    %174 = vector.extract_strided_slice %29 {offsets = [32, 0], sizes = [6, 16], strides = [1, 1]} : vector<648x16xf32> to vector<6x16xf32>
    %175 = tpu.concatenate %171, %172, %173, %174 in 0 : vector<6x16xf32>, vector<6x16xf32>, vector<6x16xf32>, vector<6x16xf32> -> vector<24x16xf32>
    %176 = vector.extract_strided_slice %29 {offsets = [52, 0], sizes = [6, 16], strides = [1, 1]} : vector<648x16xf32> to vector<6x16xf32>
    %177 = vector.extract_strided_slice %29 {offsets = [62, 0], sizes = [6, 16], strides = [1, 1]} : vector<648x16xf32> to vector<6x16xf32>
    %178 = vector.extract_strided_slice %29 {offsets = [72, 0], sizes = [6, 16], strides = [1, 1]} : vector<648x16xf32> to vector<6x16xf32>
    %179 = vector.extract_strided_slice %29 {offsets = [82, 0], sizes = [6, 16], strides = [1, 1]} : vector<648x16xf32> to vector<6x16xf32>
    %180 = tpu.concatenate %176, %177, %178, %179 in 0 : vector<6x16xf32>, vector<6x16xf32>, vector<6x16xf32>, vector<6x16xf32> -> vector<24x16xf32>
    %181 = vector.extract_strided_slice %29 {offsets = [102, 0], sizes = [6, 16], strides = [1, 1]} : vector<648x16xf32> to vector<6x16xf32>
    %182 = vector.extract_strided_slice %29 {offsets = [110, 0], sizes = [6, 16], strides = [1, 1]} : vector<648x16xf32> to vector<6x16xf32>
    %183 = vector.extract_strided_slice %29 {offsets = [118, 0], sizes = [6, 16], strides = [1, 1]} : vector<648x16xf32> to vector<6x16xf32>
    %184 = vector.extract_strided_slice %29 {offsets = [126, 0], sizes = [6, 16], strides = [1, 1]} : vector<648x16xf32> to vector<6x16xf32>
    %185 = tpu.concatenate %181, %182, %183, %184 in 0 : vector<6x16xf32>, vector<6x16xf32>, vector<6x16xf32>, vector<6x16xf32> -> vector<24x16xf32>
    %186 = vector.extract_strided_slice %29 {offsets = [280, 0], sizes = [6, 16], strides = [1, 1]} : vector<648x16xf32> to vector<6x16xf32>
    %187 = vector.extract_strided_slice %29 {offsets = [288, 0], sizes = [6, 16], strides = [1, 1]} : vector<648x16xf32> to vector<6x16xf32>
    %188 = vector.extract_strided_slice %29 {offsets = [296, 0], sizes = [6, 16], strides = [1, 1]} : vector<648x16xf32> to vector<6x16xf32>
    %189 = vector.extract_strided_slice %29 {offsets = [304, 0], sizes = [6, 16], strides = [1, 1]} : vector<648x16xf32> to vector<6x16xf32>
    %190 = tpu.concatenate %186, %187, %188, %189 in 0 : vector<6x16xf32>, vector<6x16xf32>, vector<6x16xf32>, vector<6x16xf32> -> vector<24x16xf32>
    %191 = vector.extract_strided_slice %29 {offsets = [320, 0], sizes = [6, 16], strides = [1, 1]} : vector<648x16xf32> to vector<6x16xf32>
    %192 = vector.extract_strided_slice %29 {offsets = [328, 0], sizes = [6, 16], strides = [1, 1]} : vector<648x16xf32> to vector<6x16xf32>
    %193 = vector.extract_strided_slice %29 {offsets = [336, 0], sizes = [6, 16], strides = [1, 1]} : vector<648x16xf32> to vector<6x16xf32>
    %194 = vector.extract_strided_slice %29 {offsets = [344, 0], sizes = [6, 16], strides = [1, 1]} : vector<648x16xf32> to vector<6x16xf32>
    %195 = tpu.concatenate %191, %192, %193, %194 in 0 : vector<6x16xf32>, vector<6x16xf32>, vector<6x16xf32>, vector<6x16xf32> -> vector<24x16xf32>
    %196 = vector.extract_strided_slice %29 {offsets = [182, 0], sizes = [6, 16], strides = [1, 1]} : vector<648x16xf32> to vector<6x16xf32>
    %197 = vector.extract_strided_slice %29 {offsets = [192, 0], sizes = [6, 16], strides = [1, 1]} : vector<648x16xf32> to vector<6x16xf32>
    %198 = vector.extract_strided_slice %29 {offsets = [202, 0], sizes = [6, 16], strides = [1, 1]} : vector<648x16xf32> to vector<6x16xf32>
    %199 = vector.extract_strided_slice %29 {offsets = [212, 0], sizes = [6, 16], strides = [1, 1]} : vector<648x16xf32> to vector<6x16xf32>
    %200 = tpu.concatenate %196, %197, %198, %199 in 0 : vector<6x16xf32>, vector<6x16xf32>, vector<6x16xf32>, vector<6x16xf32> -> vector<24x16xf32>
    %201 = vector.extract_strided_slice %29 {offsets = [232, 0], sizes = [6, 16], strides = [1, 1]} : vector<648x16xf32> to vector<6x16xf32>
    %202 = vector.extract_strided_slice %29 {offsets = [242, 0], sizes = [6, 16], strides = [1, 1]} : vector<648x16xf32> to vector<6x16xf32>
    %203 = vector.extract_strided_slice %29 {offsets = [252, 0], sizes = [6, 16], strides = [1, 1]} : vector<648x16xf32> to vector<6x16xf32>
    %204 = vector.extract_strided_slice %29 {offsets = [262, 0], sizes = [6, 16], strides = [1, 1]} : vector<648x16xf32> to vector<6x16xf32>
    %205 = tpu.concatenate %201, %202, %203, %204 in 0 : vector<6x16xf32>, vector<6x16xf32>, vector<6x16xf32>, vector<6x16xf32> -> vector<24x16xf32>
    %206 = vector.extract_strided_slice %29 {offsets = [282, 0], sizes = [6, 16], strides = [1, 1]} : vector<648x16xf32> to vector<6x16xf32>
    %207 = vector.extract_strided_slice %29 {offsets = [290, 0], sizes = [6, 16], strides = [1, 1]} : vector<648x16xf32> to vector<6x16xf32>
    %208 = vector.extract_strided_slice %29 {offsets = [298, 0], sizes = [6, 16], strides = [1, 1]} : vector<648x16xf32> to vector<6x16xf32>
    %209 = vector.extract_strided_slice %29 {offsets = [306, 0], sizes = [6, 16], strides = [1, 1]} : vector<648x16xf32> to vector<6x16xf32>
    %210 = tpu.concatenate %206, %207, %208, %209 in 0 : vector<6x16xf32>, vector<6x16xf32>, vector<6x16xf32>, vector<6x16xf32> -> vector<24x16xf32>
    %211 = vector.extract_strided_slice %29 {offsets = [440, 0], sizes = [6, 16], strides = [1, 1]} : vector<648x16xf32> to vector<6x16xf32>
    %212 = vector.extract_strided_slice %29 {offsets = [448, 0], sizes = [6, 16], strides = [1, 1]} : vector<648x16xf32> to vector<6x16xf32>
    %213 = vector.extract_strided_slice %29 {offsets = [456, 0], sizes = [6, 16], strides = [1, 1]} : vector<648x16xf32> to vector<6x16xf32>
    %214 = vector.extract_strided_slice %29 {offsets = [464, 0], sizes = [6, 16], strides = [1, 1]} : vector<648x16xf32> to vector<6x16xf32>
    %215 = tpu.concatenate %211, %212, %213, %214 in 0 : vector<6x16xf32>, vector<6x16xf32>, vector<6x16xf32>, vector<6x16xf32> -> vector<24x16xf32>
    %216 = vector.extract_strided_slice %29 {offsets = [472, 0], sizes = [6, 16], strides = [1, 1]} : vector<648x16xf32> to vector<6x16xf32>
    %217 = vector.extract_strided_slice %29 {offsets = [480, 0], sizes = [6, 16], strides = [1, 1]} : vector<648x16xf32> to vector<6x16xf32>
    %218 = vector.extract_strided_slice %29 {offsets = [488, 0], sizes = [6, 16], strides = [1, 1]} : vector<648x16xf32> to vector<6x16xf32>
    %219 = vector.extract_strided_slice %29 {offsets = [496, 0], sizes = [6, 16], strides = [1, 1]} : vector<648x16xf32> to vector<6x16xf32>
    %220 = tpu.concatenate %216, %217, %218, %219 in 0 : vector<6x16xf32>, vector<6x16xf32>, vector<6x16xf32>, vector<6x16xf32> -> vector<24x16xf32>
    %221 = vector.extract_strided_slice %29 {offsets = [362, 0], sizes = [6, 16], strides = [1, 1]} : vector<648x16xf32> to vector<6x16xf32>
    %222 = vector.extract_strided_slice %29 {offsets = [372, 0], sizes = [6, 16], strides = [1, 1]} : vector<648x16xf32> to vector<6x16xf32>
    %223 = vector.extract_strided_slice %29 {offsets = [382, 0], sizes = [6, 16], strides = [1, 1]} : vector<648x16xf32> to vector<6x16xf32>
    %224 = vector.extract_strided_slice %29 {offsets = [392, 0], sizes = [6, 16], strides = [1, 1]} : vector<648x16xf32> to vector<6x16xf32>
    %225 = tpu.concatenate %221, %222, %223, %224 in 0 : vector<6x16xf32>, vector<6x16xf32>, vector<6x16xf32>, vector<6x16xf32> -> vector<24x16xf32>
    %226 = vector.extract_strided_slice %29 {offsets = [402, 0], sizes = [6, 16], strides = [1, 1]} : vector<648x16xf32> to vector<6x16xf32>
    %227 = vector.extract_strided_slice %29 {offsets = [412, 0], sizes = [6, 16], strides = [1, 1]} : vector<648x16xf32> to vector<6x16xf32>
    %228 = vector.extract_strided_slice %29 {offsets = [422, 0], sizes = [6, 16], strides = [1, 1]} : vector<648x16xf32> to vector<6x16xf32>
    %229 = vector.extract_strided_slice %29 {offsets = [432, 0], sizes = [6, 16], strides = [1, 1]} : vector<648x16xf32> to vector<6x16xf32>
    %230 = tpu.concatenate %226, %227, %228, %229 in 0 : vector<6x16xf32>, vector<6x16xf32>, vector<6x16xf32>, vector<6x16xf32> -> vector<24x16xf32>
    %231 = vector.extract_strided_slice %29 {offsets = [442, 0], sizes = [6, 16], strides = [1, 1]} : vector<648x16xf32> to vector<6x16xf32>
    %232 = vector.extract_strided_slice %29 {offsets = [450, 0], sizes = [6, 16], strides = [1, 1]} : vector<648x16xf32> to vector<6x16xf32>
    %233 = vector.extract_strided_slice %29 {offsets = [458, 0], sizes = [6, 16], strides = [1, 1]} : vector<648x16xf32> to vector<6x16xf32>
    %234 = vector.extract_strided_slice %29 {offsets = [466, 0], sizes = [6, 16], strides = [1, 1]} : vector<648x16xf32> to vector<6x16xf32>
    %235 = tpu.concatenate %231, %232, %233, %234 in 0 : vector<6x16xf32>, vector<6x16xf32>, vector<6x16xf32>, vector<6x16xf32> -> vector<24x16xf32>
    %236 = vector.extract_strided_slice %29 {offsets = [584, 0], sizes = [6, 16], strides = [1, 1]} : vector<648x16xf32> to vector<6x16xf32>
    %237 = vector.extract_strided_slice %29 {offsets = [592, 0], sizes = [6, 16], strides = [1, 1]} : vector<648x16xf32> to vector<6x16xf32>
    %238 = vector.extract_strided_slice %29 {offsets = [600, 0], sizes = [6, 16], strides = [1, 1]} : vector<648x16xf32> to vector<6x16xf32>
    %239 = vector.extract_strided_slice %29 {offsets = [608, 0], sizes = [6, 16], strides = [1, 1]} : vector<648x16xf32> to vector<6x16xf32>
    %240 = tpu.concatenate %236, %237, %238, %239 in 0 : vector<6x16xf32>, vector<6x16xf32>, vector<6x16xf32>, vector<6x16xf32> -> vector<24x16xf32>
    %241 = vector.extract_strided_slice %29 {offsets = [616, 0], sizes = [6, 16], strides = [1, 1]} : vector<648x16xf32> to vector<6x16xf32>
    %242 = vector.extract_strided_slice %29 {offsets = [624, 0], sizes = [6, 16], strides = [1, 1]} : vector<648x16xf32> to vector<6x16xf32>
    %243 = vector.extract_strided_slice %29 {offsets = [632, 0], sizes = [6, 16], strides = [1, 1]} : vector<648x16xf32> to vector<6x16xf32>
    %244 = vector.extract_strided_slice %29 {offsets = [640, 0], sizes = [6, 16], strides = [1, 1]} : vector<648x16xf32> to vector<6x16xf32>
    %245 = tpu.concatenate %241, %242, %243, %244 in 0 : vector<6x16xf32>, vector<6x16xf32>, vector<6x16xf32>, vector<6x16xf32> -> vector<24x16xf32>
    %246 = vector.extract_strided_slice %29 {offsets = [506, 0], sizes = [6, 16], strides = [1, 1]} : vector<648x16xf32> to vector<6x16xf32>
    %247 = vector.extract_strided_slice %29 {offsets = [516, 0], sizes = [6, 16], strides = [1, 1]} : vector<648x16xf32> to vector<6x16xf32>
    %248 = vector.extract_strided_slice %29 {offsets = [526, 0], sizes = [6, 16], strides = [1, 1]} : vector<648x16xf32> to vector<6x16xf32>
    %249 = vector.extract_strided_slice %29 {offsets = [536, 0], sizes = [6, 16], strides = [1, 1]} : vector<648x16xf32> to vector<6x16xf32>
    %250 = tpu.concatenate %246, %247, %248, %249 in 0 : vector<6x16xf32>, vector<6x16xf32>, vector<6x16xf32>, vector<6x16xf32> -> vector<24x16xf32>
    %251 = vector.extract_strided_slice %29 {offsets = [546, 0], sizes = [6, 16], strides = [1, 1]} : vector<648x16xf32> to vector<6x16xf32>
    %252 = vector.extract_strided_slice %29 {offsets = [556, 0], sizes = [6, 16], strides = [1, 1]} : vector<648x16xf32> to vector<6x16xf32>
    %253 = vector.extract_strided_slice %29 {offsets = [566, 0], sizes = [6, 16], strides = [1, 1]} : vector<648x16xf32> to vector<6x16xf32>
    %254 = vector.extract_strided_slice %29 {offsets = [576, 0], sizes = [6, 16], strides = [1, 1]} : vector<648x16xf32> to vector<6x16xf32>
    %255 = tpu.concatenate %251, %252, %253, %254 in 0 : vector<6x16xf32>, vector<6x16xf32>, vector<6x16xf32>, vector<6x16xf32> -> vector<24x16xf32>
    %256 = vector.extract_strided_slice %29 {offsets = [586, 0], sizes = [6, 16], strides = [1, 1]} : vector<648x16xf32> to vector<6x16xf32>
    %257 = vector.extract_strided_slice %29 {offsets = [594, 0], sizes = [6, 16], strides = [1, 1]} : vector<648x16xf32> to vector<6x16xf32>
    %258 = vector.extract_strided_slice %29 {offsets = [602, 0], sizes = [6, 16], strides = [1, 1]} : vector<648x16xf32> to vector<6x16xf32>
    %259 = vector.extract_strided_slice %29 {offsets = [610, 0], sizes = [6, 16], strides = [1, 1]} : vector<648x16xf32> to vector<6x16xf32>
    %260 = tpu.concatenate %256, %257, %258, %259 in 0 : vector<6x16xf32>, vector<6x16xf32>, vector<6x16xf32>, vector<6x16xf32> -> vector<24x16xf32>
    %261 = vector.extract_strided_slice %29 {offsets = [108, 0], sizes = [6, 16], strides = [1, 1]} : vector<648x16xf32> to vector<6x16xf32>
    %262 = vector.extract_strided_slice %29 {offsets = [116, 0], sizes = [6, 16], strides = [1, 1]} : vector<648x16xf32> to vector<6x16xf32>
    %263 = vector.extract_strided_slice %29 {offsets = [124, 0], sizes = [6, 16], strides = [1, 1]} : vector<648x16xf32> to vector<6x16xf32>
    %264 = vector.extract_strided_slice %29 {offsets = [132, 0], sizes = [6, 16], strides = [1, 1]} : vector<648x16xf32> to vector<6x16xf32>
    %265 = tpu.concatenate %261, %262, %263, %264 in 0 : vector<6x16xf32>, vector<6x16xf32>, vector<6x16xf32>, vector<6x16xf32> -> vector<24x16xf32>
    %266 = vector.extract_strided_slice %29 {offsets = [148, 0], sizes = [6, 16], strides = [1, 1]} : vector<648x16xf32> to vector<6x16xf32>
    %267 = vector.extract_strided_slice %29 {offsets = [156, 0], sizes = [6, 16], strides = [1, 1]} : vector<648x16xf32> to vector<6x16xf32>
    %268 = vector.extract_strided_slice %29 {offsets = [164, 0], sizes = [6, 16], strides = [1, 1]} : vector<648x16xf32> to vector<6x16xf32>
    %269 = vector.extract_strided_slice %29 {offsets = [172, 0], sizes = [6, 16], strides = [1, 1]} : vector<648x16xf32> to vector<6x16xf32>
    %270 = tpu.concatenate %266, %267, %268, %269 in 0 : vector<6x16xf32>, vector<6x16xf32>, vector<6x16xf32>, vector<6x16xf32> -> vector<24x16xf32>
    %271 = vector.extract_strided_slice %29 {offsets = [12, 0], sizes = [6, 16], strides = [1, 1]} : vector<648x16xf32> to vector<6x16xf32>
    %272 = vector.extract_strided_slice %29 {offsets = [22, 0], sizes = [6, 16], strides = [1, 1]} : vector<648x16xf32> to vector<6x16xf32>
    %273 = vector.extract_strided_slice %29 {offsets = [32, 0], sizes = [6, 16], strides = [1, 1]} : vector<648x16xf32> to vector<6x16xf32>
    %274 = vector.extract_strided_slice %29 {offsets = [42, 0], sizes = [6, 16], strides = [1, 1]} : vector<648x16xf32> to vector<6x16xf32>
    %275 = tpu.concatenate %271, %272, %273, %274 in 0 : vector<6x16xf32>, vector<6x16xf32>, vector<6x16xf32>, vector<6x16xf32> -> vector<24x16xf32>
    %276 = vector.extract_strided_slice %29 {offsets = [62, 0], sizes = [6, 16], strides = [1, 1]} : vector<648x16xf32> to vector<6x16xf32>
    %277 = vector.extract_strided_slice %29 {offsets = [72, 0], sizes = [6, 16], strides = [1, 1]} : vector<648x16xf32> to vector<6x16xf32>
    %278 = vector.extract_strided_slice %29 {offsets = [82, 0], sizes = [6, 16], strides = [1, 1]} : vector<648x16xf32> to vector<6x16xf32>
    %279 = vector.extract_strided_slice %29 {offsets = [92, 0], sizes = [6, 16], strides = [1, 1]} : vector<648x16xf32> to vector<6x16xf32>
    %280 = tpu.concatenate %276, %277, %278, %279 in 0 : vector<6x16xf32>, vector<6x16xf32>, vector<6x16xf32>, vector<6x16xf32> -> vector<24x16xf32>
    %281 = vector.extract_strided_slice %29 {offsets = [110, 0], sizes = [6, 16], strides = [1, 1]} : vector<648x16xf32> to vector<6x16xf32>
    %282 = vector.extract_strided_slice %29 {offsets = [118, 0], sizes = [6, 16], strides = [1, 1]} : vector<648x16xf32> to vector<6x16xf32>
    %283 = vector.extract_strided_slice %29 {offsets = [126, 0], sizes = [6, 16], strides = [1, 1]} : vector<648x16xf32> to vector<6x16xf32>
    %284 = vector.extract_strided_slice %29 {offsets = [134, 0], sizes = [6, 16], strides = [1, 1]} : vector<648x16xf32> to vector<6x16xf32>
    %285 = tpu.concatenate %281, %282, %283, %284 in 0 : vector<6x16xf32>, vector<6x16xf32>, vector<6x16xf32>, vector<6x16xf32> -> vector<24x16xf32>
    %286 = tpu.concatenate %165, %170, %175, %180, %185, %190, %195, %200, %205, %210, %215, %220, %225, %230, %235, %240 in 1 : vector<24x16xf32>, vector<24x16xf32>, vector<24x16xf32>, vector<24x16xf32>, vector<24x16xf32>, vector<24x16xf32>, vector<24x16xf32>, vector<24x16xf32>, vector<24x16xf32>, vector<24x16xf32>, vector<24x16xf32>, vector<24x16xf32>, vector<24x16xf32>, vector<24x16xf32>, vector<24x16xf32>, vector<24x16xf32> -> vector<24x256xf32>
    %287 = tpu.concatenate %245, %250, %255, %260, %265, %270, %275, %280, %285 in 1 : vector<24x16xf32>, vector<24x16xf32>, vector<24x16xf32>, vector<24x16xf32>, vector<24x16xf32>, vector<24x16xf32>, vector<24x16xf32>, vector<24x16xf32>, vector<24x16xf32> -> vector<24x144xf32>
    %288 = tpu.concatenate %286, %287 in 1 : vector<24x256xf32>, vector<24x144xf32> -> vector<24x400xf32>
    %289 = arith.truncf %288 : vector<24x400xf32> to vector<24x400xbf16>
    %cst_16 = arith.constant dense<0.000000e+00> : vector<24x128xf32>
    %290 = tpu.matmul %289, %30, %cst_16 {dimension_numbers = #tpu.dot_dimension_numbers<[1], [0], [0], [1], [0, 0, 1, 1], [], []>} : vector<24x400xbf16>, vector<400x128xbf16>, vector<24x128xf32> -> vector<24x128xf32>
    %291 = vector.extract_strided_slice %29 {offsets = [360, 0], sizes = [8, 16], strides = [1, 1]} : vector<648x16xf32> to vector<8x16xf32>
    %292 = vector.extract_strided_slice %29 {offsets = [370, 0], sizes = [8, 16], strides = [1, 1]} : vector<648x16xf32> to vector<8x16xf32>
    %293 = vector.extract_strided_slice %29 {offsets = [380, 0], sizes = [8, 16], strides = [1, 1]} : vector<648x16xf32> to vector<8x16xf32>
    %294 = tpu.concatenate %291, %292, %293 in 0 : vector<8x16xf32>, vector<8x16xf32>, vector<8x16xf32> -> vector<24x16xf32>
    %295 = vector.extract_strided_slice %29 {offsets = [400, 0], sizes = [8, 16], strides = [1, 1]} : vector<648x16xf32> to vector<8x16xf32>
    %296 = vector.extract_strided_slice %29 {offsets = [410, 0], sizes = [8, 16], strides = [1, 1]} : vector<648x16xf32> to vector<8x16xf32>
    %297 = vector.extract_strided_slice %29 {offsets = [420, 0], sizes = [8, 16], strides = [1, 1]} : vector<648x16xf32> to vector<8x16xf32>
    %298 = tpu.concatenate %295, %296, %297 in 0 : vector<8x16xf32>, vector<8x16xf32>, vector<8x16xf32> -> vector<24x16xf32>
    %299 = vector.extract_strided_slice %29 {offsets = [440, 0], sizes = [8, 16], strides = [1, 1]} : vector<648x16xf32> to vector<8x16xf32>
    %300 = vector.extract_strided_slice %29 {offsets = [448, 0], sizes = [8, 16], strides = [1, 1]} : vector<648x16xf32> to vector<8x16xf32>
    %301 = vector.extract_strided_slice %29 {offsets = [456, 0], sizes = [8, 16], strides = [1, 1]} : vector<648x16xf32> to vector<8x16xf32>
    %302 = tpu.concatenate %299, %300, %301 in 0 : vector<8x16xf32>, vector<8x16xf32>, vector<8x16xf32> -> vector<24x16xf32>
    %303 = vector.extract_strided_slice %29 {offsets = [472, 0], sizes = [8, 16], strides = [1, 1]} : vector<648x16xf32> to vector<8x16xf32>
    %304 = vector.extract_strided_slice %29 {offsets = [480, 0], sizes = [8, 16], strides = [1, 1]} : vector<648x16xf32> to vector<8x16xf32>
    %305 = vector.extract_strided_slice %29 {offsets = [488, 0], sizes = [8, 16], strides = [1, 1]} : vector<648x16xf32> to vector<8x16xf32>
    %306 = tpu.concatenate %303, %304, %305 in 0 : vector<8x16xf32>, vector<8x16xf32>, vector<8x16xf32> -> vector<24x16xf32>
    %307 = vector.extract_strided_slice %29 {offsets = [362, 0], sizes = [8, 16], strides = [1, 1]} : vector<648x16xf32> to vector<8x16xf32>
    %308 = vector.extract_strided_slice %29 {offsets = [372, 0], sizes = [8, 16], strides = [1, 1]} : vector<648x16xf32> to vector<8x16xf32>
    %309 = vector.extract_strided_slice %29 {offsets = [382, 0], sizes = [8, 16], strides = [1, 1]} : vector<648x16xf32> to vector<8x16xf32>
    %310 = tpu.concatenate %307, %308, %309 in 0 : vector<8x16xf32>, vector<8x16xf32>, vector<8x16xf32> -> vector<24x16xf32>
    %311 = vector.extract_strided_slice %29 {offsets = [504, 0], sizes = [8, 16], strides = [1, 1]} : vector<648x16xf32> to vector<8x16xf32>
    %312 = vector.extract_strided_slice %29 {offsets = [514, 0], sizes = [8, 16], strides = [1, 1]} : vector<648x16xf32> to vector<8x16xf32>
    %313 = vector.extract_strided_slice %29 {offsets = [524, 0], sizes = [8, 16], strides = [1, 1]} : vector<648x16xf32> to vector<8x16xf32>
    %314 = tpu.concatenate %311, %312, %313 in 0 : vector<8x16xf32>, vector<8x16xf32>, vector<8x16xf32> -> vector<24x16xf32>
    %315 = vector.extract_strided_slice %29 {offsets = [544, 0], sizes = [8, 16], strides = [1, 1]} : vector<648x16xf32> to vector<8x16xf32>
    %316 = vector.extract_strided_slice %29 {offsets = [554, 0], sizes = [8, 16], strides = [1, 1]} : vector<648x16xf32> to vector<8x16xf32>
    %317 = vector.extract_strided_slice %29 {offsets = [564, 0], sizes = [8, 16], strides = [1, 1]} : vector<648x16xf32> to vector<8x16xf32>
    %318 = tpu.concatenate %315, %316, %317 in 0 : vector<8x16xf32>, vector<8x16xf32>, vector<8x16xf32> -> vector<24x16xf32>
    %319 = vector.extract_strided_slice %29 {offsets = [584, 0], sizes = [8, 16], strides = [1, 1]} : vector<648x16xf32> to vector<8x16xf32>
    %320 = vector.extract_strided_slice %29 {offsets = [592, 0], sizes = [8, 16], strides = [1, 1]} : vector<648x16xf32> to vector<8x16xf32>
    %321 = vector.extract_strided_slice %29 {offsets = [600, 0], sizes = [8, 16], strides = [1, 1]} : vector<648x16xf32> to vector<8x16xf32>
    %322 = tpu.concatenate %319, %320, %321 in 0 : vector<8x16xf32>, vector<8x16xf32>, vector<8x16xf32> -> vector<24x16xf32>
    %323 = vector.extract_strided_slice %29 {offsets = [616, 0], sizes = [8, 16], strides = [1, 1]} : vector<648x16xf32> to vector<8x16xf32>
    %324 = vector.extract_strided_slice %29 {offsets = [624, 0], sizes = [8, 16], strides = [1, 1]} : vector<648x16xf32> to vector<8x16xf32>
    %325 = vector.extract_strided_slice %29 {offsets = [632, 0], sizes = [8, 16], strides = [1, 1]} : vector<648x16xf32> to vector<8x16xf32>
    %326 = tpu.concatenate %323, %324, %325 in 0 : vector<8x16xf32>, vector<8x16xf32>, vector<8x16xf32> -> vector<24x16xf32>
    %327 = vector.extract_strided_slice %29 {offsets = [506, 0], sizes = [8, 16], strides = [1, 1]} : vector<648x16xf32> to vector<8x16xf32>
    %328 = vector.extract_strided_slice %29 {offsets = [516, 0], sizes = [8, 16], strides = [1, 1]} : vector<648x16xf32> to vector<8x16xf32>
    %329 = vector.extract_strided_slice %29 {offsets = [526, 0], sizes = [8, 16], strides = [1, 1]} : vector<648x16xf32> to vector<8x16xf32>
    %330 = tpu.concatenate %327, %328, %329 in 0 : vector<8x16xf32>, vector<8x16xf32>, vector<8x16xf32> -> vector<24x16xf32>
    %331 = vector.extract_strided_slice %29 {offsets = [10, 0], sizes = [8, 16], strides = [1, 1]} : vector<648x16xf32> to vector<8x16xf32>
    %332 = vector.extract_strided_slice %29 {offsets = [20, 0], sizes = [8, 16], strides = [1, 1]} : vector<648x16xf32> to vector<8x16xf32>
    %333 = vector.extract_strided_slice %29 {offsets = [30, 0], sizes = [8, 16], strides = [1, 1]} : vector<648x16xf32> to vector<8x16xf32>
    %334 = tpu.concatenate %331, %332, %333 in 0 : vector<8x16xf32>, vector<8x16xf32>, vector<8x16xf32> -> vector<24x16xf32>
    %335 = vector.extract_strided_slice %29 {offsets = [60, 0], sizes = [8, 16], strides = [1, 1]} : vector<648x16xf32> to vector<8x16xf32>
    %336 = vector.extract_strided_slice %29 {offsets = [70, 0], sizes = [8, 16], strides = [1, 1]} : vector<648x16xf32> to vector<8x16xf32>
    %337 = vector.extract_strided_slice %29 {offsets = [80, 0], sizes = [8, 16], strides = [1, 1]} : vector<648x16xf32> to vector<8x16xf32>
    %338 = tpu.concatenate %335, %336, %337 in 0 : vector<8x16xf32>, vector<8x16xf32>, vector<8x16xf32> -> vector<24x16xf32>
    %339 = vector.extract_strided_slice %29 {offsets = [108, 0], sizes = [8, 16], strides = [1, 1]} : vector<648x16xf32> to vector<8x16xf32>
    %340 = vector.extract_strided_slice %29 {offsets = [116, 0], sizes = [8, 16], strides = [1, 1]} : vector<648x16xf32> to vector<8x16xf32>
    %341 = vector.extract_strided_slice %29 {offsets = [124, 0], sizes = [8, 16], strides = [1, 1]} : vector<648x16xf32> to vector<8x16xf32>
    %342 = tpu.concatenate %339, %340, %341 in 0 : vector<8x16xf32>, vector<8x16xf32>, vector<8x16xf32> -> vector<24x16xf32>
    %343 = vector.extract_strided_slice %29 {offsets = [148, 0], sizes = [8, 16], strides = [1, 1]} : vector<648x16xf32> to vector<8x16xf32>
    %344 = vector.extract_strided_slice %29 {offsets = [156, 0], sizes = [8, 16], strides = [1, 1]} : vector<648x16xf32> to vector<8x16xf32>
    %345 = vector.extract_strided_slice %29 {offsets = [164, 0], sizes = [8, 16], strides = [1, 1]} : vector<648x16xf32> to vector<8x16xf32>
    %346 = tpu.concatenate %343, %344, %345 in 0 : vector<8x16xf32>, vector<8x16xf32>, vector<8x16xf32> -> vector<24x16xf32>
    %347 = vector.extract_strided_slice %29 {offsets = [12, 0], sizes = [8, 16], strides = [1, 1]} : vector<648x16xf32> to vector<8x16xf32>
    %348 = vector.extract_strided_slice %29 {offsets = [22, 0], sizes = [8, 16], strides = [1, 1]} : vector<648x16xf32> to vector<8x16xf32>
    %349 = vector.extract_strided_slice %29 {offsets = [32, 0], sizes = [8, 16], strides = [1, 1]} : vector<648x16xf32> to vector<8x16xf32>
    %350 = tpu.concatenate %347, %348, %349 in 0 : vector<8x16xf32>, vector<8x16xf32>, vector<8x16xf32> -> vector<24x16xf32>
    %351 = vector.extract_strided_slice %29 {offsets = [190, 0], sizes = [8, 16], strides = [1, 1]} : vector<648x16xf32> to vector<8x16xf32>
    %352 = vector.extract_strided_slice %29 {offsets = [200, 0], sizes = [8, 16], strides = [1, 1]} : vector<648x16xf32> to vector<8x16xf32>
    %353 = vector.extract_strided_slice %29 {offsets = [210, 0], sizes = [8, 16], strides = [1, 1]} : vector<648x16xf32> to vector<8x16xf32>
    %354 = tpu.concatenate %351, %352, %353 in 0 : vector<8x16xf32>, vector<8x16xf32>, vector<8x16xf32> -> vector<24x16xf32>
    %355 = vector.extract_strided_slice %29 {offsets = [240, 0], sizes = [8, 16], strides = [1, 1]} : vector<648x16xf32> to vector<8x16xf32>
    %356 = vector.extract_strided_slice %29 {offsets = [250, 0], sizes = [8, 16], strides = [1, 1]} : vector<648x16xf32> to vector<8x16xf32>
    %357 = vector.extract_strided_slice %29 {offsets = [260, 0], sizes = [8, 16], strides = [1, 1]} : vector<648x16xf32> to vector<8x16xf32>
    %358 = tpu.concatenate %355, %356, %357 in 0 : vector<8x16xf32>, vector<8x16xf32>, vector<8x16xf32> -> vector<24x16xf32>
    %359 = vector.extract_strided_slice %29 {offsets = [288, 0], sizes = [8, 16], strides = [1, 1]} : vector<648x16xf32> to vector<8x16xf32>
    %360 = vector.extract_strided_slice %29 {offsets = [296, 0], sizes = [8, 16], strides = [1, 1]} : vector<648x16xf32> to vector<8x16xf32>
    %361 = vector.extract_strided_slice %29 {offsets = [304, 0], sizes = [8, 16], strides = [1, 1]} : vector<648x16xf32> to vector<8x16xf32>
    %362 = tpu.concatenate %359, %360, %361 in 0 : vector<8x16xf32>, vector<8x16xf32>, vector<8x16xf32> -> vector<24x16xf32>
    %363 = vector.extract_strided_slice %29 {offsets = [328, 0], sizes = [8, 16], strides = [1, 1]} : vector<648x16xf32> to vector<8x16xf32>
    %364 = vector.extract_strided_slice %29 {offsets = [336, 0], sizes = [8, 16], strides = [1, 1]} : vector<648x16xf32> to vector<8x16xf32>
    %365 = vector.extract_strided_slice %29 {offsets = [344, 0], sizes = [8, 16], strides = [1, 1]} : vector<648x16xf32> to vector<8x16xf32>
    %366 = tpu.concatenate %363, %364, %365 in 0 : vector<8x16xf32>, vector<8x16xf32>, vector<8x16xf32> -> vector<24x16xf32>
    %367 = vector.extract_strided_slice %29 {offsets = [192, 0], sizes = [8, 16], strides = [1, 1]} : vector<648x16xf32> to vector<8x16xf32>
    %368 = vector.extract_strided_slice %29 {offsets = [202, 0], sizes = [8, 16], strides = [1, 1]} : vector<648x16xf32> to vector<8x16xf32>
    %369 = vector.extract_strided_slice %29 {offsets = [212, 0], sizes = [8, 16], strides = [1, 1]} : vector<648x16xf32> to vector<8x16xf32>
    %370 = tpu.concatenate %367, %368, %369 in 0 : vector<8x16xf32>, vector<8x16xf32>, vector<8x16xf32> -> vector<24x16xf32>
    %371 = vector.extract_strided_slice %29 {offsets = [370, 0], sizes = [8, 16], strides = [1, 1]} : vector<648x16xf32> to vector<8x16xf32>
    %372 = vector.extract_strided_slice %29 {offsets = [380, 0], sizes = [8, 16], strides = [1, 1]} : vector<648x16xf32> to vector<8x16xf32>
    %373 = vector.extract_strided_slice %29 {offsets = [390, 0], sizes = [8, 16], strides = [1, 1]} : vector<648x16xf32> to vector<8x16xf32>
    %374 = tpu.concatenate %371, %372, %373 in 0 : vector<8x16xf32>, vector<8x16xf32>, vector<8x16xf32> -> vector<24x16xf32>
    %375 = vector.extract_strided_slice %29 {offsets = [410, 0], sizes = [8, 16], strides = [1, 1]} : vector<648x16xf32> to vector<8x16xf32>
    %376 = vector.extract_strided_slice %29 {offsets = [420, 0], sizes = [8, 16], strides = [1, 1]} : vector<648x16xf32> to vector<8x16xf32>
    %377 = vector.extract_strided_slice %29 {offsets = [430, 0], sizes = [8, 16], strides = [1, 1]} : vector<648x16xf32> to vector<8x16xf32>
    %378 = tpu.concatenate %375, %376, %377 in 0 : vector<8x16xf32>, vector<8x16xf32>, vector<8x16xf32> -> vector<24x16xf32>
    %379 = vector.extract_strided_slice %29 {offsets = [448, 0], sizes = [8, 16], strides = [1, 1]} : vector<648x16xf32> to vector<8x16xf32>
    %380 = vector.extract_strided_slice %29 {offsets = [456, 0], sizes = [8, 16], strides = [1, 1]} : vector<648x16xf32> to vector<8x16xf32>
    %381 = vector.extract_strided_slice %29 {offsets = [464, 0], sizes = [8, 16], strides = [1, 1]} : vector<648x16xf32> to vector<8x16xf32>
    %382 = tpu.concatenate %379, %380, %381 in 0 : vector<8x16xf32>, vector<8x16xf32>, vector<8x16xf32> -> vector<24x16xf32>
    %383 = vector.extract_strided_slice %29 {offsets = [480, 0], sizes = [8, 16], strides = [1, 1]} : vector<648x16xf32> to vector<8x16xf32>
    %384 = vector.extract_strided_slice %29 {offsets = [488, 0], sizes = [8, 16], strides = [1, 1]} : vector<648x16xf32> to vector<8x16xf32>
    %385 = vector.extract_strided_slice %29 {offsets = [496, 0], sizes = [8, 16], strides = [1, 1]} : vector<648x16xf32> to vector<8x16xf32>
    %386 = tpu.concatenate %383, %384, %385 in 0 : vector<8x16xf32>, vector<8x16xf32>, vector<8x16xf32> -> vector<24x16xf32>
    %387 = vector.extract_strided_slice %29 {offsets = [372, 0], sizes = [8, 16], strides = [1, 1]} : vector<648x16xf32> to vector<8x16xf32>
    %388 = vector.extract_strided_slice %29 {offsets = [382, 0], sizes = [8, 16], strides = [1, 1]} : vector<648x16xf32> to vector<8x16xf32>
    %389 = vector.extract_strided_slice %29 {offsets = [392, 0], sizes = [8, 16], strides = [1, 1]} : vector<648x16xf32> to vector<8x16xf32>
    %390 = tpu.concatenate %387, %388, %389 in 0 : vector<8x16xf32>, vector<8x16xf32>, vector<8x16xf32> -> vector<24x16xf32>
    %391 = tpu.concatenate %294, %298, %302, %306, %310, %314, %318, %322, %326, %330, %334, %338, %342, %346, %350, %354 in 1 : vector<24x16xf32>, vector<24x16xf32>, vector<24x16xf32>, vector<24x16xf32>, vector<24x16xf32>, vector<24x16xf32>, vector<24x16xf32>, vector<24x16xf32>, vector<24x16xf32>, vector<24x16xf32>, vector<24x16xf32>, vector<24x16xf32>, vector<24x16xf32>, vector<24x16xf32>, vector<24x16xf32>, vector<24x16xf32> -> vector<24x256xf32>
    %392 = tpu.concatenate %358, %362, %366, %370, %374, %378, %382, %386, %390 in 1 : vector<24x16xf32>, vector<24x16xf32>, vector<24x16xf32>, vector<24x16xf32>, vector<24x16xf32>, vector<24x16xf32>, vector<24x16xf32>, vector<24x16xf32>, vector<24x16xf32> -> vector<24x144xf32>
    %393 = tpu.concatenate %391, %392 in 1 : vector<24x256xf32>, vector<24x144xf32> -> vector<24x400xf32>
    %394 = arith.truncf %393 : vector<24x400xf32> to vector<24x400xbf16>
    %cst_17 = arith.constant dense<0.000000e+00> : vector<24x128xf32>
    %395 = tpu.matmul %394, %30, %cst_17 {dimension_numbers = #tpu.dot_dimension_numbers<[1], [0], [0], [1], [0, 0, 1, 1], [], []>} : vector<24x400xbf16>, vector<400x128xbf16>, vector<24x128xf32> -> vector<24x128xf32>
    %396 = vector.extract_strided_slice %29 {offsets = [440, 0], sizes = [6, 16], strides = [1, 1]} : vector<648x16xf32> to vector<6x16xf32>
    %397 = vector.extract_strided_slice %29 {offsets = [448, 0], sizes = [6, 16], strides = [1, 1]} : vector<648x16xf32> to vector<6x16xf32>
    %398 = vector.extract_strided_slice %29 {offsets = [456, 0], sizes = [6, 16], strides = [1, 1]} : vector<648x16xf32> to vector<6x16xf32>
    %399 = tpu.concatenate %396, %397, %398 in 0 : vector<6x16xf32>, vector<6x16xf32>, vector<6x16xf32> -> vector<18x16xf32>
    %400 = vector.extract_strided_slice %29 {offsets = [472, 0], sizes = [6, 16], strides = [1, 1]} : vector<648x16xf32> to vector<6x16xf32>
    %401 = vector.extract_strided_slice %29 {offsets = [480, 0], sizes = [6, 16], strides = [1, 1]} : vector<648x16xf32> to vector<6x16xf32>
    %402 = vector.extract_strided_slice %29 {offsets = [488, 0], sizes = [6, 16], strides = [1, 1]} : vector<648x16xf32> to vector<6x16xf32>
    %403 = tpu.concatenate %400, %401, %402 in 0 : vector<6x16xf32>, vector<6x16xf32>, vector<6x16xf32> -> vector<18x16xf32>
    %404 = vector.extract_strided_slice %29 {offsets = [362, 0], sizes = [6, 16], strides = [1, 1]} : vector<648x16xf32> to vector<6x16xf32>
    %405 = vector.extract_strided_slice %29 {offsets = [372, 0], sizes = [6, 16], strides = [1, 1]} : vector<648x16xf32> to vector<6x16xf32>
    %406 = vector.extract_strided_slice %29 {offsets = [382, 0], sizes = [6, 16], strides = [1, 1]} : vector<648x16xf32> to vector<6x16xf32>
    %407 = tpu.concatenate %404, %405, %406 in 0 : vector<6x16xf32>, vector<6x16xf32>, vector<6x16xf32> -> vector<18x16xf32>
    %408 = vector.extract_strided_slice %29 {offsets = [402, 0], sizes = [6, 16], strides = [1, 1]} : vector<648x16xf32> to vector<6x16xf32>
    %409 = vector.extract_strided_slice %29 {offsets = [412, 0], sizes = [6, 16], strides = [1, 1]} : vector<648x16xf32> to vector<6x16xf32>
    %410 = vector.extract_strided_slice %29 {offsets = [422, 0], sizes = [6, 16], strides = [1, 1]} : vector<648x16xf32> to vector<6x16xf32>
    %411 = tpu.concatenate %408, %409, %410 in 0 : vector<6x16xf32>, vector<6x16xf32>, vector<6x16xf32> -> vector<18x16xf32>
    %412 = vector.extract_strided_slice %29 {offsets = [442, 0], sizes = [6, 16], strides = [1, 1]} : vector<648x16xf32> to vector<6x16xf32>
    %413 = vector.extract_strided_slice %29 {offsets = [450, 0], sizes = [6, 16], strides = [1, 1]} : vector<648x16xf32> to vector<6x16xf32>
    %414 = vector.extract_strided_slice %29 {offsets = [458, 0], sizes = [6, 16], strides = [1, 1]} : vector<648x16xf32> to vector<6x16xf32>
    %415 = tpu.concatenate %412, %413, %414 in 0 : vector<6x16xf32>, vector<6x16xf32>, vector<6x16xf32> -> vector<18x16xf32>
    %416 = vector.extract_strided_slice %29 {offsets = [584, 0], sizes = [6, 16], strides = [1, 1]} : vector<648x16xf32> to vector<6x16xf32>
    %417 = vector.extract_strided_slice %29 {offsets = [592, 0], sizes = [6, 16], strides = [1, 1]} : vector<648x16xf32> to vector<6x16xf32>
    %418 = vector.extract_strided_slice %29 {offsets = [600, 0], sizes = [6, 16], strides = [1, 1]} : vector<648x16xf32> to vector<6x16xf32>
    %419 = tpu.concatenate %416, %417, %418 in 0 : vector<6x16xf32>, vector<6x16xf32>, vector<6x16xf32> -> vector<18x16xf32>
    %420 = vector.extract_strided_slice %29 {offsets = [616, 0], sizes = [6, 16], strides = [1, 1]} : vector<648x16xf32> to vector<6x16xf32>
    %421 = vector.extract_strided_slice %29 {offsets = [624, 0], sizes = [6, 16], strides = [1, 1]} : vector<648x16xf32> to vector<6x16xf32>
    %422 = vector.extract_strided_slice %29 {offsets = [632, 0], sizes = [6, 16], strides = [1, 1]} : vector<648x16xf32> to vector<6x16xf32>
    %423 = tpu.concatenate %420, %421, %422 in 0 : vector<6x16xf32>, vector<6x16xf32>, vector<6x16xf32> -> vector<18x16xf32>
    %424 = vector.extract_strided_slice %29 {offsets = [506, 0], sizes = [6, 16], strides = [1, 1]} : vector<648x16xf32> to vector<6x16xf32>
    %425 = vector.extract_strided_slice %29 {offsets = [516, 0], sizes = [6, 16], strides = [1, 1]} : vector<648x16xf32> to vector<6x16xf32>
    %426 = vector.extract_strided_slice %29 {offsets = [526, 0], sizes = [6, 16], strides = [1, 1]} : vector<648x16xf32> to vector<6x16xf32>
    %427 = tpu.concatenate %424, %425, %426 in 0 : vector<6x16xf32>, vector<6x16xf32>, vector<6x16xf32> -> vector<18x16xf32>
    %428 = vector.extract_strided_slice %29 {offsets = [546, 0], sizes = [6, 16], strides = [1, 1]} : vector<648x16xf32> to vector<6x16xf32>
    %429 = vector.extract_strided_slice %29 {offsets = [556, 0], sizes = [6, 16], strides = [1, 1]} : vector<648x16xf32> to vector<6x16xf32>
    %430 = vector.extract_strided_slice %29 {offsets = [566, 0], sizes = [6, 16], strides = [1, 1]} : vector<648x16xf32> to vector<6x16xf32>
    %431 = tpu.concatenate %428, %429, %430 in 0 : vector<6x16xf32>, vector<6x16xf32>, vector<6x16xf32> -> vector<18x16xf32>
    %432 = vector.extract_strided_slice %29 {offsets = [586, 0], sizes = [6, 16], strides = [1, 1]} : vector<648x16xf32> to vector<6x16xf32>
    %433 = vector.extract_strided_slice %29 {offsets = [594, 0], sizes = [6, 16], strides = [1, 1]} : vector<648x16xf32> to vector<6x16xf32>
    %434 = vector.extract_strided_slice %29 {offsets = [602, 0], sizes = [6, 16], strides = [1, 1]} : vector<648x16xf32> to vector<6x16xf32>
    %435 = tpu.concatenate %432, %433, %434 in 0 : vector<6x16xf32>, vector<6x16xf32>, vector<6x16xf32> -> vector<18x16xf32>
    %436 = vector.extract_strided_slice %29 {offsets = [108, 0], sizes = [6, 16], strides = [1, 1]} : vector<648x16xf32> to vector<6x16xf32>
    %437 = vector.extract_strided_slice %29 {offsets = [116, 0], sizes = [6, 16], strides = [1, 1]} : vector<648x16xf32> to vector<6x16xf32>
    %438 = vector.extract_strided_slice %29 {offsets = [124, 0], sizes = [6, 16], strides = [1, 1]} : vector<648x16xf32> to vector<6x16xf32>
    %439 = tpu.concatenate %436, %437, %438 in 0 : vector<6x16xf32>, vector<6x16xf32>, vector<6x16xf32> -> vector<18x16xf32>
    %440 = vector.extract_strided_slice %29 {offsets = [148, 0], sizes = [6, 16], strides = [1, 1]} : vector<648x16xf32> to vector<6x16xf32>
    %441 = vector.extract_strided_slice %29 {offsets = [156, 0], sizes = [6, 16], strides = [1, 1]} : vector<648x16xf32> to vector<6x16xf32>
    %442 = vector.extract_strided_slice %29 {offsets = [164, 0], sizes = [6, 16], strides = [1, 1]} : vector<648x16xf32> to vector<6x16xf32>
    %443 = tpu.concatenate %440, %441, %442 in 0 : vector<6x16xf32>, vector<6x16xf32>, vector<6x16xf32> -> vector<18x16xf32>
    %444 = vector.extract_strided_slice %29 {offsets = [12, 0], sizes = [6, 16], strides = [1, 1]} : vector<648x16xf32> to vector<6x16xf32>
    %445 = vector.extract_strided_slice %29 {offsets = [22, 0], sizes = [6, 16], strides = [1, 1]} : vector<648x16xf32> to vector<6x16xf32>
    %446 = vector.extract_strided_slice %29 {offsets = [32, 0], sizes = [6, 16], strides = [1, 1]} : vector<648x16xf32> to vector<6x16xf32>
    %447 = tpu.concatenate %444, %445, %446 in 0 : vector<6x16xf32>, vector<6x16xf32>, vector<6x16xf32> -> vector<18x16xf32>
    %448 = vector.extract_strided_slice %29 {offsets = [62, 0], sizes = [6, 16], strides = [1, 1]} : vector<648x16xf32> to vector<6x16xf32>
    %449 = vector.extract_strided_slice %29 {offsets = [72, 0], sizes = [6, 16], strides = [1, 1]} : vector<648x16xf32> to vector<6x16xf32>
    %450 = vector.extract_strided_slice %29 {offsets = [82, 0], sizes = [6, 16], strides = [1, 1]} : vector<648x16xf32> to vector<6x16xf32>
    %451 = tpu.concatenate %448, %449, %450 in 0 : vector<6x16xf32>, vector<6x16xf32>, vector<6x16xf32> -> vector<18x16xf32>
    %452 = vector.extract_strided_slice %29 {offsets = [110, 0], sizes = [6, 16], strides = [1, 1]} : vector<648x16xf32> to vector<6x16xf32>
    %453 = vector.extract_strided_slice %29 {offsets = [118, 0], sizes = [6, 16], strides = [1, 1]} : vector<648x16xf32> to vector<6x16xf32>
    %454 = vector.extract_strided_slice %29 {offsets = [126, 0], sizes = [6, 16], strides = [1, 1]} : vector<648x16xf32> to vector<6x16xf32>
    %455 = tpu.concatenate %452, %453, %454 in 0 : vector<6x16xf32>, vector<6x16xf32>, vector<6x16xf32> -> vector<18x16xf32>
    %456 = vector.extract_strided_slice %29 {offsets = [288, 0], sizes = [6, 16], strides = [1, 1]} : vector<648x16xf32> to vector<6x16xf32>
    %457 = vector.extract_strided_slice %29 {offsets = [296, 0], sizes = [6, 16], strides = [1, 1]} : vector<648x16xf32> to vector<6x16xf32>
    %458 = vector.extract_strided_slice %29 {offsets = [304, 0], sizes = [6, 16], strides = [1, 1]} : vector<648x16xf32> to vector<6x16xf32>
    %459 = tpu.concatenate %456, %457, %458 in 0 : vector<6x16xf32>, vector<6x16xf32>, vector<6x16xf32> -> vector<18x16xf32>
    %460 = vector.extract_strided_slice %29 {offsets = [328, 0], sizes = [6, 16], strides = [1, 1]} : vector<648x16xf32> to vector<6x16xf32>
    %461 = vector.extract_strided_slice %29 {offsets = [336, 0], sizes = [6, 16], strides = [1, 1]} : vector<648x16xf32> to vector<6x16xf32>
    %462 = vector.extract_strided_slice %29 {offsets = [344, 0], sizes = [6, 16], strides = [1, 1]} : vector<648x16xf32> to vector<6x16xf32>
    %463 = tpu.concatenate %460, %461, %462 in 0 : vector<6x16xf32>, vector<6x16xf32>, vector<6x16xf32> -> vector<18x16xf32>
    %464 = vector.extract_strided_slice %29 {offsets = [192, 0], sizes = [6, 16], strides = [1, 1]} : vector<648x16xf32> to vector<6x16xf32>
    %465 = vector.extract_strided_slice %29 {offsets = [202, 0], sizes = [6, 16], strides = [1, 1]} : vector<648x16xf32> to vector<6x16xf32>
    %466 = vector.extract_strided_slice %29 {offsets = [212, 0], sizes = [6, 16], strides = [1, 1]} : vector<648x16xf32> to vector<6x16xf32>
    %467 = tpu.concatenate %464, %465, %466 in 0 : vector<6x16xf32>, vector<6x16xf32>, vector<6x16xf32> -> vector<18x16xf32>
    %468 = vector.extract_strided_slice %29 {offsets = [242, 0], sizes = [6, 16], strides = [1, 1]} : vector<648x16xf32> to vector<6x16xf32>
    %469 = vector.extract_strided_slice %29 {offsets = [252, 0], sizes = [6, 16], strides = [1, 1]} : vector<648x16xf32> to vector<6x16xf32>
    %470 = vector.extract_strided_slice %29 {offsets = [262, 0], sizes = [6, 16], strides = [1, 1]} : vector<648x16xf32> to vector<6x16xf32>
    %471 = tpu.concatenate %468, %469, %470 in 0 : vector<6x16xf32>, vector<6x16xf32>, vector<6x16xf32> -> vector<18x16xf32>
    %472 = vector.extract_strided_slice %29 {offsets = [290, 0], sizes = [6, 16], strides = [1, 1]} : vector<648x16xf32> to vector<6x16xf32>
    %473 = vector.extract_strided_slice %29 {offsets = [298, 0], sizes = [6, 16], strides = [1, 1]} : vector<648x16xf32> to vector<6x16xf32>
    %474 = vector.extract_strided_slice %29 {offsets = [306, 0], sizes = [6, 16], strides = [1, 1]} : vector<648x16xf32> to vector<6x16xf32>
    %475 = tpu.concatenate %472, %473, %474 in 0 : vector<6x16xf32>, vector<6x16xf32>, vector<6x16xf32> -> vector<18x16xf32>
    %476 = vector.extract_strided_slice %29 {offsets = [448, 0], sizes = [6, 16], strides = [1, 1]} : vector<648x16xf32> to vector<6x16xf32>
    %477 = vector.extract_strided_slice %29 {offsets = [456, 0], sizes = [6, 16], strides = [1, 1]} : vector<648x16xf32> to vector<6x16xf32>
    %478 = vector.extract_strided_slice %29 {offsets = [464, 0], sizes = [6, 16], strides = [1, 1]} : vector<648x16xf32> to vector<6x16xf32>
    %479 = tpu.concatenate %476, %477, %478 in 0 : vector<6x16xf32>, vector<6x16xf32>, vector<6x16xf32> -> vector<18x16xf32>
    %480 = vector.extract_strided_slice %29 {offsets = [480, 0], sizes = [6, 16], strides = [1, 1]} : vector<648x16xf32> to vector<6x16xf32>
    %481 = vector.extract_strided_slice %29 {offsets = [488, 0], sizes = [6, 16], strides = [1, 1]} : vector<648x16xf32> to vector<6x16xf32>
    %482 = vector.extract_strided_slice %29 {offsets = [496, 0], sizes = [6, 16], strides = [1, 1]} : vector<648x16xf32> to vector<6x16xf32>
    %483 = tpu.concatenate %480, %481, %482 in 0 : vector<6x16xf32>, vector<6x16xf32>, vector<6x16xf32> -> vector<18x16xf32>
    %484 = vector.extract_strided_slice %29 {offsets = [372, 0], sizes = [6, 16], strides = [1, 1]} : vector<648x16xf32> to vector<6x16xf32>
    %485 = vector.extract_strided_slice %29 {offsets = [382, 0], sizes = [6, 16], strides = [1, 1]} : vector<648x16xf32> to vector<6x16xf32>
    %486 = vector.extract_strided_slice %29 {offsets = [392, 0], sizes = [6, 16], strides = [1, 1]} : vector<648x16xf32> to vector<6x16xf32>
    %487 = tpu.concatenate %484, %485, %486 in 0 : vector<6x16xf32>, vector<6x16xf32>, vector<6x16xf32> -> vector<18x16xf32>
    %488 = vector.extract_strided_slice %29 {offsets = [412, 0], sizes = [6, 16], strides = [1, 1]} : vector<648x16xf32> to vector<6x16xf32>
    %489 = vector.extract_strided_slice %29 {offsets = [422, 0], sizes = [6, 16], strides = [1, 1]} : vector<648x16xf32> to vector<6x16xf32>
    %490 = vector.extract_strided_slice %29 {offsets = [432, 0], sizes = [6, 16], strides = [1, 1]} : vector<648x16xf32> to vector<6x16xf32>
    %491 = tpu.concatenate %488, %489, %490 in 0 : vector<6x16xf32>, vector<6x16xf32>, vector<6x16xf32> -> vector<18x16xf32>
    %492 = vector.extract_strided_slice %29 {offsets = [450, 0], sizes = [6, 16], strides = [1, 1]} : vector<648x16xf32> to vector<6x16xf32>
    %493 = vector.extract_strided_slice %29 {offsets = [458, 0], sizes = [6, 16], strides = [1, 1]} : vector<648x16xf32> to vector<6x16xf32>
    %494 = vector.extract_strided_slice %29 {offsets = [466, 0], sizes = [6, 16], strides = [1, 1]} : vector<648x16xf32> to vector<6x16xf32>
    %495 = tpu.concatenate %492, %493, %494 in 0 : vector<6x16xf32>, vector<6x16xf32>, vector<6x16xf32> -> vector<18x16xf32>
    %496 = tpu.concatenate %399, %403, %407, %411, %415, %419, %423, %427, %431, %435, %439, %443, %447, %451, %455, %459 in 1 : vector<18x16xf32>, vector<18x16xf32>, vector<18x16xf32>, vector<18x16xf32>, vector<18x16xf32>, vector<18x16xf32>, vector<18x16xf32>, vector<18x16xf32>, vector<18x16xf32>, vector<18x16xf32>, vector<18x16xf32>, vector<18x16xf32>, vector<18x16xf32>, vector<18x16xf32>, vector<18x16xf32>, vector<18x16xf32> -> vector<18x256xf32>
    %497 = tpu.concatenate %463, %467, %471, %475, %479, %483, %487, %491, %495 in 1 : vector<18x16xf32>, vector<18x16xf32>, vector<18x16xf32>, vector<18x16xf32>, vector<18x16xf32>, vector<18x16xf32>, vector<18x16xf32>, vector<18x16xf32>, vector<18x16xf32> -> vector<18x144xf32>
    %498 = tpu.concatenate %496, %497 in 1 : vector<18x256xf32>, vector<18x144xf32> -> vector<18x400xf32>
    %499 = arith.truncf %498 : vector<18x400xf32> to vector<18x400xbf16>
    %cst_18 = arith.constant dense<0.000000e+00> : vector<18x128xf32>
    %500 = tpu.matmul %499, %30, %cst_18 {dimension_numbers = #tpu.dot_dimension_numbers<[1], [0], [0], [1], [0, 0, 1, 1], [], []>} : vector<18x400xbf16>, vector<400x128xbf16>, vector<18x128xf32> -> vector<18x128xf32>
    %501 = tpu.concatenate %160, %290, %395, %500 in 0 : vector<32x128xf32>, vector<24x128xf32>, vector<24x128xf32>, vector<18x128xf32> -> vector<98x128xf32>
    %c0_19 = arith.constant 0 : index
    %c0_20 = arith.constant 0 : index
    %502 = vector.load %arg6[%c0_19, %c0_20] : memref<1x128xf32, #tpu.memory_space<vmem>>, vector<1x128xf32>
    %c0_21 = arith.constant 0 : index
    %c0_22 = arith.constant 0 : index
    %503 = vector.load %arg7[%c0_21, %c0_22] : memref<1x128xf32, #tpu.memory_space<vmem>>, vector<1x128xf32>
    %cst_23 = arith.constant dense<0.000000e+00> : vector<128xf32>
    %504 = vector.multi_reduction <add>, %501, %cst_23 [0] : vector<98x128xf32> to vector<128xf32>
    %505 = vector.shape_cast %504 : vector<128xf32> to vector<1x128xf32>
    %cst_24 = arith.constant 0.0102040814 : f32
    %506 = vector.broadcast %cst_24 : f32 to vector<1x128xf32>
    %507 = arith.mulf %505, %506 : vector<1x128xf32>
    %508 = arith.mulf %501, %501 : vector<98x128xf32>
    %cst_25 = arith.constant dense<0.000000e+00> : vector<128xf32>
    %509 = vector.multi_reduction <add>, %508, %cst_25 [0] : vector<98x128xf32> to vector<128xf32>
    %510 = vector.shape_cast %509 : vector<128xf32> to vector<1x128xf32>
    %cst_26 = arith.constant 0.0102040814 : f32
    %511 = vector.broadcast %cst_26 : f32 to vector<1x128xf32>
    %512 = arith.mulf %510, %511 : vector<1x128xf32>
    %513 = arith.mulf %507, %507 : vector<1x128xf32>
    %514 = arith.subf %512, %513 : vector<1x128xf32>
    %cst_27 = arith.constant 0.000000e+00 : f32
    %515 = vector.broadcast %cst_27 : f32 to vector<1x128xf32>
    %516 = arith.maximumf %514, %515 : vector<1x128xf32>
    %517 = vector.broadcast %507 : vector<1x128xf32> to vector<98x128xf32>
    %518 = arith.subf %501, %517 : vector<98x128xf32>
    %cst_28 = arith.constant 9.99999974E-6 : f32
    %519 = vector.broadcast %cst_28 : f32 to vector<1x128xf32>
    %520 = arith.addf %516, %519 : vector<1x128xf32>
    %521 = math.rsqrt %520 : vector<1x128xf32>
    %522 = vector.broadcast %521 : vector<1x128xf32> to vector<98x128xf32>
    %523 = arith.mulf %518, %522 : vector<98x128xf32>
    %524 = vector.broadcast %502 : vector<1x128xf32> to vector<98x128xf32>
    %525 = arith.mulf %523, %524 : vector<98x128xf32>
    %526 = vector.broadcast %503 : vector<1x128xf32> to vector<98x128xf32>
    %527 = arith.addf %525, %526 : vector<98x128xf32>
    %528 = vector.extract_strided_slice %527 {offsets = [0, 0], sizes = [98, 32], strides = [1, 1]} : vector<98x128xf32> to vector<98x32xf32>
    %529 = vector.extract_strided_slice %528 {offsets = [0, 0], sizes = [4, 32], strides = [1, 1]} : vector<98x32xf32> to vector<4x32xf32>
    %530 = vector.extract_strided_slice %528 {offsets = [8, 0], sizes = [4, 32], strides = [1, 1]} : vector<98x32xf32> to vector<4x32xf32>
    %531 = tpu.concatenate %529, %530 in 0 : vector<4x32xf32>, vector<4x32xf32> -> vector<8x32xf32>
    %532 = vector.extract_strided_slice %528 {offsets = [32, 0], sizes = [4, 32], strides = [1, 1]} : vector<98x32xf32> to vector<4x32xf32>
    %533 = vector.extract_strided_slice %528 {offsets = [38, 0], sizes = [4, 32], strides = [1, 1]} : vector<98x32xf32> to vector<4x32xf32>
    %534 = tpu.concatenate %532, %533 in 0 : vector<4x32xf32>, vector<4x32xf32> -> vector<8x32xf32>
    %535 = vector.extract_strided_slice %528 {offsets = [2, 0], sizes = [4, 32], strides = [1, 1]} : vector<98x32xf32> to vector<4x32xf32>
    %536 = vector.extract_strided_slice %528 {offsets = [10, 0], sizes = [4, 32], strides = [1, 1]} : vector<98x32xf32> to vector<4x32xf32>
    %537 = tpu.concatenate %535, %536 in 0 : vector<4x32xf32>, vector<4x32xf32> -> vector<8x32xf32>
    %538 = vector.extract_strided_slice %528 {offsets = [34, 0], sizes = [4, 32], strides = [1, 1]} : vector<98x32xf32> to vector<4x32xf32>
    %539 = vector.extract_strided_slice %528 {offsets = [40, 0], sizes = [4, 32], strides = [1, 1]} : vector<98x32xf32> to vector<4x32xf32>
    %540 = tpu.concatenate %538, %539 in 0 : vector<4x32xf32>, vector<4x32xf32> -> vector<8x32xf32>
    %541 = vector.extract_strided_slice %528 {offsets = [4, 0], sizes = [4, 32], strides = [1, 1]} : vector<98x32xf32> to vector<4x32xf32>
    %542 = vector.extract_strided_slice %528 {offsets = [12, 0], sizes = [4, 32], strides = [1, 1]} : vector<98x32xf32> to vector<4x32xf32>
    %543 = tpu.concatenate %541, %542 in 0 : vector<4x32xf32>, vector<4x32xf32> -> vector<8x32xf32>
    %544 = vector.extract_strided_slice %528 {offsets = [56, 0], sizes = [4, 32], strides = [1, 1]} : vector<98x32xf32> to vector<4x32xf32>
    %545 = vector.extract_strided_slice %528 {offsets = [64, 0], sizes = [4, 32], strides = [1, 1]} : vector<98x32xf32> to vector<4x32xf32>
    %546 = tpu.concatenate %544, %545 in 0 : vector<4x32xf32>, vector<4x32xf32> -> vector<8x32xf32>
    %547 = vector.extract_strided_slice %528 {offsets = [80, 0], sizes = [4, 32], strides = [1, 1]} : vector<98x32xf32> to vector<4x32xf32>
    %548 = vector.extract_strided_slice %528 {offsets = [86, 0], sizes = [4, 32], strides = [1, 1]} : vector<98x32xf32> to vector<4x32xf32>
    %549 = tpu.concatenate %547, %548 in 0 : vector<4x32xf32>, vector<4x32xf32> -> vector<8x32xf32>
    %550 = vector.extract_strided_slice %528 {offsets = [58, 0], sizes = [4, 32], strides = [1, 1]} : vector<98x32xf32> to vector<4x32xf32>
    %551 = vector.extract_strided_slice %528 {offsets = [66, 0], sizes = [4, 32], strides = [1, 1]} : vector<98x32xf32> to vector<4x32xf32>
    %552 = tpu.concatenate %550, %551 in 0 : vector<4x32xf32>, vector<4x32xf32> -> vector<8x32xf32>
    %553 = vector.extract_strided_slice %528 {offsets = [82, 0], sizes = [4, 32], strides = [1, 1]} : vector<98x32xf32> to vector<4x32xf32>
    %554 = vector.extract_strided_slice %528 {offsets = [88, 0], sizes = [4, 32], strides = [1, 1]} : vector<98x32xf32> to vector<4x32xf32>
    %555 = tpu.concatenate %553, %554 in 0 : vector<4x32xf32>, vector<4x32xf32> -> vector<8x32xf32>
    %556 = vector.extract_strided_slice %528 {offsets = [60, 0], sizes = [4, 32], strides = [1, 1]} : vector<98x32xf32> to vector<4x32xf32>
    %557 = vector.extract_strided_slice %528 {offsets = [68, 0], sizes = [4, 32], strides = [1, 1]} : vector<98x32xf32> to vector<4x32xf32>
    %558 = tpu.concatenate %556, %557 in 0 : vector<4x32xf32>, vector<4x32xf32> -> vector<8x32xf32>
    %559 = vector.extract_strided_slice %528 {offsets = [8, 0], sizes = [4, 32], strides = [1, 1]} : vector<98x32xf32> to vector<4x32xf32>
    %560 = vector.extract_strided_slice %528 {offsets = [16, 0], sizes = [4, 32], strides = [1, 1]} : vector<98x32xf32> to vector<4x32xf32>
    %561 = tpu.concatenate %559, %560 in 0 : vector<4x32xf32>, vector<4x32xf32> -> vector<8x32xf32>
    %562 = vector.extract_strided_slice %528 {offsets = [38, 0], sizes = [4, 32], strides = [1, 1]} : vector<98x32xf32> to vector<4x32xf32>
    %563 = vector.extract_strided_slice %528 {offsets = [44, 0], sizes = [4, 32], strides = [1, 1]} : vector<98x32xf32> to vector<4x32xf32>
    %564 = tpu.concatenate %562, %563 in 0 : vector<4x32xf32>, vector<4x32xf32> -> vector<8x32xf32>
    %565 = vector.extract_strided_slice %528 {offsets = [10, 0], sizes = [4, 32], strides = [1, 1]} : vector<98x32xf32> to vector<4x32xf32>
    %566 = vector.extract_strided_slice %528 {offsets = [18, 0], sizes = [4, 32], strides = [1, 1]} : vector<98x32xf32> to vector<4x32xf32>
    %567 = tpu.concatenate %565, %566 in 0 : vector<4x32xf32>, vector<4x32xf32> -> vector<8x32xf32>
    %568 = vector.extract_strided_slice %528 {offsets = [40, 0], sizes = [4, 32], strides = [1, 1]} : vector<98x32xf32> to vector<4x32xf32>
    %569 = vector.extract_strided_slice %528 {offsets = [46, 0], sizes = [4, 32], strides = [1, 1]} : vector<98x32xf32> to vector<4x32xf32>
    %570 = tpu.concatenate %568, %569 in 0 : vector<4x32xf32>, vector<4x32xf32> -> vector<8x32xf32>
    %571 = vector.extract_strided_slice %528 {offsets = [12, 0], sizes = [4, 32], strides = [1, 1]} : vector<98x32xf32> to vector<4x32xf32>
    %572 = vector.extract_strided_slice %528 {offsets = [20, 0], sizes = [4, 32], strides = [1, 1]} : vector<98x32xf32> to vector<4x32xf32>
    %573 = tpu.concatenate %571, %572 in 0 : vector<4x32xf32>, vector<4x32xf32> -> vector<8x32xf32>
    %574 = vector.extract_strided_slice %528 {offsets = [64, 0], sizes = [4, 32], strides = [1, 1]} : vector<98x32xf32> to vector<4x32xf32>
    %575 = vector.extract_strided_slice %528 {offsets = [72, 0], sizes = [4, 32], strides = [1, 1]} : vector<98x32xf32> to vector<4x32xf32>
    %576 = tpu.concatenate %574, %575 in 0 : vector<4x32xf32>, vector<4x32xf32> -> vector<8x32xf32>
    %577 = vector.extract_strided_slice %528 {offsets = [86, 0], sizes = [4, 32], strides = [1, 1]} : vector<98x32xf32> to vector<4x32xf32>
    %578 = vector.extract_strided_slice %528 {offsets = [92, 0], sizes = [4, 32], strides = [1, 1]} : vector<98x32xf32> to vector<4x32xf32>
    %579 = tpu.concatenate %577, %578 in 0 : vector<4x32xf32>, vector<4x32xf32> -> vector<8x32xf32>
    %580 = vector.extract_strided_slice %528 {offsets = [66, 0], sizes = [4, 32], strides = [1, 1]} : vector<98x32xf32> to vector<4x32xf32>
    %581 = vector.extract_strided_slice %528 {offsets = [74, 0], sizes = [4, 32], strides = [1, 1]} : vector<98x32xf32> to vector<4x32xf32>
    %582 = tpu.concatenate %580, %581 in 0 : vector<4x32xf32>, vector<4x32xf32> -> vector<8x32xf32>
    %583 = vector.extract_strided_slice %528 {offsets = [88, 0], sizes = [4, 32], strides = [1, 1]} : vector<98x32xf32> to vector<4x32xf32>
    %584 = vector.extract_strided_slice %528 {offsets = [94, 0], sizes = [4, 32], strides = [1, 1]} : vector<98x32xf32> to vector<4x32xf32>
    %585 = tpu.concatenate %583, %584 in 0 : vector<4x32xf32>, vector<4x32xf32> -> vector<8x32xf32>
    %586 = vector.extract_strided_slice %528 {offsets = [68, 0], sizes = [4, 32], strides = [1, 1]} : vector<98x32xf32> to vector<4x32xf32>
    %587 = vector.extract_strided_slice %528 {offsets = [76, 0], sizes = [4, 32], strides = [1, 1]} : vector<98x32xf32> to vector<4x32xf32>
    %588 = tpu.concatenate %586, %587 in 0 : vector<4x32xf32>, vector<4x32xf32> -> vector<8x32xf32>
    %589 = vector.extract_strided_slice %528 {offsets = [16, 0], sizes = [4, 32], strides = [1, 1]} : vector<98x32xf32> to vector<4x32xf32>
    %590 = vector.extract_strided_slice %528 {offsets = [24, 0], sizes = [4, 32], strides = [1, 1]} : vector<98x32xf32> to vector<4x32xf32>
    %591 = tpu.concatenate %589, %590 in 0 : vector<4x32xf32>, vector<4x32xf32> -> vector<8x32xf32>
    %592 = vector.extract_strided_slice %528 {offsets = [44, 0], sizes = [4, 32], strides = [1, 1]} : vector<98x32xf32> to vector<4x32xf32>
    %593 = vector.extract_strided_slice %528 {offsets = [50, 0], sizes = [4, 32], strides = [1, 1]} : vector<98x32xf32> to vector<4x32xf32>
    %594 = tpu.concatenate %592, %593 in 0 : vector<4x32xf32>, vector<4x32xf32> -> vector<8x32xf32>
    %595 = vector.extract_strided_slice %528 {offsets = [18, 0], sizes = [4, 32], strides = [1, 1]} : vector<98x32xf32> to vector<4x32xf32>
    %596 = vector.extract_strided_slice %528 {offsets = [26, 0], sizes = [4, 32], strides = [1, 1]} : vector<98x32xf32> to vector<4x32xf32>
    %597 = tpu.concatenate %595, %596 in 0 : vector<4x32xf32>, vector<4x32xf32> -> vector<8x32xf32>
    %598 = vector.extract_strided_slice %528 {offsets = [46, 0], sizes = [4, 32], strides = [1, 1]} : vector<98x32xf32> to vector<4x32xf32>
    %599 = vector.extract_strided_slice %528 {offsets = [52, 0], sizes = [4, 32], strides = [1, 1]} : vector<98x32xf32> to vector<4x32xf32>
    %600 = tpu.concatenate %598, %599 in 0 : vector<4x32xf32>, vector<4x32xf32> -> vector<8x32xf32>
    %601 = vector.extract_strided_slice %528 {offsets = [20, 0], sizes = [4, 32], strides = [1, 1]} : vector<98x32xf32> to vector<4x32xf32>
    %602 = vector.extract_strided_slice %528 {offsets = [28, 0], sizes = [4, 32], strides = [1, 1]} : vector<98x32xf32> to vector<4x32xf32>
    %603 = tpu.concatenate %601, %602 in 0 : vector<4x32xf32>, vector<4x32xf32> -> vector<8x32xf32>
    %604 = tpu.concatenate %531, %534, %537, %540, %543, %546, %549, %552, %555, %558, %561, %564, %567, %570, %573, %576 in 1 : vector<8x32xf32>, vector<8x32xf32>, vector<8x32xf32>, vector<8x32xf32>, vector<8x32xf32>, vector<8x32xf32>, vector<8x32xf32>, vector<8x32xf32>, vector<8x32xf32>, vector<8x32xf32>, vector<8x32xf32>, vector<8x32xf32>, vector<8x32xf32>, vector<8x32xf32>, vector<8x32xf32>, vector<8x32xf32> -> vector<8x512xf32>
    %605 = tpu.concatenate %579, %582, %585, %588, %591, %594, %597, %600, %603 in 1 : vector<8x32xf32>, vector<8x32xf32>, vector<8x32xf32>, vector<8x32xf32>, vector<8x32xf32>, vector<8x32xf32>, vector<8x32xf32>, vector<8x32xf32>, vector<8x32xf32> -> vector<8x288xf32>
    %606 = tpu.concatenate %604, %605 in 1 : vector<8x512xf32>, vector<8x288xf32> -> vector<8x800xf32>
    %607 = arith.truncf %606 : vector<8x800xf32> to vector<8x800xbf16>
    %c0_29 = arith.constant 0 : index
    %c0_30 = arith.constant 0 : index
    %608 = vector.load %arg8[%c0_29, %c0_30] : memref<800x128xbf16, #tpu.memory_space<vmem>>, vector<800x128xbf16>
    %cst_31 = arith.constant dense<0.000000e+00> : vector<8x128xf32>
    %609 = tpu.matmul %607, %608, %cst_31 {dimension_numbers = #tpu.dot_dimension_numbers<[1], [0], [0], [1], [0, 0, 1, 1], [], []>} : vector<8x800xbf16>, vector<800x128xbf16>, vector<8x128xf32> -> vector<8x128xf32>
    %c0_32 = arith.constant 0 : index
    %c0_33 = arith.constant 0 : index
    %610 = vector.load %arg9[%c0_32, %c0_33] : memref<1x128xf32, #tpu.memory_space<vmem>>, vector<1x128xf32>
    %c0_34 = arith.constant 0 : index
    %c0_35 = arith.constant 0 : index
    %611 = vector.load %arg10[%c0_34, %c0_35] : memref<1x128xf32, #tpu.memory_space<vmem>>, vector<1x128xf32>
    %cst_36 = arith.constant dense<0.000000e+00> : vector<128xf32>
    %612 = vector.multi_reduction <add>, %609, %cst_36 [0] : vector<8x128xf32> to vector<128xf32>
    %613 = vector.shape_cast %612 : vector<128xf32> to vector<1x128xf32>
    %cst_37 = arith.constant 1.250000e-01 : f32
    %614 = vector.broadcast %cst_37 : f32 to vector<1x128xf32>
    %615 = arith.mulf %613, %614 : vector<1x128xf32>
    %616 = arith.mulf %609, %609 : vector<8x128xf32>
    %cst_38 = arith.constant dense<0.000000e+00> : vector<128xf32>
    %617 = vector.multi_reduction <add>, %616, %cst_38 [0] : vector<8x128xf32> to vector<128xf32>
    %618 = vector.shape_cast %617 : vector<128xf32> to vector<1x128xf32>
    %cst_39 = arith.constant 1.250000e-01 : f32
    %619 = vector.broadcast %cst_39 : f32 to vector<1x128xf32>
    %620 = arith.mulf %618, %619 : vector<1x128xf32>
    %621 = arith.mulf %615, %615 : vector<1x128xf32>
    %622 = arith.subf %620, %621 : vector<1x128xf32>
    %cst_40 = arith.constant 0.000000e+00 : f32
    %623 = vector.broadcast %cst_40 : f32 to vector<1x128xf32>
    %624 = arith.maximumf %622, %623 : vector<1x128xf32>
    %625 = vector.broadcast %615 : vector<1x128xf32> to vector<8x128xf32>
    %626 = arith.subf %609, %625 : vector<8x128xf32>
    %cst_41 = arith.constant 9.99999974E-6 : f32
    %627 = vector.broadcast %cst_41 : f32 to vector<1x128xf32>
    %628 = arith.addf %624, %627 : vector<1x128xf32>
    %629 = math.rsqrt %628 : vector<1x128xf32>
    %630 = vector.broadcast %629 : vector<1x128xf32> to vector<8x128xf32>
    %631 = arith.mulf %626, %630 : vector<8x128xf32>
    %632 = vector.broadcast %610 : vector<1x128xf32> to vector<8x128xf32>
    %633 = arith.mulf %631, %632 : vector<8x128xf32>
    %634 = vector.broadcast %611 : vector<1x128xf32> to vector<8x128xf32>
    %635 = arith.addf %633, %634 : vector<8x128xf32>
    %636 = vector.extract_strided_slice %635 {offsets = [0, 0], sizes = [8, 64], strides = [1, 1]} : vector<8x128xf32> to vector<8x64xf32>
    %637 = vector.extract_strided_slice %636 {offsets = [0, 0], sizes = [2, 64], strides = [1, 1]} : vector<8x64xf32> to vector<2x64xf32>
    %638 = vector.extract_strided_slice %636 {offsets = [2, 0], sizes = [2, 64], strides = [1, 1]} : vector<8x64xf32> to vector<2x64xf32>
    %639 = vector.extract_strided_slice %636 {offsets = [4, 0], sizes = [2, 64], strides = [1, 1]} : vector<8x64xf32> to vector<2x64xf32>
    %640 = vector.extract_strided_slice %636 {offsets = [6, 0], sizes = [2, 64], strides = [1, 1]} : vector<8x64xf32> to vector<2x64xf32>
    %641 = tpu.concatenate %637, %638, %639, %640 in 1 : vector<2x64xf32>, vector<2x64xf32>, vector<2x64xf32>, vector<2x64xf32> -> vector<2x256xf32>
    %642 = arith.truncf %641 : vector<2x256xf32> to vector<2x256xbf16>
    %c0_42 = arith.constant 0 : index
    %c0_43 = arith.constant 0 : index
    %643 = vector.load %arg11[%c0_42, %c0_43] : memref<256x512xbf16, #tpu.memory_space<vmem>>, vector<256x512xbf16>
    %cst_44 = arith.constant dense<0.000000e+00> : vector<2x512xf32>
    %644 = tpu.matmul %642, %643, %cst_44 {dimension_numbers = #tpu.dot_dimension_numbers<[1], [0], [0], [1], [0, 0, 1, 1], [], []>} : vector<2x256xbf16>, vector<256x512xbf16>, vector<2x512xf32> -> vector<2x512xf32>
    %c0_45 = arith.constant 0 : index
    %c0_46 = arith.constant 0 : index
    %645 = vector.load %arg12[%c0_45, %c0_46] : memref<1x512xf32, #tpu.memory_space<vmem>>, vector<1x512xf32>
    %646 = vector.broadcast %645 : vector<1x512xf32> to vector<2x512xf32>
    %647 = arith.addf %644, %646 : vector<2x512xf32>
    %cst_47 = arith.constant 0.000000e+00 : f32
    %648 = vector.broadcast %cst_47 : f32 to vector<2x512xf32>
    %649 = arith.maximumf %647, %648 : vector<2x512xf32>
    %650 = arith.truncf %649 : vector<2x512xf32> to vector<2x512xbf16>
    %c0_48 = arith.constant 0 : index
    %c0_49 = arith.constant 0 : index
    %651 = vector.load %arg13[%c0_48, %c0_49] : memref<512x128xbf16, #tpu.memory_space<vmem>>, vector<512x128xbf16>
    %cst_50 = arith.constant dense<0.000000e+00> : vector<2x128xf32>
    %652 = tpu.matmul %650, %651, %cst_50 {dimension_numbers = #tpu.dot_dimension_numbers<[1], [0], [0], [1], [0, 0, 1, 1], [], []>} : vector<2x512xbf16>, vector<512x128xbf16>, vector<2x128xf32> -> vector<2x128xf32>
    %c0_51 = arith.constant 0 : index
    %c0_52 = arith.constant 0 : index
    %653 = vector.load %arg14[%c0_51, %c0_52] : memref<1x128xf32, #tpu.memory_space<vmem>>, vector<1x128xf32>
    %654 = vector.broadcast %653 : vector<1x128xf32> to vector<2x128xf32>
    %655 = arith.addf %652, %654 : vector<2x128xf32>
    %c0_53 = arith.constant 0 : index
    %c0_54 = arith.constant 0 : index
    %656 = vector.load %arg15[%c0_53, %c0_54] : memref<2x128xf32, #tpu.memory_space<vmem>>, vector<2x128xf32>
    tpu.vector_store %arg15[%c0_53, %c0_54], %655 {strides = array<i32>} : memref<2x128xf32, #tpu.memory_space<vmem>>, vector<2x128xf32>,
    return
  }
  func.func @transform_0(%arg0: i32) -> (i32, i32) {
    %c0_i32 = arith.constant 0 : i32
    %c0_i32_0 = arith.constant 0 : i32
    %c0_i32_1 = arith.constant 0 : i32
    return %c0_i32, %c0_i32_0 : i32, i32
  }
  func.func @transform_1(%arg0: i32) -> (i32, i32) {
    %c0_i32 = arith.constant 0 : i32
    %c0_i32_0 = arith.constant 0 : i32
    %c0_i32_1 = arith.constant 0 : i32
    return %c0_i32, %c0_i32_0 : i32, i32
  }
  func.func @transform_2(%arg0: i32) -> (i32, i32) {
    %c0_i32 = arith.constant 0 : i32
    %c0_i32_0 = arith.constant 0 : i32
    %c0_i32_1 = arith.constant 0 : i32
    return %c0_i32, %c0_i32_0 : i32, i32
  }
  func.func @transform_3(%arg0: i32) -> (i32, i32) {
    %c0_i32 = arith.constant 0 : i32
    %c0_i32_0 = arith.constant 0 : i32
    %c0_i32_1 = arith.constant 0 : i32
    return %c0_i32, %c0_i32_0 : i32, i32
  }
  func.func @transform_4(%arg0: i32) -> (i32, i32) {
    %c0_i32 = arith.constant 0 : i32
    %c0_i32_0 = arith.constant 0 : i32
    %c0_i32_1 = arith.constant 0 : i32
    return %c0_i32, %c0_i32_0 : i32, i32
  }
  func.func @transform_5(%arg0: i32) -> (i32, i32) {
    %c0_i32 = arith.constant 0 : i32
    %c0_i32_0 = arith.constant 0 : i32
    %c0_i32_1 = arith.constant 0 : i32
    return %c0_i32, %c0_i32_0 : i32, i32
  }
  func.func @transform_6(%arg0: i32) -> (i32, i32) {
    %c0_i32 = arith.constant 0 : i32
    %c0_i32_0 = arith.constant 0 : i32
    %c0_i32_1 = arith.constant 0 : i32
    return %c0_i32, %c0_i32_0 : i32, i32
  }
  func.func @transform_7(%arg0: i32) -> (i32, i32) {
    %c0_i32 = arith.constant 0 : i32
    %c0_i32_0 = arith.constant 0 : i32
    %c0_i32_1 = arith.constant 0 : i32
    return %c0_i32, %c0_i32_0 : i32, i32
  }
  func.func @transform_8(%arg0: i32) -> (i32, i32) {
    %c0_i32 = arith.constant 0 : i32
    %c0_i32_0 = arith.constant 0 : i32
    %c0_i32_1 = arith.constant 0 : i32
    return %c0_i32, %c0_i32_0 : i32, i32
  }
  func.func @transform_9(%arg0: i32) -> (i32, i32) {
    %c0_i32 = arith.constant 0 : i32
    %c0_i32_0 = arith.constant 0 : i32
    %c0_i32_1 = arith.constant 0 : i32
    return %c0_i32, %c0_i32_0 : i32, i32
  }
  func.func @transform_10(%arg0: i32) -> (i32, i32) {
    %c0_i32 = arith.constant 0 : i32
    %c0_i32_0 = arith.constant 0 : i32
    %c0_i32_1 = arith.constant 0 : i32
    return %c0_i32, %c0_i32_0 : i32, i32
  }
  func.func @transform_11(%arg0: i32) -> (i32, i32) {
    %c0_i32 = arith.constant 0 : i32
    %c0_i32_0 = arith.constant 0 : i32
    %c0_i32_1 = arith.constant 0 : i32
    return %c0_i32, %c0_i32_0 : i32, i32
  }
  func.func @transform_12(%arg0: i32) -> (i32, i32) {
    %c0_i32 = arith.constant 0 : i32
    %c0_i32_0 = arith.constant 0 : i32
    %c0_i32_1 = arith.constant 0 : i32
    return %c0_i32, %c0_i32_0 : i32, i32
  }
  func.func @transform_13(%arg0: i32) -> (i32, i32) {
    %c0_i32 = arith.constant 0 : i32
    %c0_i32_0 = arith.constant 0 : i32
    %c0_i32_1 = arith.constant 0 : i32
    return %c0_i32, %c0_i32_0 : i32, i32
  }
  func.func @transform_14(%arg0: i32) -> (i32, i32) {
    %c0_i32 = arith.constant 0 : i32
    %c0_i32_0 = arith.constant 0 : i32
    %c0_i32_1 = arith.constant 0 : i32
    return %c0_i32, %c0_i32_0 : i32, i32
  }
}

</mosaic_0001>

<llo_original>
// kernel: forward.1
$region0: #{forward.1}
  #allocation0 [shape = 'u32[]', space=smem, size = 0x4, offset = 0x4, fixed_abs, tag = 'smem constant byte address 0x4 - core index']
  #allocation1 [shape = 'u32[144,128]{1,0:T(1,128)}', space=vmem, size = 0x12000, scoped, tag = 'internal scratch']
  %s0 = inlined_call_operand.vmem [shape: bf16[648,128], index: 0, kind: input, shape index: {}]
  %s1 = inlined_call_operand.vmem [shape: bf16[128,128], index: 1, kind: input, shape index: {}]
  %s2 = inlined_call_operand.vmem [shape: f32[1,128], index: 2, kind: input, shape index: {}]
  %s3 = inlined_call_operand.vmem [shape: f32[1,128], index: 3, kind: input, shape index: {}]
  %s4 = inlined_call_operand.vmem [shape: bf16[400,128], index: 4, kind: input, shape index: {}]
  %s5 = inlined_call_operand.vmem [shape: f32[1,128], index: 5, kind: input, shape index: {}]
  %s6 = inlined_call_operand.vmem [shape: f32[1,128], index: 6, kind: input, shape index: {}]
  %s7 = inlined_call_operand.vmem [shape: bf16[800,128], index: 7, kind: input, shape index: {}]
  %s8 = inlined_call_operand.vmem [shape: f32[1,128], index: 8, kind: input, shape index: {}]
  %s9 = inlined_call_operand.vmem [shape: f32[1,128], index: 9, kind: input, shape index: {}]
  %s10 = inlined_call_operand.vmem [shape: bf16[256,512], index: 10, kind: input, shape index: {}]
  %s11 = inlined_call_operand.vmem [shape: f32[1,512], index: 11, kind: input, shape index: {}]
  %s12 = inlined_call_operand.vmem [shape: bf16[512,128], index: 12, kind: input, shape index: {}]
  %s13 = inlined_call_operand.vmem [shape: f32[1,128], index: 13, kind: input, shape index: {}]
  %s14 = inlined_call_operand.hbm [shape: f32[2,128], index: 14, kind: output, shape index: {}]
  %s15 = sld [smem:[#allocation0]]
  $region66: #{forward.1} parent=0
    _
  %s17 = ssub.s32 1, %s15
  %s18 = scalar_select 0, %s17, %s15
  $region1: #{forward.1} parent=0
    #allocation2 [shape = 'u8[1024]{0}', space=vmem, size = 0x400, scoped, tag = 'output window, operand 0, single buffered']
    #allocation3 [shape = 's32[1]{0}', space=sflag, size = 0x4, scoped, tag = 'scoped memory for forward.1']
    %19 = vsyncpa [#allocation3], 0
    // Predicated region
    $region2: #{forward.1} parent=1 // pred_check
      _
    $region3: #{forward.1} parent=1 // pred_check_branch
      %21 = sbr.rel (0) target = $region5
    $region4: #{forward.1} parent=1 // pred_region
      _
    $region5: #{forward.1} parent=1 // pred_fallthru
      _
    // Predicated region
    $region6: #{forward.1} parent=1 // pred_check
      _
    $region7: #{forward.1} parent=1 // pred_check_branch
      %23 = sbr.rel (0) target = $region9
    $region8: #{forward.1} parent=1 // pred_region
      _
    $region9: #{forward.1} parent=1 // pred_fallthru
      _
    // Predicated region
    $region10: #{forward.1} parent=1 // pred_check
      _
    $region11: #{forward.1} parent=1 // pred_check_branch
      %25 = sbr.rel (0) target = $region13
    $region12: #{forward.1} parent=1 // pred_region
      _
    $region13: #{forward.1} parent=1 // pred_fallthru
      _
    // Predicated region
    $region14: #{forward.1} parent=1 // pred_check
      _
    $region15: #{forward.1} parent=1 // pred_check_branch
      %27 = sbr.rel (0) target = $region17
    $region16: #{forward.1} parent=1 // pred_region
      _
    $region17: #{forward.1} parent=1 // pred_fallthru
      _
    // Predicated region
    $region18: #{forward.1} parent=1 // pred_check
      _
    $region19: #{forward.1} parent=1 // pred_check_branch
      %29 = sbr.rel (0) target = $region21
    $region20: #{forward.1} parent=1 // pred_region
      _
    $region21: #{forward.1} parent=1 // pred_fallthru
      _
    // Predicated region
    $region22: #{forward.1} parent=1 // pred_check
      _
    $region23: #{forward.1} parent=1 // pred_check_branch
      %31 = sbr.rel (0) target = $region25
    $region24: #{forward.1} parent=1 // pred_region
      _
    $region25: #{forward.1} parent=1 // pred_fallthru
      _
    // Predicated region
    $region26: #{forward.1} parent=1 // pred_check
      _
    $region27: #{forward.1} parent=1 // pred_check_branch
      %33 = sbr.rel (0) target = $region29
    $region28: #{forward.1} parent=1 // pred_region
      _
    $region29: #{forward.1} parent=1 // pred_fallthru
      _
    // Predicated region
    $region30: #{forward.1} parent=1 // pred_check
      _
    $region31: #{forward.1} parent=1 // pred_check_branch
      %35 = sbr.rel (0) target = $region33
    $region32: #{forward.1} parent=1 // pred_region
      _
    $region33: #{forward.1} parent=1 // pred_fallthru
      _
    // Predicated region
    $region34: #{forward.1} parent=1 // pred_check
      _
    $region35: #{forward.1} parent=1 // pred_check_branch
      %37 = sbr.rel (0) target = $region37
    $region36: #{forward.1} parent=1 // pred_region
      _
    $region37: #{forward.1} parent=1 // pred_fallthru
      _
    // Predicated region
    $region38: #{forward.1} parent=1 // pred_check
      _
    $region39: #{forward.1} parent=1 // pred_check_branch
      %39 = sbr.rel (0) target = $region41
    $region40: #{forward.1} parent=1 // pred_region
      _
    $region41: #{forward.1} parent=1 // pred_fallthru
      _
    // Predicated region
    $region42: #{forward.1} parent=1 // pred_check
      _
    $region43: #{forward.1} parent=1 // pred_check_branch
      %41 = sbr.rel (0) target = $region45
    $region44: #{forward.1} parent=1 // pred_region
      _
    $region45: #{forward.1} parent=1 // pred_fallthru
      _
    // Predicated region
    $region46: #{forward.1} parent=1 // pred_check
      _
    $region47: #{forward.1} parent=1 // pred_check_branch
      %43 = sbr.rel (0) target = $region49
    $region48: #{forward.1} parent=1 // pred_region
      _
    $region49: #{forward.1} parent=1 // pred_fallthru
      _
    // Predicated region
    $region50: #{forward.1} parent=1 // pred_check
      _
    $region51: #{forward.1} parent=1 // pred_check_branch
      %45 = sbr.rel (0) target = $region53
    $region52: #{forward.1} parent=1 // pred_region
      _
    $region53: #{forward.1} parent=1 // pred_fallthru
      _
    // Predicated region
    $region54: #{forward.1} parent=1 // pred_check
      _
    $region55: #{forward.1} parent=1 // pred_check_branch
      %47 = sbr.rel (0) target = $region57
    $region56: #{forward.1} parent=1 // pred_region
      _
    $region57: #{forward.1} parent=1 // pred_fallthru
      _
    %v49 = vld [vmem:[%s0] sm:$0xf]
    %v50 = vld [vmem:[%s0 + $0x4] sm:$0xf]
    %v51 = vld [vmem:[%s0 + $0x8] sm:$0xf]
    %v52 = vld [vmem:[%s0 + $0xc] sm:$0xf]
    %v53 = vld [vmem:[%s0 + $0x10] sm:$0xf]
    %v54 = vld [vmem:[%s0 + $0x14] sm:$0xf]
    %v55 = vld [vmem:[%s0 + $0x18] sm:$0xf]
    %v56 = vld [vmem:[%s0 + $0x1c] sm:$0xf]
    %v57 = vld [vmem:[%s0 + $0x20] sm:$0xf]
    %v58 = vld [vmem:[%s0 + $0x24] sm:$0xf]
    %v59 = vld [vmem:[%s0 + $0x28] sm:$0xf]
    %v60 = vld [vmem:[%s0 + $0x2c] sm:$0xf]
    %v61 = vld [vmem:[%s0 + $0x30] sm:$0xf]
    %v62 = vld [vmem:[%s0 + $0x34] sm:$0xf]
    %v63 = vld [vmem:[%s0 + $0x38] sm:$0xf]
    %v64 = vld [vmem:[%s0 + $0x3c] sm:$0xf]
    %v65 = vld [vmem:[%s0 + $0x40] sm:$0xf]
    %v66 = vld [vmem:[%s0 + $0x44] sm:$0xf]
    %v67 = vld [vmem:[%s0 + $0x48] sm:$0xf]
    %v68 = vld [vmem:[%s0 + $0x4c] sm:$0xf]
    %v69 = vld [vmem:[%s0 + $0x50] sm:$0xf]
    %v70 = vld [vmem:[%s0 + $0x54] sm:$0xf]
    %v71 = vld [vmem:[%s0 + $0x58] sm:$0xf]
    %v72 = vld [vmem:[%s0 + $0x5c] sm:$0xf]
    %v73 = vld [vmem:[%s0 + $0x60] sm:$0xf]
    %v74 = vld [vmem:[%s0 + $0x64] sm:$0xf]
    %v75 = vld [vmem:[%s0 + $0x68] sm:$0xf]
    %v76 = vld [vmem:[%s0 + $0x6c] sm:$0xf]
    %v77 = vld [vmem:[%s0 + $0x70] sm:$0xf]
    %v78 = vld [vmem:[%s0 + $0x74] sm:$0xf]
    %v79 = vld [vmem:[%s0 + $0x78] sm:$0xf]
    %v80 = vld [vmem:[%s0 + $0x7c] sm:$0xf]
    %v81 = vld [vmem:[%s0 + $0x80] sm:$0xf]
    %v82 = vld [vmem:[%s0 + $0x84] sm:$0xf]
    %v83 = vld [vmem:[%s0 + $0x88] sm:$0xf]
    %v84 = vld [vmem:[%s0 + $0x8c] sm:$0xf]
    %v85 = vld [vmem:[%s0 + $0x90] sm:$0xf]
    %v86 = vld [vmem:[%s0 + $0x94] sm:$0xf]
    %v87 = vld [vmem:[%s0 + $0x98] sm:$0xf]
    %v88 = vld [vmem:[%s0 + $0x9c] sm:$0xf]
    %v89 = vld [vmem:[%s0 + $0xa0] sm:$0xf]
    %v90 = vld [vmem:[%s0 + $0xa4] sm:$0xf]
    %v91 = vld [vmem:[%s0 + $0xa8] sm:$0xf]
    %v92 = vld [vmem:[%s0 + $0xac] sm:$0xf]
    %v93 = vld [vmem:[%s0 + $0xb0] sm:$0xf]
    %v94 = vld [vmem:[%s0 + $0xb4] sm:$0xf]
    %v95 = vld [vmem:[%s0 + $0xb8] sm:$0xf]
    %v96 = vld [vmem:[%s0 + $0xbc] sm:$0xf]
    %v97 = vld [vmem:[%s0 + $0xc0] sm:$0xf]
    %v98 = vld [vmem:[%s0 + $0xc4] sm:$0xf]
    %v99 = vld [vmem:[%s0 + $0xc8] sm:$0xf]
    %v100 = vld [vmem:[%s0 + $0xcc] sm:$0xf]
    %v101 = vld [vmem:[%s0 + $0xd0] sm:$0xf]
    %v102 = vld [vmem:[%s0 + $0xd4] sm:$0xf]
    %v103 = vld [vmem:[%s0 + $0xd8] sm:$0xf]
    %v104 = vld [vmem:[%s0 + $0xdc] sm:$0xf]
    %v105 = vld [vmem:[%s0 + $0xe0] sm:$0xf]
    %v106 = vld [vmem:[%s0 + $0xe4] sm:$0xf]
    %v107 = vld [vmem:[%s0 + $0xe8] sm:$0xf]
    %v108 = vld [vmem:[%s0 + $0xec] sm:$0xf]
    %v109 = vld [vmem:[%s0 + $0xf0] sm:$0xf]
    %v110 = vld [vmem:[%s0 + $0xf4] sm:$0xf]
    %v111 = vld [vmem:[%s0 + $0xf8] sm:$0xf]
    %v112 = vld [vmem:[%s0 + $0xfc] sm:$0xf]
    %v113 = vld [vmem:[%s0 + $0x100] sm:$0xf]
    %v114 = vld [vmem:[%s0 + $0x104] sm:$0xf]
    %v115 = vld [vmem:[%s0 + $0x108] sm:$0xf]
    %v116 = vld [vmem:[%s0 + $0x10c] sm:$0xf]
    %v117 = vld [vmem:[%s0 + $0x110] sm:$0xf]
    %v118 = vld [vmem:[%s0 + $0x114] sm:$0xf]
    %v119 = vld [vmem:[%s0 + $0x118] sm:$0xf]
    %v120 = vld [vmem:[%s0 + $0x11c] sm:$0xf]
    %v121 = vld [vmem:[%s0 + $0x120] sm:$0xf]
    %v122 = vld [vmem:[%s0 + $0x124] sm:$0xf]
    %v123 = vld [vmem:[%s0 + $0x128] sm:$0xf]
    %v124 = vld [vmem:[%s0 + $0x12c] sm:$0xf]
    %v125 = vld [vmem:[%s0 + $0x130] sm:$0xf]
    %v126 = vld [vmem:[%s0 + $0x134] sm:$0xf]
    %v127 = vld [vmem:[%s0 + $0x138] sm:$0xf]
    %v128 = vld [vmem:[%s0 + $0x13c] sm:$0xf]
    %v129 = vld [vmem:[%s0 + $0x140] sm:$0xf]
    %v130 = vld [vmem:[%s1] sm:$0xf]
    %v131 = vld [vmem:[%s1 + $0x4] sm:$0xf]
    %v132 = vld [vmem:[%s1 + $0x8] sm:$0xf]
    %v133 = vld [vmem:[%s1 + $0xc] sm:$0xf]
    %v134 = vld [vmem:[%s1 + $0x10] sm:$0xf]
    %v135 = vld [vmem:[%s1 + $0x14] sm:$0xf]
    %v136 = vld [vmem:[%s1 + $0x18] sm:$0xf]
    %v137 = vld [vmem:[%s1 + $0x1c] sm:$0xf]
    %v138 = vld [vmem:[%s1 + $0x20] sm:$0xf]
    %v139 = vld [vmem:[%s1 + $0x24] sm:$0xf]
    %v140 = vld [vmem:[%s1 + $0x28] sm:$0xf]
    %v141 = vld [vmem:[%s1 + $0x2c] sm:$0xf]
    %v142 = vld [vmem:[%s1 + $0x30] sm:$0xf]
    %v143 = vld [vmem:[%s1 + $0x34] sm:$0xf]
    %v144 = vld [vmem:[%s1 + $0x38] sm:$0xf]
    %v145 = vld [vmem:[%s1 + $0x3c] sm:$0xf]
    %v227 = vunpack.c.l.b16 %v49
    %v228 = vunpack.c.l.b16 %v50
    %v229 = vunpack.c.l.b16 %v51
    %v230 = vunpack.c.l.b16 %v52
    %v231 = vunpack.c.l.b16 %v53
    %v232 = vunpack.c.l.b16 %v54
    %v233 = vunpack.c.l.b16 %v55
    %v234 = vunpack.c.l.b16 %v56
    %v235 = vunpack.c.l.b16 %v57
    %v236 = vunpack.c.l.b16 %v58
    %v237 = vunpack.c.l.b16 %v59
    %v238 = vunpack.c.l.b16 %v60
    %v239 = vunpack.c.l.b16 %v61
    %v240 = vunpack.c.l.b16 %v62
    %v241 = vunpack.c.l.b16 %v63
    %v242 = vunpack.c.l.b16 %v64
    %v243 = vunpack.c.l.b16 %v65
    %v244 = vunpack.c.l.b16 %v66
    %v245 = vunpack.c.l.b16 %v67
    %v246 = vunpack.c.l.b16 %v68
    %v247 = vunpack.c.l.b16 %v69
    %v248 = vunpack.c.l.b16 %v70
    %v249 = vunpack.c.l.b16 %v71
    %v250 = vunpack.c.l.b16 %v72
    %v251 = vunpack.c.l.b16 %v73
    %v252 = vunpack.c.l.b16 %v74
    %v253 = vunpack.c.l.b16 %v75
    %v254 = vunpack.c.l.b16 %v76
    %v255 = vunpack.c.l.b16 %v77
    %v256 = vunpack.c.l.b16 %v78
    %v257 = vunpack.c.l.b16 %v79
    %v258 = vunpack.c.l.b16 %v80
    %v259 = vunpack.c.l.b16 %v81
    %v260 = vunpack.c.l.b16 %v82
    %v261 = vunpack.c.l.b16 %v83
    %v262 = vunpack.c.l.b16 %v84
    %v263 = vunpack.c.l.b16 %v85
    %v264 = vunpack.c.l.b16 %v86
    %v265 = vunpack.c.l.b16 %v87
    %v266 = vunpack.c.l.b16 %v88
    %v267 = vunpack.c.l.b16 %v89
    %v268 = vunpack.c.l.b16 %v90
    %v269 = vunpack.c.l.b16 %v91
    %v270 = vunpack.c.l.b16 %v92
    %v271 = vunpack.c.l.b16 %v93
    %v272 = vunpack.c.l.b16 %v94
    %v273 = vunpack.c.l.b16 %v95
    %v274 = vunpack.c.l.b16 %v96
    %v275 = vunpack.c.l.b16 %v97
    %v276 = vunpack.c.l.b16 %v98
    %v277 = vunpack.c.l.b16 %v99
    %v278 = vunpack.c.l.b16 %v100
    %v279 = vunpack.c.l.b16 %v101
    %v280 = vunpack.c.l.b16 %v102
    %v281 = vunpack.c.l.b16 %v103
    %v282 = vunpack.c.l.b16 %v104
    %v283 = vunpack.c.l.b16 %v105
    %v284 = vunpack.c.l.b16 %v106
    %v285 = vunpack.c.l.b16 %v107
    %v286 = vunpack.c.l.b16 %v108
    %v287 = vunpack.c.l.b16 %v109
    %v288 = vunpack.c.l.b16 %v110
    %v289 = vunpack.c.l.b16 %v111
    %v290 = vunpack.c.l.b16 %v112
    %v291 = vunpack.c.l.b16 %v113
    %v292 = vunpack.c.l.b16 %v114
    %v293 = vunpack.c.l.b16 %v115
    %v294 = vunpack.c.l.b16 %v116
    %v295 = vunpack.c.l.b16 %v117
    %v296 = vunpack.c.l.b16 %v118
    %v297 = vunpack.c.l.b16 %v119
    %v298 = vunpack.c.l.b16 %v120
    %v299 = vunpack.c.l.b16 %v121
    %v300 = vunpack.c.l.b16 %v122
    %v301 = vunpack.c.l.b16 %v123
    %v302 = vunpack.c.l.b16 %v124
    %v303 = vunpack.c.l.b16 %v125
    %v304 = vunpack.c.l.b16 %v126
    %v305 = vunpack.c.l.b16 %v127
    %v306 = vunpack.c.l.b16 %v128
    %v307 = vunpack.c.l.b16 %v129
    %v308 = vpack.c.b16 %v228, %v227
    %v309 = vpack.c.b16 %v230, %v229
    %v310 = vpack.c.b16 %v232, %v231
    %v311 = vpack.c.b16 %v234, %v233
    %v312 = vpack.c.b16 %v236, %v235
    %v313 = vpack.c.b16 %v238, %v237
    %v314 = vpack.c.b16 %v240, %v239
    %v315 = vpack.c.b16 %v242, %v241
    %v316 = vpack.c.b16 %v244, %v243
    %v317 = vpack.c.b16 %v246, %v245
    %v318 = vpack.c.b16 %v248, %v247
    %v319 = vpack.c.b16 %v250, %v249
    %v320 = vpack.c.b16 %v252, %v251
    %v321 = vpack.c.b16 %v254, %v253
    %v322 = vpack.c.b16 %v256, %v255
    %v323 = vpack.c.b16 %v258, %v257
    %v324 = vpack.c.b16 %v260, %v259
    %v325 = vpack.c.b16 %v262, %v261
    %v326 = vpack.c.b16 %v264, %v263
    %v327 = vpack.c.b16 %v266, %v265
    %v328 = vpack.c.b16 %v268, %v267
    %v329 = vpack.c.b16 %v270, %v269
    %v330 = vpack.c.b16 %v272, %v271
    %v331 = vpack.c.b16 %v274, %v273
    %v332 = vpack.c.b16 %v276, %v275
    %v333 = vpack.c.b16 %v278, %v277
    %v334 = vpack.c.b16 %v280, %v279
    %v335 = vpack.c.b16 %v282, %v281
    %v336 = vpack.c.b16 %v284, %v283
    %v337 = vpack.c.b16 %v286, %v285
    %v338 = vpack.c.b16 %v288, %v287
    %v339 = vpack.c.b16 %v290, %v289
    %v340 = vpack.c.b16 %v292, %v291
    %v341 = vpack.c.b16 %v294, %v293
    %v342 = vpack.c.b16 %v296, %v295
    %v343 = vpack.c.b16 %v298, %v297
    %v344 = vpack.c.b16 %v300, %v299
    %v345 = vpack.c.b16 %v302, %v301
    %v346 = vpack.c.b16 %v304, %v303
    %v347 = vpack.c.b16 %v306, %v305
    %v348 = vpack.c.b16 %v307, %v307
    %v406 = vunpack.c.l.b16 %v130
    %v407 = vunpack.c.l.b16 %v131
    %v408 = vunpack.c.l.b16 %v132
    %v409 = vunpack.c.l.b16 %v133
    %v410 = vunpack.c.l.b16 %v134
    %v411 = vunpack.c.l.b16 %v135
    %v412 = vunpack.c.l.b16 %v136
    %v413 = vunpack.c.l.b16 %v137
    %v414 = vunpack.c.l.b16 %v138
    %v415 = vunpack.c.l.b16 %v139
    %v416 = vunpack.c.l.b16 %v140
    %v417 = vunpack.c.l.b16 %v141
    %v418 = vunpack.c.l.b16 %v142
    %v419 = vunpack.c.l.b16 %v143
    %v420 = vunpack.c.l.b16 %v144
    %v421 = vunpack.c.l.b16 %v145
    %v422 = vpack.c.b16 %v407, %v406
    %v423 = vpack.c.b16 %v409, %v408
    %v424 = vpack.c.b16 %v411, %v410
    %v425 = vpack.c.b16 %v413, %v412
    %v426 = vpack.c.b16 %v415, %v414
    %v427 = vpack.c.b16 %v417, %v416
    %v428 = vpack.c.b16 %v419, %v418
    %v429 = vpack.c.b16 %v421, %v420
    %438 = vmatprep.subr.bf16.mxu0 0
    %439 = vmatpush1.bf16.msra.mxu0 %v429
    %440 = vmatprep.subr.bf16.mxu0 0
    %441 = vmatpush1.bf16.msra.mxu0 %v428
    %442 = vmatprep.subr.bf16.mxu0 0
    %443 = vmatpush1.bf16.msra.mxu0 %v427
    %444 = vmatprep.subr.bf16.mxu0 0
    %445 = vmatpush1.bf16.msra.mxu0 %v426
    %446 = vmatprep.subr.bf16.mxu0 0
    %447 = vmatpush1.bf16.msra.mxu0 %v425
    %448 = vmatprep.subr.bf16.mxu0 0
    %449 = vmatpush1.bf16.msra.mxu0 %v424
    %450 = vmatprep.subr.bf16.mxu0 0
    %451 = vmatpush1.bf16.msra.mxu0 %v423
    %452 = vmatprep.subr.bf16.mxu0 0
    %453 = vmatpush1.bf16.msra.mxu0 %v422
    %454 = vmatprep.subr.bf16.mxu0 0
    %455 = vmatpush2.bf16.msra.mxu0 0
    %456 = vmatprep.subr.bf16.mxu0 0
    %457 = vmatpush2.bf16.msra.mxu0 0
    %458 = vmatprep.subr.bf16.mxu0 0
    %459 = vmatpush2.bf16.msra.mxu0 0
    %460 = vmatprep.subr.bf16.mxu0 0
    %461 = vmatpush2.bf16.msra.mxu0 0
    %462 = vmatprep.subr.bf16.mxu0 0
    %463 = vmatpush2.bf16.msra.mxu0 0
    %464 = vmatprep.subr.bf16.mxu0 0
    %465 = vmatpush2.bf16.msra.mxu0 0
    %466 = vmatprep.subr.bf16.mxu0 0
    %467 = vmatpush2.bf16.msra.mxu0 0
    %468 = vmatprep.subr.bf16.mxu0 0
    %469 = vmatpush2.bf16.msra.mxu0 0
    %470 = vmatprep.mubr.bf16.mxu0 0
    %471 = vmatmul.mubr.bf16.gmra.mxu0 %v308
    %v472 = vpop.f32.mrf.mxu0
    %v473 = vadd.f32 0.0, %v472
    %v474 = vpop.f32.mrf.mxu0
    %v475 = vpop.f32.mrf.mxu0
    %v476 = vadd.f32 0.0, %v475
    %v477 = vpop.f32.mrf.mxu0
    %478 = vmatprep.mubr.bf16.mxu0 0
    %479 = vmatmul.mubr.bf16.gmra.mxu0 %v309
    %v480 = vpop.f32.mrf.mxu0
    %v481 = vadd.f32 0.0, %v480
    %v482 = vpop.f32.mrf.mxu0
    %v483 = vpop.f32.mrf.mxu0
    %v484 = vadd.f32 0.0, %v483
    %v485 = vpop.f32.mrf.mxu0
    %486 = vmatprep.mubr.bf16.mxu0 0
    %487 = vmatmul.mubr.bf16.gmra.mxu0 %v310
    %v488 = vpop.f32.mrf.mxu0
    %v489 = vadd.f32 0.0, %v488
    %v490 = vpop.f32.mrf.mxu0
    %v491 = vpop.f32.mrf.mxu0
    %v492 = vadd.f32 0.0, %v491
    %v493 = vpop.f32.mrf.mxu0
    %494 = vmatprep.mubr.bf16.mxu0 0
    %495 = vmatmul.mubr.bf16.gmra.mxu0 %v311
    %v496 = vpop.f32.mrf.mxu0
    %v497 = vadd.f32 0.0, %v496
    %v498 = vpop.f32.mrf.mxu0
    %v499 = vpop.f32.mrf.mxu0
    %v500 = vadd.f32 0.0, %v499
    %v501 = vpop.f32.mrf.mxu0
    %502 = vmatprep.mubr.bf16.mxu0 0
    %503 = vmatmul.mubr.bf16.gmra.mxu0 %v312
    %v504 = vpop.f32.mrf.mxu0
    %v505 = vadd.f32 0.0, %v504
    %v506 = vpop.f32.mrf.mxu0
    %v507 = vpop.f32.mrf.mxu0
    %v508 = vadd.f32 0.0, %v507
    %v509 = vpop.f32.mrf.mxu0
    %510 = vmatprep.mubr.bf16.mxu0 0
    %511 = vmatmul.mubr.bf16.gmra.mxu0 %v313
    %v512 = vpop.f32.mrf.mxu0
    %v513 = vadd.f32 0.0, %v512
    %v514 = vpop.f32.mrf.mxu0
    %v515 = vpop.f32.mrf.mxu0
    %v516 = vadd.f32 0.0, %v515
    %v517 = vpop.f32.mrf.mxu0
    %518 = vmatprep.mubr.bf16.mxu0 0
    %519 = vmatmul.mubr.bf16.gmra.mxu0 %v314
    %v520 = vpop.f32.mrf.mxu0
    %v521 = vadd.f32 0.0, %v520
    %v522 = vpop.f32.mrf.mxu0
    %v523 = vpop.f32.mrf.mxu0
    %v524 = vadd.f32 0.0, %v523
    %v525 = vpop.f32.mrf.mxu0
    %526 = vmatprep.mubr.bf16.mxu0 0
    %527 = vmatmul.mubr.bf16.gmra.mxu0 %v315
    %v528 = vpop.f32.mrf.mxu0
    %v529 = vadd.f32 0.0, %v528
    %v530 = vpop.f32.mrf.mxu0
    %v531 = vpop.f32.mrf.mxu0
    %v532 = vadd.f32 0.0, %v531
    %v533 = vpop.f32.mrf.mxu0
    %534 = vmatprep.mubr.bf16.mxu0 0
    %535 = vmatmul.mubr.bf16.gmra.mxu0 %v316
    %v536 = vpop.f32.mrf.mxu0
    %v537 = vadd.f32 0.0, %v536
    %v538 = vpop.f32.mrf.mxu0
    %v539 = vpop.f32.mrf.mxu0
    %v540 = vadd.f32 0.0, %v539
    %v541 = vpop.f32.mrf.mxu0
    %542 = vmatprep.mubr.bf16.mxu0 0
    %543 = vmatmul.mubr.bf16.gmra.mxu0 %v317
    %v544 = vpop.f32.mrf.mxu0
    %v545 = vadd.f32 0.0, %v544
    %v546 = vpop.f32.mrf.mxu0
    %v547 = vpop.f32.mrf.mxu0
    %v548 = vadd.f32 0.0, %v547
    %v549 = vpop.f32.mrf.mxu0
    %550 = vmatprep.mubr.bf16.mxu0 0
    %551 = vmatmul.mubr.bf16.gmra.mxu0 %v318
    %v552 = vpop.f32.mrf.mxu0
    %v553 = vadd.f32 0.0, %v552
    %v554 = vpop.f32.mrf.mxu0
    %v555 = vpop.f32.mrf.mxu0
    %v556 = vadd.f32 0.0, %v555
    %v557 = vpop.f32.mrf.mxu0
    %558 = vmatprep.mubr.bf16.mxu0 0
    %559 = vmatmul.mubr.bf16.gmra.mxu0 %v319
    %v560 = vpop.f32.mrf.mxu0
    %v561 = vadd.f32 0.0, %v560
    %v562 = vpop.f32.mrf.mxu0
    %v563 = vpop.f32.mrf.mxu0
    %v564 = vadd.f32 0.0, %v563
    %v565 = vpop.f32.mrf.mxu0
    %566 = vmatprep.mubr.bf16.mxu0 0
    %567 = vmatmul.mubr.bf16.gmra.mxu0 %v320
    %v568 = vpop.f32.mrf.mxu0
    %v569 = vadd.f32 0.0, %v568
    %v570 = vpop.f32.mrf.mxu0
    %v571 = vpop.f32.mrf.mxu0
    %v572 = vadd.f32 0.0, %v571
    %v573 = vpop.f32.mrf.mxu0
    %574 = vmatprep.mubr.bf16.mxu0 0
    %575 = vmatmul.mubr.bf16.gmra.mxu0 %v321
    %v576 = vpop.f32.mrf.mxu0
    %v577 = vadd.f32 0.0, %v576
    %v578 = vpop.f32.mrf.mxu0
    %v579 = vpop.f32.mrf.mxu0
    %v580 = vadd.f32 0.0, %v579
    %v581 = vpop.f32.mrf.mxu0
    %582 = vmatprep.mubr.bf16.mxu0 0
    %583 = vmatmul.mubr.bf16.gmra.mxu0 %v322
    %v584 = vpop.f32.mrf.mxu0
    %v585 = vadd.f32 0.0, %v584
    %v586 = vpop.f32.mrf.mxu0
    %v587 = vpop.f32.mrf.mxu0
    %v588 = vadd.f32 0.0, %v587
    %v589 = vpop.f32.mrf.mxu0
    %590 = vmatprep.mubr.bf16.mxu0 0
    %591 = vmatmul.mubr.bf16.gmra.mxu0 %v323
    %v592 = vpop.f32.mrf.mxu0
    %v593 = vadd.f32 0.0, %v592
    %v594 = vpop.f32.mrf.mxu0
    %v595 = vpop.f32.mrf.mxu0
    %v596 = vadd.f32 0.0, %v595
    %v597 = vpop.f32.mrf.mxu0
    %598 = vmatprep.mubr.bf16.mxu0 0
    %599 = vmatmul.mubr.bf16.gmra.mxu0 %v324
    %v600 = vpop.f32.mrf.mxu0
    %v601 = vadd.f32 0.0, %v600
    %v602 = vpop.f32.mrf.mxu0
    %v603 = vpop.f32.mrf.mxu0
    %v604 = vadd.f32 0.0, %v603
    %v605 = vpop.f32.mrf.mxu0
    %606 = vmatprep.mubr.bf16.mxu0 0
    %607 = vmatmul.mubr.bf16.gmra.mxu0 %v325
    %v608 = vpop.f32.mrf.mxu0
    %v609 = vadd.f32 0.0, %v608
    %v610 = vpop.f32.mrf.mxu0
    %v611 = vpop.f32.mrf.mxu0
    %v612 = vadd.f32 0.0, %v611
    %v613 = vpop.f32.mrf.mxu0
    %614 = vmatprep.mubr.bf16.mxu0 0
    %615 = vmatmul.mubr.bf16.gmra.mxu0 %v326
    %v616 = vpop.f32.mrf.mxu0
    %v617 = vadd.f32 0.0, %v616
    %v618 = vpop.f32.mrf.mxu0
    %v619 = vpop.f32.mrf.mxu0
    %v620 = vadd.f32 0.0, %v619
    %v621 = vpop.f32.mrf.mxu0
    %622 = vmatprep.mubr.bf16.mxu0 0
    %623 = vmatmul.mubr.bf16.gmra.mxu0 %v327
    %v624 = vpop.f32.mrf.mxu0
    %v625 = vadd.f32 0.0, %v624
    %v626 = vpop.f32.mrf.mxu0
    %v627 = vpop.f32.mrf.mxu0
    %v628 = vadd.f32 0.0, %v627
    %v629 = vpop.f32.mrf.mxu0
    %630 = vmatprep.mubr.bf16.mxu0 0
    %631 = vmatmul.mubr.bf16.gmra.mxu0 %v328
    %v632 = vpop.f32.mrf.mxu0
    %v633 = vadd.f32 0.0, %v632
    %v634 = vpop.f32.mrf.mxu0
    %v635 = vpop.f32.mrf.mxu0
    %v636 = vadd.f32 0.0, %v635
    %v637 = vpop.f32.mrf.mxu0
    %638 = vmatprep.mubr.bf16.mxu0 0
    %639 = vmatmul.mubr.bf16.gmra.mxu0 %v329
    %v640 = vpop.f32.mrf.mxu0
    %v641 = vadd.f32 0.0, %v640
    %v642 = vpop.f32.mrf.mxu0
    %v643 = vpop.f32.mrf.mxu0
    %v644 = vadd.f32 0.0, %v643
    %v645 = vpop.f32.mrf.mxu0
    %646 = vmatprep.mubr.bf16.mxu0 0
    %647 = vmatmul.mubr.bf16.gmra.mxu0 %v330
    %v648 = vpop.f32.mrf.mxu0
    %v649 = vadd.f32 0.0, %v648
    %v650 = vpop.f32.mrf.mxu0
    %v651 = vpop.f32.mrf.mxu0
    %v652 = vadd.f32 0.0, %v651
    %v653 = vpop.f32.mrf.mxu0
    %654 = vmatprep.mubr.bf16.mxu0 0
    %655 = vmatmul.mubr.bf16.gmra.mxu0 %v331
    %v656 = vpop.f32.mrf.mxu0
    %v657 = vadd.f32 0.0, %v656
    %v658 = vpop.f32.mrf.mxu0
    %v659 = vpop.f32.mrf.mxu0
    %v660 = vadd.f32 0.0, %v659
    %v661 = vpop.f32.mrf.mxu0
    %662 = vmatprep.mubr.bf16.mxu0 0
    %663 = vmatmul.mubr.bf16.gmra.mxu0 %v332
    %v664 = vpop.f32.mrf.mxu0
    %v665 = vadd.f32 0.0, %v664
    %v666 = vpop.f32.mrf.mxu0
    %v667 = vpop.f32.mrf.mxu0
    %v668 = vadd.f32 0.0, %v667
    %v669 = vpop.f32.mrf.mxu0
    %670 = vmatprep.mubr.bf16.mxu0 0
    %671 = vmatmul.mubr.bf16.gmra.mxu0 %v333
    %v672 = vpop.f32.mrf.mxu0
    %v673 = vadd.f32 0.0, %v672
    %v674 = vpop.f32.mrf.mxu0
    %v675 = vpop.f32.mrf.mxu0
    %v676 = vadd.f32 0.0, %v675
    %v677 = vpop.f32.mrf.mxu0
    %678 = vmatprep.mubr.bf16.mxu0 0
    %679 = vmatmul.mubr.bf16.gmra.mxu0 %v334
    %v680 = vpop.f32.mrf.mxu0
    %v681 = vadd.f32 0.0, %v680
    %v682 = vpop.f32.mrf.mxu0
    %v683 = vpop.f32.mrf.mxu0
    %v684 = vadd.f32 0.0, %v683
    %v685 = vpop.f32.mrf.mxu0
    %686 = vmatprep.mubr.bf16.mxu0 0
    %687 = vmatmul.mubr.bf16.gmra.mxu0 %v335
    %v688 = vpop.f32.mrf.mxu0
    %v689 = vadd.f32 0.0, %v688
    %v690 = vpop.f32.mrf.mxu0
    %v691 = vpop.f32.mrf.mxu0
    %v692 = vadd.f32 0.0, %v691
    %v693 = vpop.f32.mrf.mxu0
    %694 = vmatprep.mubr.bf16.mxu0 0
    %695 = vmatmul.mubr.bf16.gmra.mxu0 %v336
    %v696 = vpop.f32.mrf.mxu0
    %v697 = vadd.f32 0.0, %v696
    %v698 = vpop.f32.mrf.mxu0
    %v699 = vpop.f32.mrf.mxu0
    %v700 = vadd.f32 0.0, %v699
    %v701 = vpop.f32.mrf.mxu0
    %702 = vmatprep.mubr.bf16.mxu0 0
    %703 = vmatmul.mubr.bf16.gmra.mxu0 %v337
    %v704 = vpop.f32.mrf.mxu0
    %v705 = vadd.f32 0.0, %v704
    %v706 = vpop.f32.mrf.mxu0
    %v707 = vpop.f32.mrf.mxu0
    %v708 = vadd.f32 0.0, %v707
    %v709 = vpop.f32.mrf.mxu0
    %710 = vmatprep.mubr.bf16.mxu0 0
    %711 = vmatmul.mubr.bf16.gmra.mxu0 %v338
    %v712 = vpop.f32.mrf.mxu0
    %v713 = vadd.f32 0.0, %v712
    %v714 = vpop.f32.mrf.mxu0
    %v715 = vpop.f32.mrf.mxu0
    %v716 = vadd.f32 0.0, %v715
    %v717 = vpop.f32.mrf.mxu0
    %718 = vmatprep.mubr.bf16.mxu0 0
    %719 = vmatmul.mubr.bf16.gmra.mxu0 %v339
    %v720 = vpop.f32.mrf.mxu0
    %v721 = vadd.f32 0.0, %v720
    %v722 = vpop.f32.mrf.mxu0
    %v723 = vpop.f32.mrf.mxu0
    %v724 = vadd.f32 0.0, %v723
    %v725 = vpop.f32.mrf.mxu0
    %726 = vmatprep.mubr.bf16.mxu0 0
    %727 = vmatmul.mubr.bf16.gmra.mxu0 %v340
    %v728 = vpop.f32.mrf.mxu0
    %v729 = vadd.f32 0.0, %v728
    %v730 = vpop.f32.mrf.mxu0
    %v731 = vpop.f32.mrf.mxu0
    %v732 = vadd.f32 0.0, %v731
    %v733 = vpop.f32.mrf.mxu0
    %734 = vmatprep.mubr.bf16.mxu0 0
    %735 = vmatmul.mubr.bf16.gmra.mxu0 %v341
    %v736 = vpop.f32.mrf.mxu0
    %v737 = vadd.f32 0.0, %v736
    %v738 = vpop.f32.mrf.mxu0
    %v739 = vpop.f32.mrf.mxu0
    %v740 = vadd.f32 0.0, %v739
    %v741 = vpop.f32.mrf.mxu0
    %742 = vmatprep.mubr.bf16.mxu0 0
    %743 = vmatmul.mubr.bf16.gmra.mxu0 %v342
    %v744 = vpop.f32.mrf.mxu0
    %v745 = vadd.f32 0.0, %v744
    %v746 = vpop.f32.mrf.mxu0
    %v747 = vpop.f32.mrf.mxu0
    %v748 = vadd.f32 0.0, %v747
    %v749 = vpop.f32.mrf.mxu0
    %750 = vmatprep.mubr.bf16.mxu0 0
    %751 = vmatmul.mubr.bf16.gmra.mxu0 %v343
    %v752 = vpop.f32.mrf.mxu0
    %v753 = vadd.f32 0.0, %v752
    %v754 = vpop.f32.mrf.mxu0
    %v755 = vpop.f32.mrf.mxu0
    %v756 = vadd.f32 0.0, %v755
    %v757 = vpop.f32.mrf.mxu0
    %758 = vmatprep.mubr.bf16.mxu0 0
    %759 = vmatmul.mubr.bf16.gmra.mxu0 %v344
    %v760 = vpop.f32.mrf.mxu0
    %v761 = vadd.f32 0.0, %v760
    %v762 = vpop.f32.mrf.mxu0
    %v763 = vpop.f32.mrf.mxu0
    %v764 = vadd.f32 0.0, %v763
    %v765 = vpop.f32.mrf.mxu0
    %766 = vmatprep.mubr.bf16.mxu0 0
    %767 = vmatmul.mubr.bf16.gmra.mxu0 %v345
    %v768 = vpop.f32.mrf.mxu0
    %v769 = vadd.f32 0.0, %v768
    %v770 = vpop.f32.mrf.mxu0
    %v771 = vpop.f32.mrf.mxu0
    %v772 = vadd.f32 0.0, %v771
    %v773 = vpop.f32.mrf.mxu0
    %774 = vmatprep.mubr.bf16.mxu0 0
    %775 = vmatmul.mubr.bf16.gmra.mxu0 %v346
    %v776 = vpop.f32.mrf.mxu0
    %v777 = vadd.f32 0.0, %v776
    %v778 = vpop.f32.mrf.mxu0
    %v779 = vpop.f32.mrf.mxu0
    %v780 = vadd.f32 0.0, %v779
    %v781 = vpop.f32.mrf.mxu0
    %782 = vmatprep.mubr.bf16.mxu0 0
    %783 = vmatmul.mubr.bf16.gmra.mxu0 %v347
    %v784 = vpop.f32.mrf.mxu0
    %v785 = vadd.f32 0.0, %v784
    %v786 = vpop.f32.mrf.mxu0
    %v787 = vpop.f32.mrf.mxu0
    %v788 = vadd.f32 0.0, %v787
    %v789 = vpop.f32.mrf.mxu0
    %790 = vmatprep.mubr.bf16.mxu0 0
    %791 = vmatmul.mubr.bf16.gmra.mxu0 %v348
    %v792 = vpop.f32.mrf.mxu0
    %v793 = vadd.f32 0.0, %v792
    %v794 = vpop.f32.mrf.mxu0
    %v795 = vpop.f32.mrf.mxu0
    %v796 = vpop.f32.mrf.mxu0
    %797 = vdwg.mxu0
    %v798 = vld [vmem:[%s2] sm:$0x1]
    %v799 = vld [vmem:[%s3] sm:$0x1]
    %v800 = vadd.f32 %v473, %v476
    %v801 = vadd.f32 %v800, %v481
    %v802 = vadd.f32 %v801, %v484
    %v803 = vadd.f32 %v802, %v489
    %v804 = vadd.f32 %v803, %v492
    %v805 = vadd.f32 %v804, %v497
    %v806 = vadd.f32 %v805, %v500
    %v807 = vadd.f32 %v806, %v505
    %v808 = vadd.f32 %v807, %v508
    %v809 = vadd.f32 %v808, %v513
    %v810 = vadd.f32 %v809, %v516
    %v811 = vadd.f32 %v810, %v521
    %v812 = vadd.f32 %v811, %v524
    %v813 = vadd.f32 %v812, %v529
    %v814 = vadd.f32 %v813, %v532
    %v815 = vadd.f32 %v814, %v537
    %v816 = vadd.f32 %v815, %v540
    %v817 = vadd.f32 %v816, %v545
    %v818 = vadd.f32 %v817, %v548
    %v819 = vadd.f32 %v818, %v553
    %v820 = vadd.f32 %v819, %v556
    %v821 = vadd.f32 %v820, %v561
    %v822 = vadd.f32 %v821, %v564
    %v823 = vadd.f32 %v822, %v569
    %v824 = vadd.f32 %v823, %v572
    %v825 = vadd.f32 %v824, %v577
    %v826 = vadd.f32 %v825, %v580
    %v827 = vadd.f32 %v826, %v585
    %v828 = vadd.f32 %v827, %v588
    %v829 = vadd.f32 %v828, %v593
    %v830 = vadd.f32 %v829, %v596
    %v831 = vadd.f32 %v830, %v601
    %v832 = vadd.f32 %v831, %v604
    %v833 = vadd.f32 %v832, %v609
    %v834 = vadd.f32 %v833, %v612
    %v835 = vadd.f32 %v834, %v617
    %v836 = vadd.f32 %v835, %v620
    %v837 = vadd.f32 %v836, %v625
    %v838 = vadd.f32 %v837, %v628
    %v839 = vadd.f32 %v838, %v633
    %v840 = vadd.f32 %v839, %v636
    %v841 = vadd.f32 %v840, %v641
    %v842 = vadd.f32 %v841, %v644
    %v843 = vadd.f32 %v842, %v649
    %v844 = vadd.f32 %v843, %v652
    %v845 = vadd.f32 %v844, %v657
    %v846 = vadd.f32 %v845, %v660
    %v847 = vadd.f32 %v846, %v665
    %v848 = vadd.f32 %v847, %v668
    %v849 = vadd.f32 %v848, %v673
    %v850 = vadd.f32 %v849, %v676
    %v851 = vadd.f32 %v850, %v681
    %v852 = vadd.f32 %v851, %v684
    %v853 = vadd.f32 %v852, %v689
    %v854 = vadd.f32 %v853, %v692
    %v855 = vadd.f32 %v854, %v697
    %v856 = vadd.f32 %v855, %v700
    %v857 = vadd.f32 %v856, %v705
    %v858 = vadd.f32 %v857, %v708
    %v859 = vadd.f32 %v858, %v713
    %v860 = vadd.f32 %v859, %v716
    %v861 = vadd.f32 %v860, %v721
    %v862 = vadd.f32 %v861, %v724
    %v863 = vadd.f32 %v862, %v729
    %v864 = vadd.f32 %v863, %v732
    %v865 = vadd.f32 %v864, %v737
    %v866 = vadd.f32 %v865, %v740
    %v867 = vadd.f32 %v866, %v745
    %v868 = vadd.f32 %v867, %v748
    %v869 = vadd.f32 %v868, %v753
    %v870 = vadd.f32 %v869, %v756
    %v871 = vadd.f32 %v870, %v761
    %v872 = vadd.f32 %v871, %v764
    %v873 = vadd.f32 %v872, %v769
    %v874 = vadd.f32 %v873, %v772
    %v875 = vadd.f32 %v874, %v777
    %v876 = vadd.f32 %v875, %v780
    %v877 = vadd.f32 %v876, %v785
    %v878 = vadd.f32 %v877, %v788
    %v879 = vadd.f32 %v878, %v793
    %v880 = vrot.slane %v879, 4
    %v881 = vadd.f32 %v879, %v880
    %v882 = vrot.slane %v881, 2
    %v883 = vadd.f32 %v881, %v882
    %v884 = vrot.slane %v883, 1
    %v885 = vadd.f32 %v883, %v884
    %v886 = vmul.f32 %v885, 0.0015432099
    %v887 = vmul.f32 %v473, %v473
    %v888 = vmul.f32 %v476, %v476
    %v889 = vmul.f32 %v481, %v481
    %v890 = vmul.f32 %v484, %v484
    %v891 = vmul.f32 %v489, %v489
    %v892 = vmul.f32 %v492, %v492
    %v893 = vmul.f32 %v497, %v497
    %v894 = vmul.f32 %v500, %v500
    %v895 = vmul.f32 %v505, %v505
    %v896 = vmul.f32 %v508, %v508
    %v897 = vmul.f32 %v513, %v513
    %v898 = vmul.f32 %v516, %v516
    %v899 = vmul.f32 %v521, %v521
    %v900 = vmul.f32 %v524, %v524
    %v901 = vmul.f32 %v529, %v529
    %v902 = vmul.f32 %v532, %v532
    %v903 = vmul.f32 %v537, %v537
    %v904 = vmul.f32 %v540, %v540
    %v905 = vmul.f32 %v545, %v545
    %v906 = vmul.f32 %v548, %v548
    %v907 = vmul.f32 %v553, %v553
    %v908 = vmul.f32 %v556, %v556
    %v909 = vmul.f32 %v561, %v561
    %v910 = vmul.f32 %v564, %v564
    %v911 = vmul.f32 %v569, %v569
    %v912 = vmul.f32 %v572, %v572
    %v913 = vmul.f32 %v577, %v577
    %v914 = vmul.f32 %v580, %v580
    %v915 = vmul.f32 %v585, %v585
    %v916 = vmul.f32 %v588, %v588
    %v917 = vmul.f32 %v593, %v593
    %v918 = vmul.f32 %v596, %v596
    %v919 = vmul.f32 %v601, %v601
    %v920 = vmul.f32 %v604, %v604
    %v921 = vmul.f32 %v609, %v609
    %v922 = vmul.f32 %v612, %v612
    %v923 = vmul.f32 %v617, %v617
    %v924 = vmul.f32 %v620, %v620
    %v925 = vmul.f32 %v625, %v625
    %v926 = vmul.f32 %v628, %v628
    %v927 = vmul.f32 %v633, %v633
    %v928 = vmul.f32 %v636, %v636
    %v929 = vmul.f32 %v641, %v641
    %v930 = vmul.f32 %v644, %v644
    %v931 = vmul.f32 %v649, %v649
    %v932 = vmul.f32 %v652, %v652
    %v933 = vmul.f32 %v657, %v657
    %v934 = vmul.f32 %v660, %v660
    %v935 = vmul.f32 %v665, %v665
    %v936 = vmul.f32 %v668, %v668
    %v937 = vmul.f32 %v673, %v673
    %v938 = vmul.f32 %v676, %v676
    %v939 = vmul.f32 %v681, %v681
    %v940 = vmul.f32 %v684, %v684
    %v941 = vmul.f32 %v689, %v689
    %v942 = vmul.f32 %v692, %v692
    %v943 = vmul.f32 %v697, %v697
    %v944 = vmul.f32 %v700, %v700
    %v945 = vmul.f32 %v705, %v705
    %v946 = vmul.f32 %v708, %v708
    %v947 = vmul.f32 %v713, %v713
    %v948 = vmul.f32 %v716, %v716
    %v949 = vmul.f32 %v721, %v721
    %v950 = vmul.f32 %v724, %v724
    %v951 = vmul.f32 %v729, %v729
    %v952 = vmul.f32 %v732, %v732
    %v953 = vmul.f32 %v737, %v737
    %v954 = vmul.f32 %v740, %v740
    %v955 = vmul.f32 %v745, %v745
    %v956 = vmul.f32 %v748, %v748
    %v957 = vmul.f32 %v753, %v753
    %v958 = vmul.f32 %v756, %v756
    %v959 = vmul.f32 %v761, %v761
    %v960 = vmul.f32 %v764, %v764
    %v961 = vmul.f32 %v769, %v769
    %v962 = vmul.f32 %v772, %v772
    %v963 = vmul.f32 %v777, %v777
    %v964 = vmul.f32 %v780, %v780
    %v965 = vmul.f32 %v785, %v785
    %v966 = vmul.f32 %v788, %v788
    %v967 = vmul.f32 %v793, %v793
    %v968 = vadd.f32 %v887, %v888
    %v969 = vadd.f32 %v968, %v889
    %v970 = vadd.f32 %v969, %v890
    %v971 = vadd.f32 %v970, %v891
    %v972 = vadd.f32 %v971, %v892
    %v973 = vadd.f32 %v972, %v893
    %v974 = vadd.f32 %v973, %v894
    %v975 = vadd.f32 %v974, %v895
    %v976 = vadd.f32 %v975, %v896
    %v977 = vadd.f32 %v976, %v897
    %v978 = vadd.f32 %v977, %v898
    %v979 = vadd.f32 %v978, %v899
    %v980 = vadd.f32 %v979, %v900
    %v981 = vadd.f32 %v980, %v901
    %v982 = vadd.f32 %v981, %v902
    %v983 = vadd.f32 %v982, %v903
    %v984 = vadd.f32 %v983, %v904
    %v985 = vadd.f32 %v984, %v905
    %v986 = vadd.f32 %v985, %v906
    %v987 = vadd.f32 %v986, %v907
    %v988 = vadd.f32 %v987, %v908
    %v989 = vadd.f32 %v988, %v909
    %v990 = vadd.f32 %v989, %v910
    %v991 = vadd.f32 %v990, %v911
    %v992 = vadd.f32 %v991, %v912
    %v993 = vadd.f32 %v992, %v913
    %v994 = vadd.f32 %v993, %v914
    %v995 = vadd.f32 %v994, %v915
    %v996 = vadd.f32 %v995, %v916
    %v997 = vadd.f32 %v996, %v917
    %v998 = vadd.f32 %v997, %v918
    %v999 = vadd.f32 %v998, %v919
    %v1000 = vadd.f32 %v999, %v920
    %v1001 = vadd.f32 %v1000, %v921
    %v1002 = vadd.f32 %v1001, %v922
    %v1003 = vadd.f32 %v1002, %v923
    %v1004 = vadd.f32 %v1003, %v924
    %v1005 = vadd.f32 %v1004, %v925
    %v1006 = vadd.f32 %v1005, %v926
    %v1007 = vadd.f32 %v1006, %v927
    %v1008 = vadd.f32 %v1007, %v928
    %v1009 = vadd.f32 %v1008, %v929
    %v1010 = vadd.f32 %v1009, %v930
    %v1011 = vadd.f32 %v1010, %v931
    %v1012 = vadd.f32 %v1011, %v932
    %v1013 = vadd.f32 %v1012, %v933
    %v1014 = vadd.f32 %v1013, %v934
    %v1015 = vadd.f32 %v1014, %v935
    %v1016 = vadd.f32 %v1015, %v936
    %v1017 = vadd.f32 %v1016, %v937
    %v1018 = vadd.f32 %v1017, %v938
    %v1019 = vadd.f32 %v1018, %v939
    %v1020 = vadd.f32 %v1019, %v940
    %v1021 = vadd.f32 %v1020, %v941
    %v1022 = vadd.f32 %v1021, %v942
    %v1023 = vadd.f32 %v1022, %v943
    %v1024 = vadd.f32 %v1023, %v944
    %v1025 = vadd.f32 %v1024, %v945
    %v1026 = vadd.f32 %v1025, %v946
    %v1027 = vadd.f32 %v1026, %v947
    %v1028 = vadd.f32 %v1027, %v948
    %v1029 = vadd.f32 %v1028, %v949
    %v1030 = vadd.f32 %v1029, %v950
    %v1031 = vadd.f32 %v1030, %v951
    %v1032 = vadd.f32 %v1031, %v952
    %v1033 = vadd.f32 %v1032, %v953
    %v1034 = vadd.f32 %v1033, %v954
    %v1035 = vadd.f32 %v1034, %v955
    %v1036 = vadd.f32 %v1035, %v956
    %v1037 = vadd.f32 %v1036, %v957
    %v1038 = vadd.f32 %v1037, %v958
    %v1039 = vadd.f32 %v1038, %v959
    %v1040 = vadd.f32 %v1039, %v960
    %v1041 = vadd.f32 %v1040, %v961
    %v1042 = vadd.f32 %v1041, %v962
    %v1043 = vadd.f32 %v1042, %v963
    %v1044 = vadd.f32 %v1043, %v964
    %v1045 = vadd.f32 %v1044, %v965
    %v1046 = vadd.f32 %v1045, %v966
    %v1047 = vadd.f32 %v1046, %v967
    %v1048 = vrot.slane %v1047, 4
    %v1049 = vadd.f32 %v1047, %v1048
    %v1050 = vrot.slane %v1049, 2
    %v1051 = vadd.f32 %v1049, %v1050
    %v1052 = vrot.slane %v1051, 1
    %v1053 = vadd.f32 %v1051, %v1052
    %v1054 = vmul.f32 %v1053, 0.0015432099
    %v1055 = vmul.f32 %v886, %v886
    %v1056 = vsub.f32 %v1054, %v1055
    %v1057 = vmax.f32 %v1056, 0.0
    %v1058 = vsub.f32 %v473, %v886
    %v1059 = vsub.f32 %v476, %v886
    %v1060 = vsub.f32 %v481, %v886
    %v1061 = vsub.f32 %v484, %v886
    %v1062 = vsub.f32 %v489, %v886
    %v1063 = vsub.f32 %v492, %v886
    %v1064 = vsub.f32 %v497, %v886
    %v1065 = vsub.f32 %v500, %v886
    %v1066 = vsub.f32 %v505, %v886
    %v1067 = vsub.f32 %v508, %v886
    %v1068 = vsub.f32 %v513, %v886
    %v1069 = vsub.f32 %v516, %v886
    %v1070 = vsub.f32 %v521, %v886
    %v1071 = vsub.f32 %v524, %v886
    %v1072 = vsub.f32 %v529, %v886
    %v1073 = vsub.f32 %v532, %v886
    %v1074 = vsub.f32 %v537, %v886
    %v1075 = vsub.f32 %v540, %v886
    %v1076 = vsub.f32 %v545, %v886
    %v1077 = vsub.f32 %v548, %v886
    %v1078 = vsub.f32 %v553, %v886
    %v1079 = vsub.f32 %v556, %v886
    %v1080 = vsub.f32 %v561, %v886
    %v1081 = vsub.f32 %v564, %v886
    %v1082 = vsub.f32 %v569, %v886
    %v1083 = vsub.f32 %v572, %v886
    %v1084 = vsub.f32 %v577, %v886
    %v1085 = vsub.f32 %v580, %v886
    %v1086 = vsub.f32 %v585, %v886
    %v1087 = vsub.f32 %v588, %v886
    %v1088 = vsub.f32 %v593, %v886
    %v1089 = vsub.f32 %v596, %v886
    %v1090 = vsub.f32 %v601, %v886
    %v1091 = vsub.f32 %v604, %v886
    %v1092 = vsub.f32 %v612, %v886
    %v1093 = vsub.f32 %v617, %v886
    %v1094 = vsub.f32 %v620, %v886
    %v1095 = vsub.f32 %v625, %v886
    %v1096 = vsub.f32 %v633, %v886
    %v1097 = vsub.f32 %v636, %v886
    %v1098 = vsub.f32 %v641, %v886
    %v1099 = vsub.f32 %v644, %v886
    %v1100 = vsub.f32 %v652, %v886
    %v1101 = vsub.f32 %v657, %v886
    %v1102 = vsub.f32 %v660, %v886
    %v1103 = vsub.f32 %v665, %v886
    %v1104 = vsub.f32 %v668, %v886
    %v1105 = vsub.f32 %v673, %v886
    %v1106 = vsub.f32 %v676, %v886
    %v1107 = vsub.f32 %v681, %v886
    %v1108 = vsub.f32 %v684, %v886
    %v1109 = vsub.f32 %v689, %v886
    %v1110 = vsub.f32 %v692, %v886
    %v1111 = vsub.f32 %v697, %v886
    %v1112 = vsub.f32 %v700, %v886
    %v1113 = vsub.f32 %v705, %v886
    %v1114 = vsub.f32 %v708, %v886
    %v1115 = vsub.f32 %v713, %v886
    %v1116 = vsub.f32 %v716, %v886
    %v1117 = vsub.f32 %v721, %v886
    %v1118 = vsub.f32 %v724, %v886
    %v1119 = vsub.f32 %v729, %v886
    %v1120 = vsub.f32 %v732, %v886
    %v1121 = vsub.f32 %v737, %v886
    %v1122 = vsub.f32 %v740, %v886
    %v1123 = vsub.f32 %v745, %v886
    %v1124 = vsub.f32 %v748, %v886
    %v1125 = vsub.f32 %v753, %v886
    %v1126 = vsub.f32 %v756, %v886
    %v1127 = vsub.f32 %v761, %v886
    %v1128 = vsub.f32 %v764, %v886
    %v1129 = vsub.f32 %v769, %v886
    %v1130 = vsub.f32 %v772, %v886
    %v1131 = vsub.f32 %v777, %v886
    %v1132 = vsub.f32 %v780, %v886
    %v1133 = vsub.f32 %v785, %v886
    %v1134 = vsub.f32 %v788, %v886
    %v1135 = vsub.f32 %v793, %v886
    %v1136 = vadd.f32 %v1057, 1e-05
    %v1137 = vrsqrt.pop %v1136
    %v1138 = vmul.f32 %v1058, %v1137
    %v1139 = vmul.f32 %v1059, %v1137
    %v1140 = vmul.f32 %v1060, %v1137
    %v1141 = vmul.f32 %v1061, %v1137
    %v1142 = vmul.f32 %v1062, %v1137
    %v1143 = vmul.f32 %v1063, %v1137
    %v1144 = vmul.f32 %v1064, %v1137
    %v1145 = vmul.f32 %v1065, %v1137
    %v1146 = vmul.f32 %v1066, %v1137
    %v1147 = vmul.f32 %v1067, %v1137
    %v1148 = vmul.f32 %v1068, %v1137
    %v1149 = vmul.f32 %v1069, %v1137
    %v1150 = vmul.f32 %v1070, %v1137
    %v1151 = vmul.f32 %v1071, %v1137
    %v1152 = vmul.f32 %v1072, %v1137
    %v1153 = vmul.f32 %v1073, %v1137
    %v1154 = vmul.f32 %v1074, %v1137
    %v1155 = vmul.f32 %v1075, %v1137
    %v1156 = vmul.f32 %v1076, %v1137
    %v1157 = vmul.f32 %v1077, %v1137
    %v1158 = vmul.f32 %v1078, %v1137
    %v1159 = vmul.f32 %v1079, %v1137
    %v1160 = vmul.f32 %v1080, %v1137
    %v1161 = vmul.f32 %v1081, %v1137
    %v1162 = vmul.f32 %v1082, %v1137
    %v1163 = vmul.f32 %v1083, %v1137
    %v1164 = vmul.f32 %v1084, %v1137
    %v1165 = vmul.f32 %v1085, %v1137
    %v1166 = vmul.f32 %v1086, %v1137
    %v1167 = vmul.f32 %v1087, %v1137
    %v1168 = vmul.f32 %v1088, %v1137
    %v1169 = vmul.f32 %v1089, %v1137
    %v1170 = vmul.f32 %v1090, %v1137
    %v1171 = vmul.f32 %v1091, %v1137
    %v1172 = vmul.f32 %v1092, %v1137
    %v1173 = vmul.f32 %v1093, %v1137
    %v1174 = vmul.f32 %v1094, %v1137
    %v1175 = vmul.f32 %v1095, %v1137
    %v1176 = vmul.f32 %v1096, %v1137
    %v1177 = vmul.f32 %v1097, %v1137
    %v1178 = vmul.f32 %v1098, %v1137
    %v1179 = vmul.f32 %v1099, %v1137
    %v1180 = vmul.f32 %v1100, %v1137
    %v1181 = vmul.f32 %v1101, %v1137
    %v1182 = vmul.f32 %v1102, %v1137
    %v1183 = vmul.f32 %v1103, %v1137
    %v1184 = vmul.f32 %v1104, %v1137
    %v1185 = vmul.f32 %v1105, %v1137
    %v1186 = vmul.f32 %v1106, %v1137
    %v1187 = vmul.f32 %v1107, %v1137
    %v1188 = vmul.f32 %v1108, %v1137
    %v1189 = vmul.f32 %v1109, %v1137
    %v1190 = vmul.f32 %v1110, %v1137
    %v1191 = vmul.f32 %v1111, %v1137
    %v1192 = vmul.f32 %v1112, %v1137
    %v1193 = vmul.f32 %v1113, %v1137
    %v1194 = vmul.f32 %v1114, %v1137
    %v1195 = vmul.f32 %v1115, %v1137
    %v1196 = vmul.f32 %v1116, %v1137
    %v1197 = vmul.f32 %v1117, %v1137
    %v1198 = vmul.f32 %v1118, %v1137
    %v1199 = vmul.f32 %v1119, %v1137
    %v1200 = vmul.f32 %v1120, %v1137
    %v1201 = vmul.f32 %v1121, %v1137
    %v1202 = vmul.f32 %v1122, %v1137
    %v1203 = vmul.f32 %v1123, %v1137
    %v1204 = vmul.f32 %v1124, %v1137
    %v1205 = vmul.f32 %v1125, %v1137
    %v1206 = vmul.f32 %v1126, %v1137
    %v1207 = vmul.f32 %v1127, %v1137
    %v1208 = vmul.f32 %v1128, %v1137
    %v1209 = vmul.f32 %v1129, %v1137
    %v1210 = vmul.f32 %v1130, %v1137
    %v1211 = vmul.f32 %v1131, %v1137
    %v1212 = vmul.f32 %v1132, %v1137
    %v1213 = vmul.f32 %v1133, %v1137
    %v1214 = vmul.f32 %v1134, %v1137
    %v1215 = vmul.f32 %v1135, %v1137
    %v1217 = vlaneseq
    %v1218 = vshrl.u32 %v1217, 7
    %v1219 = vsub.s32 0, %v1218
    %v1220 = vrot.slane %v798, %v1219
    %v1222 = vmul.f32 %v1138, %v1220
    %v1223 = vmul.f32 %v1139, %v1220
    %v1224 = vmul.f32 %v1140, %v1220
    %v1225 = vmul.f32 %v1141, %v1220
    %v1226 = vmul.f32 %v1142, %v1220
    %v1227 = vmul.f32 %v1143, %v1220
    %v1228 = vmul.f32 %v1144, %v1220
    %v1229 = vmul.f32 %v1145, %v1220
    %v1230 = vmul.f32 %v1146, %v1220
    %v1231 = vmul.f32 %v1147, %v1220
    %v1232 = vmul.f32 %v1148, %v1220
    %v1233 = vmul.f32 %v1149, %v1220
    %v1234 = vmul.f32 %v1150, %v1220
    %v1235 = vmul.f32 %v1151, %v1220
    %v1236 = vmul.f32 %v1152, %v1220
    %v1237 = vmul.f32 %v1153, %v1220
    %v1238 = vmul.f32 %v1154, %v1220
    %v1239 = vmul.f32 %v1155, %v1220
    %v1240 = vmul.f32 %v1156, %v1220
    %v1241 = vmul.f32 %v1157, %v1220
    %v1242 = vmul.f32 %v1158, %v1220
    %v1243 = vmul.f32 %v1159, %v1220
    %v1244 = vmul.f32 %v1160, %v1220
    %v1245 = vmul.f32 %v1161, %v1220
    %v1246 = vmul.f32 %v1162, %v1220
    %v1247 = vmul.f32 %v1163, %v1220
    %v1248 = vmul.f32 %v1164, %v1220
    %v1249 = vmul.f32 %v1165, %v1220
    %v1250 = vmul.f32 %v1166, %v1220
    %v1251 = vmul.f32 %v1167, %v1220
    %v1252 = vmul.f32 %v1168, %v1220
    %v1253 = vmul.f32 %v1169, %v1220
    %v1254 = vmul.f32 %v1170, %v1220
    %v1255 = vmul.f32 %v1171, %v1220
    %v1256 = vmul.f32 %v1172, %v1220
    %v1257 = vmul.f32 %v1173, %v1220
    %v1258 = vmul.f32 %v1174, %v1220
    %v1259 = vmul.f32 %v1175, %v1220
    %v1260 = vmul.f32 %v1176, %v1220
    %v1261 = vmul.f32 %v1177, %v1220
    %v1262 = vmul.f32 %v1178, %v1220
    %v1263 = vmul.f32 %v1179, %v1220
    %v1264 = vmul.f32 %v1180, %v1220
    %v1265 = vmul.f32 %v1181, %v1220
    %v1266 = vmul.f32 %v1182, %v1220
    %v1267 = vmul.f32 %v1183, %v1220
    %v1268 = vmul.f32 %v1184, %v1220
    %v1269 = vmul.f32 %v1185, %v1220
    %v1270 = vmul.f32 %v1186, %v1220
    %v1271 = vmul.f32 %v1187, %v1220
    %v1272 = vmul.f32 %v1188, %v1220
    %v1273 = vmul.f32 %v1189, %v1220
    %v1274 = vmul.f32 %v1190, %v1220
    %v1275 = vmul.f32 %v1191, %v1220
    %v1276 = vmul.f32 %v1192, %v1220
    %v1277 = vmul.f32 %v1193, %v1220
    %v1278 = vmul.f32 %v1194, %v1220
    %v1279 = vmul.f32 %v1195, %v1220
    %v1280 = vmul.f32 %v1196, %v1220
    %v1281 = vmul.f32 %v1197, %v1220
    %v1282 = vmul.f32 %v1198, %v1220
    %v1283 = vmul.f32 %v1199, %v1220
    %v1284 = vmul.f32 %v1200, %v1220
    %v1285 = vmul.f32 %v1201, %v1220
    %v1286 = vmul.f32 %v1202, %v1220
    %v1287 = vmul.f32 %v1203, %v1220
    %v1288 = vmul.f32 %v1204, %v1220
    %v1289 = vmul.f32 %v1205, %v1220
    %v1290 = vmul.f32 %v1206, %v1220
    %v1291 = vmul.f32 %v1207, %v1220
    %v1292 = vmul.f32 %v1208, %v1220
    %v1293 = vmul.f32 %v1209, %v1220
    %v1294 = vmul.f32 %v1210, %v1220
    %v1295 = vmul.f32 %v1211, %v1220
    %v1296 = vmul.f32 %v1212, %v1220
    %v1297 = vmul.f32 %v1213, %v1220
    %v1298 = vmul.f32 %v1214, %v1220
    %v1299 = vmul.f32 %v1215, %v1220
    %v1301 = vlaneseq
    %v1302 = vshrl.u32 %v1301, 7
    %v1303 = vsub.s32 0, %v1302
    %v1304 = vrot.slane %v799, %v1303
    %v1306 = vadd.f32 %v1222, %v1304
    %v1307 = vadd.f32 %v1223, %v1304
    %v1308 = vadd.f32 %v1224, %v1304
    %v1309 = vadd.f32 %v1225, %v1304
    %v1310 = vadd.f32 %v1226, %v1304
    %v1311 = vadd.f32 %v1227, %v1304
    %v1312 = vadd.f32 %v1228, %v1304
    %v1313 = vadd.f32 %v1229, %v1304
    %v1314 = vadd.f32 %v1230, %v1304
    %v1315 = vadd.f32 %v1231, %v1304
    %v1316 = vadd.f32 %v1232, %v1304
    %v1317 = vadd.f32 %v1233, %v1304
    %v1318 = vadd.f32 %v1234, %v1304
    %v1319 = vadd.f32 %v1235, %v1304
    %v1320 = vadd.f32 %v1236, %v1304
    %v1321 = vadd.f32 %v1237, %v1304
    %v1322 = vadd.f32 %v1238, %v1304
    %v1323 = vadd.f32 %v1239, %v1304
    %v1324 = vadd.f32 %v1240, %v1304
    %v1325 = vadd.f32 %v1241, %v1304
    %v1326 = vadd.f32 %v1242, %v1304
    %v1327 = vadd.f32 %v1243, %v1304
    %v1328 = vadd.f32 %v1244, %v1304
    %v1329 = vadd.f32 %v1245, %v1304
    %v1330 = vadd.f32 %v1246, %v1304
    %v1331 = vadd.f32 %v1247, %v1304
    %v1332 = vadd.f32 %v1248, %v1304
    %v1333 = vadd.f32 %v1249, %v1304
    %v1334 = vadd.f32 %v1250, %v1304
    %v1335 = vadd.f32 %v1251, %v1304
    %v1336 = vadd.f32 %v1252, %v1304
    %v1337 = vadd.f32 %v1253, %v1304
    %v1338 = vadd.f32 %v1254, %v1304
    %v1339 = vadd.f32 %v1255, %v1304
    %v1340 = vadd.f32 %v1256, %v1304
    %v1341 = vadd.f32 %v1257, %v1304
    %v1342 = vadd.f32 %v1258, %v1304
    %v1343 = vadd.f32 %v1259, %v1304
    %v1344 = vadd.f32 %v1260, %v1304
    %v1345 = vadd.f32 %v1261, %v1304
    %v1346 = vadd.f32 %v1262, %v1304
    %v1347 = vadd.f32 %v1263, %v1304
    %v1348 = vadd.f32 %v1264, %v1304
    %v1349 = vadd.f32 %v1265, %v1304
    %v1350 = vadd.f32 %v1266, %v1304
    %v1351 = vadd.f32 %v1267, %v1304
    %v1352 = vadd.f32 %v1268, %v1304
    %v1353 = vadd.f32 %v1269, %v1304
    %v1354 = vadd.f32 %v1270, %v1304
    %v1355 = vadd.f32 %v1271, %v1304
    %v1356 = vadd.f32 %v1272, %v1304
    %v1357 = vadd.f32 %v1273, %v1304
    %v1358 = vadd.f32 %v1274, %v1304
    %v1359 = vadd.f32 %v1275, %v1304
    %v1360 = vadd.f32 %v1276, %v1304
    %v1361 = vadd.f32 %v1277, %v1304
    %v1362 = vadd.f32 %v1278, %v1304
    %v1363 = vadd.f32 %v1279, %v1304
    %v1364 = vadd.f32 %v1280, %v1304
    %v1365 = vadd.f32 %v1281, %v1304
    %v1366 = vadd.f32 %v1282, %v1304
    %v1367 = vadd.f32 %v1283, %v1304
    %v1368 = vadd.f32 %v1284, %v1304
    %v1369 = vadd.f32 %v1285, %v1304
    %v1370 = vadd.f32 %v1286, %v1304
    %v1371 = vadd.f32 %v1287, %v1304
    %v1372 = vadd.f32 %v1288, %v1304
    %v1373 = vadd.f32 %v1289, %v1304
    %v1374 = vadd.f32 %v1290, %v1304
    %v1375 = vadd.f32 %v1291, %v1304
    %v1376 = vadd.f32 %v1292, %v1304
    %v1377 = vadd.f32 %v1293, %v1304
    %v1378 = vadd.f32 %v1294, %v1304
    %v1379 = vadd.f32 %v1295, %v1304
    %v1380 = vadd.f32 %v1296, %v1304
    %v1381 = vadd.f32 %v1297, %v1304
    %v1382 = vadd.f32 %v1298, %v1304
    %v1383 = vadd.f32 %v1299, %v1304
    %v1384 = vld [vmem:[%s4] sm:$0xf]
    %v1385 = vld [vmem:[%s4 + $0x4] sm:$0xf]
    %v1386 = vld [vmem:[%s4 + $0x8] sm:$0xf]
    %v1387 = vld [vmem:[%s4 + $0xc] sm:$0xf]
    %v1388 = vld [vmem:[%s4 + $0x10] sm:$0xf]
    %v1389 = vld [vmem:[%s4 + $0x14] sm:$0xf]
    %v1390 = vld [vmem:[%s4 + $0x18] sm:$0xf]
    %v1391 = vld [vmem:[%s4 + $0x1c] sm:$0xf]
    %v1392 = vld [vmem:[%s4 + $0x20] sm:$0xf]
    %v1393 = vld [vmem:[%s4 + $0x24] sm:$0xf]
    %v1394 = vld [vmem:[%s4 + $0x28] sm:$0xf]
    %v1395 = vld [vmem:[%s4 + $0x2c] sm:$0xf]
    %v1396 = vld [vmem:[%s4 + $0x30] sm:$0xf]
    %v1397 = vld [vmem:[%s4 + $0x34] sm:$0xf]
    %v1398 = vld [vmem:[%s4 + $0x38] sm:$0xf]
    %v1399 = vld [vmem:[%s4 + $0x3c] sm:$0xf]
    %v1400 = vld [vmem:[%s4 + $0x40] sm:$0xf]
    %v1401 = vld [vmem:[%s4 + $0x44] sm:$0xf]
    %v1402 = vld [vmem:[%s4 + $0x48] sm:$0xf]
    %v1403 = vld [vmem:[%s4 + $0x4c] sm:$0xf]
    %v1404 = vld [vmem:[%s4 + $0x50] sm:$0xf]
    %v1405 = vld [vmem:[%s4 + $0x54] sm:$0xf]
    %v1406 = vld [vmem:[%s4 + $0x58] sm:$0xf]
    %v1407 = vld [vmem:[%s4 + $0x5c] sm:$0xf]
    %v1408 = vld [vmem:[%s4 + $0x60] sm:$0xf]
    %v1409 = vld [vmem:[%s4 + $0x64] sm:$0xf]
    %v1410 = vld [vmem:[%s4 + $0x68] sm:$0xf]
    %v1411 = vld [vmem:[%s4 + $0x6c] sm:$0xf]
    %v1412 = vld [vmem:[%s4 + $0x70] sm:$0xf]
    %v1413 = vld [vmem:[%s4 + $0x74] sm:$0xf]
    %v1414 = vld [vmem:[%s4 + $0x78] sm:$0xf]
    %v1415 = vld [vmem:[%s4 + $0x7c] sm:$0xf]
    %v1416 = vld [vmem:[%s4 + $0x80] sm:$0xf]
    %v1417 = vld [vmem:[%s4 + $0x84] sm:$0xf]
    %v1418 = vld [vmem:[%s4 + $0x88] sm:$0xf]
    %v1419 = vld [vmem:[%s4 + $0x8c] sm:$0xf]
    %v1420 = vld [vmem:[%s4 + $0x90] sm:$0xf]
    %v1421 = vld [vmem:[%s4 + $0x94] sm:$0xf]
    %v1422 = vld [vmem:[%s4 + $0x98] sm:$0xf]
    %v1423 = vld [vmem:[%s4 + $0x9c] sm:$0xf]
    %v1424 = vld [vmem:[%s4 + $0xa0] sm:$0xf]
    %v1425 = vld [vmem:[%s4 + $0xa4] sm:$0xf]
    %v1426 = vld [vmem:[%s4 + $0xa8] sm:$0xf]
    %v1427 = vld [vmem:[%s4 + $0xac] sm:$0xf]
    %v1428 = vld [vmem:[%s4 + $0xb0] sm:$0xf]
    %v1429 = vld [vmem:[%s4 + $0xb4] sm:$0xf]
    %v1430 = vld [vmem:[%s4 + $0xb8] sm:$0xf]
    %v1431 = vld [vmem:[%s4 + $0xbc] sm:$0xf]
    %v1432 = vld [vmem:[%s4 + $0xc0] sm:$0xf]
    %v1433 = vld [vmem:[%s4 + $0xc4] sm:$0xf]
    %vm1436 = vcmask 1045504
    %v1437 = vrot.slane %v1307, 2
    %v1438 = vrot.slane %v1308, 2
    %v1439 = vsel %vm1436, %v1437, %v1438
    %vm1442 = vcmask 1043456
    %v1443 = vrot.slane %v1308, 4
    %v1444 = vrot.slane %v1309, 4
    %v1445 = vsel %vm1442, %v1443, %v1444
    %vm1448 = vcmask 1041408
    %v1449 = vrot.slane %v1309, 6
    %v1450 = vrot.slane %v1310, 6
    %v1451 = vsel %vm1448, %v1449, %v1450
    %v1455 = vrot.slane %v1312, 2
    %v1456 = vrot.slane %v1313, 2
    %v1457 = vsel %vm1436, %v1455, %v1456
    %v1459 = vrot.slane %v1313, 4
    %v1460 = vrot.slane %v1314, 4
    %v1461 = vsel %vm1442, %v1459, %v1460
    %v1463 = vrot.slane %v1314, 6
    %v1464 = vrot.slane %v1315, 6
    %v1465 = vsel %vm1448, %v1463, %v1464
    %v1468 = vrot.slane %v1318, 4
    %v1469 = vrot.slane %v1319, 4
    %v1470 = vsel %vm1442, %v1468, %v1469
    %v1472 = vrot.slane %v1320, 4
    %v1473 = vsel %vm1442, %v1469, %v1472
    %v1475 = vrot.slane %v1321, 4
    %v1476 = vsel %vm1442, %v1472, %v1475
    %v1478 = vrot.slane %v1322, 4
    %v1479 = vsel %vm1442, %v1475, %v1478
    %v1482 = vrot.slane %v1323, 4
    %v1483 = vrot.slane %v1324, 4
    %v1484 = vsel %vm1442, %v1482, %v1483
    %v1486 = vrot.slane %v1325, 4
    %v1487 = vsel %vm1442, %v1483, %v1486
    %v1489 = vrot.slane %v1326, 4
    %v1490 = vsel %vm1442, %v1486, %v1489
    %v1492 = vrot.slane %v1327, 4
    %v1493 = vsel %vm1442, %v1489, %v1492
    %v1495 = vrot.slane %v1306, 2
    %v1496 = vsel %vm1436, %v1495, %v1437
    %v1497 = vrot.slane %v1307, 4
    %v1498 = vsel %vm1442, %v1497, %v1443
    %v1499 = vrot.slane %v1308, 6
    %v1500 = vsel %vm1448, %v1499, %v1449
    %v1503 = vrot.slane %v1328, 4
    %v1504 = vrot.slane %v1329, 4
    %v1505 = vsel %vm1442, %v1503, %v1504
    %v1507 = vrot.slane %v1329, 6
    %v1508 = vrot.slane %v1330, 6
    %v1509 = vsel %vm1448, %v1507, %v1508
    %v1512 = vrot.slane %v1332, 2
    %v1513 = vrot.slane %v1333, 2
    %v1514 = vsel %vm1436, %v1512, %v1513
    %v1517 = vrot.slane %v1334, 6
    %v1518 = vrot.slane %v1335, 6
    %v1519 = vsel %vm1448, %v1517, %v1518
    %v1522 = vrot.slane %v1337, 2
    %v1523 = vrot.slane %v1338, 2
    %v1524 = vsel %vm1436, %v1522, %v1523
    %v1526 = vrot.slane %v1338, 4
    %v1527 = vrot.slane %v1339, 4
    %v1528 = vsel %vm1442, %v1526, %v1527
    %v1529 = vrot.slane %v1328, 6
    %v1530 = vsel %vm1448, %v1529, %v1507
    %v1532 = vrot.slane %v1331, 2
    %v1533 = vsel %vm1436, %v1532, %v1512
    %v1534 = vrot.slane %v1332, 4
    %v1535 = vrot.slane %v1333, 4
    %v1536 = vsel %vm1442, %v1534, %v1535
    %v1539 = vrot.slane %v1349, 2
    %v1540 = vrot.slane %v1350, 2
    %v1541 = vsel %vm1436, %v1539, %v1540
    %v1543 = vrot.slane %v1350, 4
    %v1544 = vrot.slane %v1351, 4
    %v1545 = vsel %vm1442, %v1543, %v1544
    %v1547 = vrot.slane %v1351, 6
    %v1548 = vrot.slane %v1352, 6
    %v1549 = vsel %vm1448, %v1547, %v1548
    %v1552 = vrot.slane %v1354, 2
    %v1553 = vrot.slane %v1355, 2
    %v1554 = vsel %vm1436, %v1552, %v1553
    %v1556 = vrot.slane %v1355, 4
    %v1557 = vrot.slane %v1356, 4
    %v1558 = vsel %vm1442, %v1556, %v1557
    %v1560 = vrot.slane %v1356, 6
    %v1561 = vrot.slane %v1357, 6
    %v1562 = vsel %vm1448, %v1560, %v1561
    %v1564 = vrot.slane %v1348, 2
    %v1565 = vsel %vm1436, %v1564, %v1539
    %v1566 = vrot.slane %v1349, 4
    %v1567 = vsel %vm1442, %v1566, %v1543
    %v1568 = vrot.slane %v1350, 6
    %v1569 = vsel %vm1448, %v1568, %v1547
    %v1572 = vrot.slane %v1367, 2
    %v1573 = vrot.slane %v1368, 2
    %v1574 = vsel %vm1436, %v1572, %v1573
    %v1576 = vrot.slane %v1368, 4
    %v1577 = vrot.slane %v1369, 4
    %v1578 = vsel %vm1442, %v1576, %v1577
    %v1580 = vrot.slane %v1369, 6
    %v1581 = vrot.slane %v1370, 6
    %v1582 = vsel %vm1448, %v1580, %v1581
    %v1585 = vrot.slane %v1372, 2
    %v1586 = vrot.slane %v1373, 2
    %v1587 = vsel %vm1436, %v1585, %v1586
    %v1590 = vrot.slane %v1373, 4
    %v1591 = vrot.slane %v1374, 4
    %v1592 = vsel %vm1442, %v1590, %v1591
    %v1595 = vrot.slane %v1374, 6
    %v1596 = vrot.slane %v1375, 6
    %v1597 = vsel %vm1448, %v1595, %v1596
    %v1600 = vrot.slane %v1366, 2
    %v1601 = vsel %vm1436, %v1600, %v1572
    %v1602 = vrot.slane %v1367, 4
    %v1603 = vsel %vm1442, %v1602, %v1576
    %v1604 = vrot.slane %v1368, 6
    %v1605 = vsel %vm1448, %v1604, %v1580
    %v1607 = vrot.slane %v1317, 2
    %v1608 = vrot.slane %v1318, 2
    %v1609 = vsel %vm1436, %v1607, %v1608
    %v1610 = vsel %vm1442, %v1478, %v1482
    %v1611 = vsel %vm1442, %v1492, %v1503
    %v1615 = vrot.slane %v1311, 2
    %v1616 = vsel %vm1436, %v1615, %v1455
    %1619 = vrot.lane.b32.xlu0 %v1457, 16
    %v1620 = vpop.permute.xlu0 %1619
    %1621 = vrot.lane.b32.xlu0 %v1461, 16
    %v1622 = vpop.permute.xlu0 %1621
    %1623 = vrot.lane.b32.xlu0 %v1465, 16
    %v1624 = vpop.permute.xlu0 %1623
    %1625 = vrot.lane.b32.xlu0 %v1316, 16
    %v1626 = vpop.permute.xlu0 %1625
    %1631 = vrot.lane.b32.xlu0 %v1470, 32
    %v1632 = vpop.permute.xlu0 %1631
    %1633 = vrot.lane.b32.xlu0 %v1473, 32
    %v1634 = vpop.permute.xlu0 %1633
    %1635 = vrot.lane.b32.xlu0 %v1476, 32
    %v1636 = vpop.permute.xlu0 %1635
    %1637 = vrot.lane.b32.xlu0 %v1479, 32
    %v1638 = vpop.permute.xlu0 %1637
    %1643 = vrot.lane.b32.xlu0 %v1484, 48
    %v1644 = vpop.permute.xlu0 %1643
    %1645 = vrot.lane.b32.xlu0 %v1487, 48
    %v1646 = vpop.permute.xlu0 %1645
    %1647 = vrot.lane.b32.xlu0 %v1490, 48
    %v1648 = vpop.permute.xlu0 %1647
    %1649 = vrot.lane.b32.xlu0 %v1493, 48
    %v1650 = vpop.permute.xlu0 %1649
    %1655 = vrot.lane.b32.xlu0 %v1496, 64
    %v1656 = vpop.permute.xlu0 %1655
    %1657 = vrot.lane.b32.xlu0 %v1498, 64
    %v1658 = vpop.permute.xlu0 %1657
    %1659 = vrot.lane.b32.xlu0 %v1500, 64
    %v1660 = vpop.permute.xlu0 %1659
    %1661 = vrot.lane.b32.xlu0 %v1310, 64
    %v1662 = vpop.permute.xlu0 %1661
    %1667 = vrot.lane.b32.xlu0 %v1505, 80
    %v1668 = vpop.permute.xlu0 %1667
    %1669 = vrot.lane.b32.xlu0 %v1509, 80
    %v1670 = vpop.permute.xlu0 %1669
    %1671 = vrot.lane.b32.xlu0 %v1331, 80
    %v1672 = vpop.permute.xlu0 %1671
    %1673 = vrot.lane.b32.xlu0 %v1514, 80
    %v1674 = vpop.permute.xlu0 %1673
    %1680 = vrot.lane.b32.xlu0 %v1519, 96
    %v1681 = vpop.permute.xlu0 %1680
    %1682 = vrot.lane.b32.xlu0 %v1336, 96
    %v1683 = vpop.permute.xlu0 %1682
    %1684 = vrot.lane.b32.xlu0 %v1524, 96
    %v1685 = vpop.permute.xlu0 %1684
    %1686 = vrot.lane.b32.xlu0 %v1528, 96
    %v1687 = vpop.permute.xlu0 %1686
    %1696 = vrot.lane.b32.xlu0 %v1340, 112
    %v1697 = vpop.permute.xlu0 %1696
    %1698 = vrot.lane.b32.xlu0 %v1341, 112
    %v1699 = vpop.permute.xlu0 %1698
    %1700 = vrot.lane.b32.xlu0 %v1342, 112
    %v1701 = vpop.permute.xlu0 %1700
    %1702 = vrot.lane.b32.xlu0 %v1343, 112
    %v1703 = vpop.permute.xlu0 %1702
    %1708 = vrot.lane.b32.xlu0 %v1530, 16
    %v1709 = vpop.permute.xlu0 %1708
    %1710 = vrot.lane.b32.xlu0 %v1330, 16
    %v1711 = vpop.permute.xlu0 %1710
    %1712 = vrot.lane.b32.xlu0 %v1533, 16
    %v1713 = vpop.permute.xlu0 %1712
    %1714 = vrot.lane.b32.xlu0 %v1536, 16
    %v1715 = vpop.permute.xlu0 %1714
    %1720 = vrot.lane.b32.xlu0 %v1348, 32
    %v1721 = vpop.permute.xlu0 %1720
    %1722 = vrot.lane.b32.xlu0 %v1541, 32
    %v1723 = vpop.permute.xlu0 %1722
    %1724 = vrot.lane.b32.xlu0 %v1545, 32
    %v1725 = vpop.permute.xlu0 %1724
    %1726 = vrot.lane.b32.xlu0 %v1549, 32
    %v1727 = vpop.permute.xlu0 %1726
    %1733 = vrot.lane.b32.xlu0 %v1353, 48
    %v1734 = vpop.permute.xlu0 %1733
    %1735 = vrot.lane.b32.xlu0 %v1554, 48
    %v1736 = vpop.permute.xlu0 %1735
    %1737 = vrot.lane.b32.xlu0 %v1558, 48
    %v1738 = vpop.permute.xlu0 %1737
    %1739 = vrot.lane.b32.xlu0 %v1562, 48
    %v1740 = vpop.permute.xlu0 %1739
    %1749 = vrot.lane.b32.xlu0 %v1358, 64
    %v1750 = vpop.permute.xlu0 %1749
    %1751 = vrot.lane.b32.xlu0 %v1359, 64
    %v1752 = vpop.permute.xlu0 %1751
    %1753 = vrot.lane.b32.xlu0 %v1360, 64
    %v1754 = vpop.permute.xlu0 %1753
    %1755 = vrot.lane.b32.xlu0 %v1361, 64
    %v1756 = vpop.permute.xlu0 %1755
    %1765 = vrot.lane.b32.xlu0 %v1362, 80
    %v1766 = vpop.permute.xlu0 %1765
    %1767 = vrot.lane.b32.xlu0 %v1363, 80
    %v1768 = vpop.permute.xlu0 %1767
    %1769 = vrot.lane.b32.xlu0 %v1364, 80
    %v1770 = vpop.permute.xlu0 %1769
    %1771 = vrot.lane.b32.xlu0 %v1365, 80
    %v1772 = vpop.permute.xlu0 %1771
    %1777 = vrot.lane.b32.xlu0 %v1565, 96
    %v1778 = vpop.permute.xlu0 %1777
    %1779 = vrot.lane.b32.xlu0 %v1567, 96
    %v1780 = vpop.permute.xlu0 %1779
    %1781 = vrot.lane.b32.xlu0 %v1569, 96
    %v1782 = vpop.permute.xlu0 %1781
    %1783 = vrot.lane.b32.xlu0 %v1352, 96
    %v1784 = vpop.permute.xlu0 %1783
    %1789 = vrot.lane.b32.xlu0 %v1366, 112
    %v1790 = vpop.permute.xlu0 %1789
    %1791 = vrot.lane.b32.xlu0 %v1574, 112
    %v1792 = vpop.permute.xlu0 %1791
    %1793 = vrot.lane.b32.xlu0 %v1578, 112
    %v1794 = vpop.permute.xlu0 %1793
    %1795 = vrot.lane.b32.xlu0 %v1582, 112
    %v1796 = vpop.permute.xlu0 %1795
    %vm1801 = vcmask 130048
    %v1802 = vsel %vm1801, %v1306, %v1620
    %v1803 = vsel %vm1801, %v1439, %v1622
    %v1804 = vsel %vm1801, %v1445, %v1624
    %v1805 = vsel %vm1801, %v1451, %v1626
    %vm1806 = vcmask 261120
    %v1807 = vsel %vm1806, %v1802, %v1632
    %v1808 = vsel %vm1806, %v1803, %v1634
    %v1809 = vsel %vm1806, %v1804, %v1636
    %v1810 = vsel %vm1806, %v1805, %v1638
    %vm1811 = vcmask 392192
    %v1812 = vsel %vm1811, %v1807, %v1644
    %v1813 = vsel %vm1811, %v1808, %v1646
    %v1814 = vsel %vm1811, %v1809, %v1648
    %v1815 = vsel %vm1811, %v1810, %v1650
    %vm1816 = vcmask 523264
    %v1817 = vsel %vm1816, %v1812, %v1656
    %v1818 = vsel %vm1816, %v1813, %v1658
    %v1819 = vsel %vm1816, %v1814, %v1660
    %v1820 = vsel %vm1816, %v1815, %v1662
    %vm1821 = vcmask 654336
    %v1822 = vsel %vm1821, %v1817, %v1668
    %v1823 = vsel %vm1821, %v1818, %v1670
    %v1824 = vsel %vm1821, %v1819, %v1672
    %v1825 = vsel %vm1821, %v1820, %v1674
    %vm1826 = vcmask 785408
    %v1827 = vsel %vm1826, %v1822, %v1681
    %v1828 = vsel %vm1826, %v1823, %v1683
    %v1829 = vsel %vm1826, %v1824, %v1685
    %v1830 = vsel %vm1826, %v1825, %v1687
    %vm1831 = vcmask 916480
    %v1832 = vsel %vm1831, %v1827, %v1697
    %v1833 = vsel %vm1831, %v1828, %v1699
    %v1834 = vsel %vm1831, %v1829, %v1701
    %v1835 = vsel %vm1831, %v1830, %v1703
    %v1836 = vsel %vm1801, %v1344, %v1709
    %v1837 = vsel %vm1801, %v1345, %v1711
    %v1838 = vsel %vm1801, %v1346, %v1713
    %v1839 = vsel %vm1801, %v1347, %v1715
    %v1840 = vsel %vm1806, %v1836, %v1721
    %v1841 = vsel %vm1806, %v1837, %v1723
    %v1842 = vsel %vm1806, %v1838, %v1725
    %v1843 = vsel %vm1806, %v1839, %v1727
    %v1844 = vsel %vm1811, %v1840, %v1734
    %v1845 = vsel %vm1811, %v1841, %v1736
    %v1846 = vsel %vm1811, %v1842, %v1738
    %v1847 = vsel %vm1811, %v1843, %v1740
    %v1848 = vsel %vm1816, %v1844, %v1750
    %v1849 = vsel %vm1816, %v1845, %v1752
    %v1850 = vsel %vm1816, %v1846, %v1754
    %v1851 = vsel %vm1816, %v1847, %v1756
    %v1852 = vsel %vm1821, %v1848, %v1766
    %v1853 = vsel %vm1821, %v1849, %v1768
    %v1854 = vsel %vm1821, %v1850, %v1770
    %v1855 = vsel %vm1821, %v1851, %v1772
    %v1856 = vsel %vm1826, %v1852, %v1778
    %v1857 = vsel %vm1826, %v1853, %v1780
    %v1858 = vsel %vm1826, %v1854, %v1782
    %v1859 = vsel %vm1826, %v1855, %v1784
    %v1860 = vsel %vm1831, %v1856, %v1790
    %v1861 = vsel %vm1831, %v1857, %v1792
    %v1862 = vsel %vm1831, %v1858, %v1794
    %v1863 = vsel %vm1831, %v1859, %v1796
    %1868 = vrot.lane.b32.xlu0 %v1376, 16
    %v1869 = vpop.permute.xlu0 %1868
    %1870 = vrot.lane.b32.xlu0 %v1377, 16
    %v1871 = vpop.permute.xlu0 %1870
    %1872 = vrot.lane.b32.xlu0 %v1378, 16
    %v1873 = vpop.permute.xlu0 %1872
    %1874 = vrot.lane.b32.xlu0 %v1379, 16
    %v1875 = vpop.permute.xlu0 %1874
    %1884 = vrot.lane.b32.xlu0 %v1380, 32
    %v1885 = vpop.permute.xlu0 %1884
    %1886 = vrot.lane.b32.xlu0 %v1381, 32
    %v1887 = vpop.permute.xlu0 %1886
    %1888 = vrot.lane.b32.xlu0 %v1382, 32
    %v1889 = vpop.permute.xlu0 %1888
    %1890 = vrot.lane.b32.xlu0 %v1383, 32
    %v1891 = vpop.permute.xlu0 %1890
    %1896 = vrot.lane.b32.xlu0 %v1601, 48
    %v1897 = vpop.permute.xlu0 %1896
    %1898 = vrot.lane.b32.xlu0 %v1603, 48
    %v1899 = vpop.permute.xlu0 %1898
    %1900 = vrot.lane.b32.xlu0 %v1605, 48
    %v1901 = vpop.permute.xlu0 %1900
    %1902 = vrot.lane.b32.xlu0 %v1370, 48
    %v1903 = vpop.permute.xlu0 %1902
    %1908 = vrot.lane.b32.xlu0 %v1439, 64
    %v1909 = vpop.permute.xlu0 %1908
    %1910 = vrot.lane.b32.xlu0 %v1445, 64
    %v1911 = vpop.permute.xlu0 %1910
    %1912 = vrot.lane.b32.xlu0 %v1451, 64
    %v1913 = vpop.permute.xlu0 %1912
    %1914 = vrot.lane.b32.xlu0 %v1311, 64
    %v1915 = vpop.permute.xlu0 %1914
    %1920 = vrot.lane.b32.xlu0 %v1461, 80
    %v1921 = vpop.permute.xlu0 %1920
    %1922 = vrot.lane.b32.xlu0 %v1465, 80
    %v1923 = vpop.permute.xlu0 %1922
    %1924 = vrot.lane.b32.xlu0 %v1316, 80
    %v1925 = vpop.permute.xlu0 %1924
    %1926 = vrot.lane.b32.xlu0 %v1609, 80
    %v1927 = vpop.permute.xlu0 %1926
    %1932 = vrot.lane.b32.xlu0 %v1473, 96
    %v1933 = vpop.permute.xlu0 %1932
    %1934 = vrot.lane.b32.xlu0 %v1476, 96
    %v1935 = vpop.permute.xlu0 %1934
    %1936 = vrot.lane.b32.xlu0 %v1479, 96
    %v1937 = vpop.permute.xlu0 %1936
    %1938 = vrot.lane.b32.xlu0 %v1610, 96
    %v1939 = vpop.permute.xlu0 %1938
    %1944 = vrot.lane.b32.xlu0 %v1487, 112
    %v1945 = vpop.permute.xlu0 %1944
    %1946 = vrot.lane.b32.xlu0 %v1490, 112
    %v1947 = vpop.permute.xlu0 %1946
    %1948 = vrot.lane.b32.xlu0 %v1493, 112
    %v1949 = vpop.permute.xlu0 %1948
    %1950 = vrot.lane.b32.xlu0 %v1611, 112
    %v1951 = vpop.permute.xlu0 %1950
    %v1956 = vsel %vm1801, %v1371, %v1869
    %v1957 = vsel %vm1801, %v1587, %v1871
    %v1958 = vsel %vm1801, %v1592, %v1873
    %v1959 = vsel %vm1801, %v1597, %v1875
    %v1960 = vsel %vm1806, %v1956, %v1885
    %v1961 = vsel %vm1806, %v1957, %v1887
    %v1962 = vsel %vm1806, %v1958, %v1889
    %v1963 = vsel %vm1806, %v1959, %v1891
    %v1964 = vsel %vm1811, %v1960, %v1897
    %v1965 = vsel %vm1811, %v1961, %v1899
    %v1966 = vsel %vm1811, %v1962, %v1901
    %v1967 = vsel %vm1811, %v1963, %v1903
    %v1968 = vsel %vm1816, %v1964, %v1909
    %v1969 = vsel %vm1816, %v1965, %v1911
    %v1970 = vsel %vm1816, %v1966, %v1913
    %v1971 = vsel %vm1816, %v1967, %v1915
    %v1972 = vsel %vm1821, %v1968, %v1921
    %v1973 = vsel %vm1821, %v1969, %v1923
    %v1974 = vsel %vm1821, %v1970, %v1925
    %v1975 = vsel %vm1821, %v1971, %v1927
    %v1976 = vsel %vm1826, %v1972, %v1933
    %v1977 = vsel %vm1826, %v1973, %v1935
    %v1978 = vsel %vm1826, %v1974, %v1937
    %v1979 = vsel %vm1826, %v1975, %v1939
    %v1980 = vsel %vm1831, %v1976, %v1945
    %v1981 = vsel %vm1831, %v1977, %v1947
    %v1982 = vsel %vm1831, %v1978, %v1949
    %v1983 = vsel %vm1831, %v1979, %v1951
    %v1984 = vpack.c.bf16 %v1833, %v1832
    %v1985 = vpack.c.bf16 %v1861, %v1860
    %v1986 = vpack.c.bf16 %v1981, %v1980
    %v1987 = vpack.c.bf16 %v1500, %v1498
    %v1988 = vpack.c.bf16 %v1835, %v1834
    %v1989 = vpack.c.bf16 %v1863, %v1862
    %v1990 = vpack.c.bf16 %v1983, %v1982
    %v1991 = vpack.c.bf16 %v1616, %v1310
    %v2042 = vunpack.c.l.b16 %v1384
    %v2043 = vunpack.c.l.b16 %v1385
    %v2044 = vunpack.c.l.b16 %v1386
    %v2045 = vunpack.c.l.b16 %v1387
    %v2046 = vunpack.c.l.b16 %v1388
    %v2047 = vunpack.c.l.b16 %v1389
    %v2048 = vunpack.c.l.b16 %v1390
    %v2049 = vunpack.c.l.b16 %v1391
    %v2050 = vunpack.c.l.b16 %v1392
    %v2051 = vunpack.c.l.b16 %v1393
    %v2052 = vunpack.c.l.b16 %v1394
    %v2053 = vunpack.c.l.b16 %v1395
    %v2054 = vunpack.c.l.b16 %v1396
    %v2055 = vunpack.c.l.b16 %v1397
    %v2056 = vunpack.c.l.b16 %v1398
    %v2057 = vunpack.c.l.b16 %v1399
    %v2058 = vunpack.c.l.b16 %v1400
    %v2059 = vunpack.c.l.b16 %v1401
    %v2060 = vunpack.c.l.b16 %v1402
    %v2061 = vunpack.c.l.b16 %v1403
    %v2062 = vunpack.c.l.b16 %v1404
    %v2063 = vunpack.c.l.b16 %v1405
    %v2064 = vunpack.c.l.b16 %v1406
    %v2065 = vunpack.c.l.b16 %v1407
    %v2066 = vunpack.c.l.b16 %v1408
    %v2067 = vunpack.c.l.b16 %v1409
    %v2068 = vunpack.c.l.b16 %v1410
    %v2069 = vunpack.c.l.b16 %v1411
    %v2070 = vunpack.c.l.b16 %v1412
    %v2071 = vunpack.c.l.b16 %v1413
    %v2072 = vunpack.c.l.b16 %v1414
    %v2073 = vunpack.c.l.b16 %v1415
    %v2074 = vunpack.c.l.b16 %v1416
    %v2075 = vunpack.c.l.b16 %v1417
    %v2076 = vunpack.c.l.b16 %v1418
    %v2077 = vunpack.c.l.b16 %v1419
    %v2078 = vunpack.c.l.b16 %v1420
    %v2079 = vunpack.c.l.b16 %v1421
    %v2080 = vunpack.c.l.b16 %v1422
    %v2081 = vunpack.c.l.b16 %v1423
    %v2082 = vunpack.c.l.b16 %v1424
    %v2083 = vunpack.c.l.b16 %v1425
    %v2084 = vunpack.c.l.b16 %v1426
    %v2085 = vunpack.c.l.b16 %v1427
    %v2086 = vunpack.c.l.b16 %v1428
    %v2087 = vunpack.c.l.b16 %v1429
    %v2088 = vunpack.c.l.b16 %v1430
    %v2089 = vunpack.c.l.b16 %v1431
    %v2090 = vunpack.c.l.b16 %v1432
    %v2091 = vunpack.c.l.b16 %v1433
    %v2092 = vpack.c.b16 %v2043, %v2042
    %v2093 = vpack.c.b16 %v2045, %v2044
    %v2094 = vpack.c.b16 %v2047, %v2046
    %v2095 = vpack.c.b16 %v2049, %v2048
    %v2096 = vpack.c.b16 %v2051, %v2050
    %v2097 = vpack.c.b16 %v2053, %v2052
    %v2098 = vpack.c.b16 %v2055, %v2054
    %v2099 = vpack.c.b16 %v2057, %v2056
    %v2100 = vpack.c.b16 %v2059, %v2058
    %v2101 = vpack.c.b16 %v2061, %v2060
    %v2102 = vpack.c.b16 %v2063, %v2062
    %v2103 = vpack.c.b16 %v2065, %v2064
    %v2104 = vpack.c.b16 %v2067, %v2066
    %v2105 = vpack.c.b16 %v2069, %v2068
    %v2106 = vpack.c.b16 %v2071, %v2070
    %v2107 = vpack.c.b16 %v2073, %v2072
    %v2108 = vpack.c.b16 %v2075, %v2074
    %v2109 = vpack.c.b16 %v2077, %v2076
    %v2110 = vpack.c.b16 %v2079, %v2078
    %v2111 = vpack.c.b16 %v2081, %v2080
    %v2112 = vpack.c.b16 %v2083, %v2082
    %v2113 = vpack.c.b16 %v2085, %v2084
    %v2114 = vpack.c.b16 %v2087, %v2086
    %v2115 = vpack.c.b16 %v2089, %v2088
    %v2116 = vpack.c.b16 %v2091, %v2090
    %v2143 = vsel %vm1801, %v1987, 0
    %v2146 = vsel %vm1801, %v1991, 0
    %2148 = vmatprep.subr.bf16.mxu0 0
    %2149 = vmatpush1.bf16.msra.mxu0 %v2099
    %2150 = vmatprep.subr.bf16.mxu0 0
    %2151 = vmatpush1.bf16.msra.mxu0 %v2098
    %2152 = vmatprep.subr.bf16.mxu0 0
    %2153 = vmatpush1.bf16.msra.mxu0 %v2097
    %2154 = vmatprep.subr.bf16.mxu0 0
    %2155 = vmatpush1.bf16.msra.mxu0 %v2096
    %2156 = vmatprep.subr.bf16.mxu0 0
    %2157 = vmatpush1.bf16.msra.mxu0 %v2095
    %2158 = vmatprep.subr.bf16.mxu0 0
    %2159 = vmatpush1.bf16.msra.mxu0 %v2094
    %2160 = vmatprep.subr.bf16.mxu0 0
    %2161 = vmatpush1.bf16.msra.mxu0 %v2093
    %2162 = vmatprep.subr.bf16.mxu0 0
    %2163 = vmatpush1.bf16.msra.mxu0 %v2092
    %2164 = vmatprep.subr.bf16.mxu0 0
    %2165 = vmatpush2.bf16.msra.mxu0 %v2107
    %2166 = vmatprep.subr.bf16.mxu0 0
    %2167 = vmatpush2.bf16.msra.mxu0 %v2106
    %2168 = vmatprep.subr.bf16.mxu0 0
    %2169 = vmatpush2.bf16.msra.mxu0 %v2105
    %2170 = vmatprep.subr.bf16.mxu0 0
    %2171 = vmatpush2.bf16.msra.mxu0 %v2104
    %2172 = vmatprep.subr.bf16.mxu0 0
    %2173 = vmatpush2.bf16.msra.mxu0 %v2103
    %2174 = vmatprep.subr.bf16.mxu0 0
    %2175 = vmatpush2.bf16.msra.mxu0 %v2102
    %2176 = vmatprep.subr.bf16.mxu0 0
    %2177 = vmatpush2.bf16.msra.mxu0 %v2101
    %2178 = vmatprep.subr.bf16.mxu0 0
    %2179 = vmatpush2.bf16.msra.mxu0 %v2100
    %2180 = vmatprep.mubr.bf16.mxu0 %v1985
    %2181 = vmatmul.mubr.bf16.gmra.mxu0 %v1984
    %v2182 = vpop.f32.mrf.mxu0
    %v2183 = vadd.f32 0.0, %v2182
    %v2184 = vpop.f32.mrf.mxu0
    %v2185 = vpop.f32.mrf.mxu0
    %v2186 = vadd.f32 0.0, %v2185
    %v2187 = vpop.f32.mrf.mxu0
    %2188 = vmatprep.mubr.bf16.mxu0 %v1989
    %2189 = vmatmul.mubr.bf16.gmra.mxu0 %v1988
    %v2190 = vpop.f32.mrf.mxu0
    %v2191 = vadd.f32 0.0, %v2190
    %v2192 = vpop.f32.mrf.mxu0
    %v2193 = vpop.f32.mrf.mxu0
    %v2194 = vadd.f32 0.0, %v2193
    %v2195 = vpop.f32.mrf.mxu0
    %2196 = vdwg.mxu0
    %2197 = vmatprep.subr.bf16.mxu0 0
    %2198 = vmatpush1.bf16.msra.mxu0 %v2115
    %2199 = vmatprep.subr.bf16.mxu0 0
    %2200 = vmatpush1.bf16.msra.mxu0 %v2114
    %2201 = vmatprep.subr.bf16.mxu0 0
    %2202 = vmatpush1.bf16.msra.mxu0 %v2113
    %2203 = vmatprep.subr.bf16.mxu0 0
    %2204 = vmatpush1.bf16.msra.mxu0 %v2112
    %2205 = vmatprep.subr.bf16.mxu0 0
    %2206 = vmatpush1.bf16.msra.mxu0 %v2111
    %2207 = vmatprep.subr.bf16.mxu0 0
    %2208 = vmatpush1.bf16.msra.mxu0 %v2110
    %2209 = vmatprep.subr.bf16.mxu0 0
    %2210 = vmatpush1.bf16.msra.mxu0 %v2109
    %2211 = vmatprep.subr.bf16.mxu0 0
    %2212 = vmatpush1.bf16.msra.mxu0 %v2108
    %2213 = vmatprep.subr.bf16.mxu0 0
    %2214 = vmatpush2.bf16.msra.mxu0 0
    %2215 = vmatprep.subr.bf16.mxu0 0
    %2216 = vmatpush2.bf16.msra.mxu0 0
    %2217 = vmatprep.subr.bf16.mxu0 0
    %2218 = vmatpush2.bf16.msra.mxu0 0
    %2219 = vmatprep.subr.bf16.mxu0 0
    %2220 = vmatpush2.bf16.msra.mxu0 0
    %2221 = vmatprep.subr.bf16.mxu0 0
    %2222 = vmatpush2.bf16.msra.mxu0 0
    %2223 = vmatprep.subr.bf16.mxu0 0
    %2224 = vmatpush2.bf16.msra.mxu0 0
    %2225 = vmatprep.subr.bf16.mxu0 0
    %2226 = vmatpush2.bf16.msra.mxu0 0
    %2227 = vmatprep.subr.bf16.mxu0 0
    %2228 = vmatpush2.bf16.msra.mxu0 %v2116
    %2229 = vmatprep.mubr.bf16.mxu0 %v2143
    %2230 = vmatmul.mubr.bf16.gmra.mxu0 %v1986
    %v2231 = vpop.f32.mrf.mxu0
    %v2232 = vadd.f32 %v2183, %v2231
    %v2233 = vpop.f32.mrf.mxu0
    %v2234 = vpop.f32.mrf.mxu0
    %v2235 = vadd.f32 %v2186, %v2234
    %v2236 = vpop.f32.mrf.mxu0
    %2237 = vmatprep.mubr.bf16.mxu0 %v2146
    %2238 = vmatmul.mubr.bf16.gmra.mxu0 %v1990
    %v2239 = vpop.f32.mrf.mxu0
    %v2240 = vadd.f32 %v2191, %v2239
    %v2241 = vpop.f32.mrf.mxu0
    %v2242 = vpop.f32.mrf.mxu0
    %v2243 = vadd.f32 %v2194, %v2242
    %v2244 = vpop.f32.mrf.mxu0
    %2245 = vdwg.mxu0
    %v2247 = vrot.slane %v1319, 6
    %v2248 = vrot.slane %v1320, 6
    %v2249 = vsel %vm1448, %v2247, %v2248
    %v2252 = vrot.slane %v1321, 2
    %v2253 = vrot.slane %v1322, 2
    %v2254 = vsel %vm1436, %v2252, %v2253
    %v2256 = vsel %vm1436, %v1470, %v2247
    %v2257 = vsel %vm1442, %v2249, %v1320
    %v2258 = vsel %vm1448, %v1321, %v2254
    %v2260 = vrot.slane %v1324, 6
    %v2261 = vrot.slane %v1325, 6
    %v2262 = vsel %vm1448, %v2260, %v2261
    %v2265 = vrot.slane %v1326, 2
    %v2266 = vrot.slane %v1327, 2
    %v2267 = vsel %vm1436, %v2265, %v2266
    %v2269 = vsel %vm1436, %v1484, %v2260
    %v2270 = vsel %vm1442, %v2262, %v1325
    %v2271 = vsel %vm1448, %v1326, %v2267
    %v2273 = vrot.slane %v1307, 6
    %v2274 = vsel %vm1448, %v2273, %v1499
    %v2277 = vrot.slane %v1309, 2
    %v2278 = vsel %vm1436, %v1438, %v2277
    %v2282 = vsel %vm1436, %v1495, %v2273
    %v2283 = vsel %vm1442, %v2274, %v2278
    %v2284 = vsel %vm1448, %v2277, %v1450
    %v2285 = vrot.slane %v1312, 4
    %v2286 = vsel %vm1442, %v2285, %v1459
    %v2288 = vrot.slane %v1315, 4
    %v2290 = vsel %vm1436, %v2286, %v1313
    %v2291 = vsel %vm1442, %v1314, %v2288
    %v2292 = vsel %vm1448, %v2288, %v1316
    %v2293 = vrot.slane %v1318, 6
    %v2294 = vsel %vm1448, %v2293, %v2247
    %v2296 = vrot.slane %v1320, 2
    %v2297 = vsel %vm1436, %v2296, %v2252
    %v2301 = vsel %vm1436, %v2294, %v1319
    %v2302 = vsel %vm1442, %v1320, %v2297
    %v2303 = vsel %vm1448, %v2252, %v1479
    %v2304 = vrot.slane %v1341, 2
    %v2306 = vrot.slane %v1342, 4
    %v2308 = vrot.slane %v1343, 6
    %v2310 = vsel %vm1436, %v1340, %v2304
    %v2311 = vsel %vm1442, %v2304, %v2306
    %v2312 = vsel %vm1448, %v2306, %v2308
    %v2314 = vrot.slane %v1345, 2
    %v2317 = vrot.slane %v1346, 4
    %v2320 = vrot.slane %v1347, 6
    %v2322 = vsel %vm1436, %v1344, %v2314
    %v2323 = vsel %vm1442, %v2314, %v2317
    %v2324 = vsel %vm1448, %v2317, %v2320
    %v2326 = vrot.slane %v1330, 2
    %v2328 = vrot.slane %v1331, 6
    %v2331 = vsel %vm1436, %v1530, %v2326
    %v2332 = vsel %vm1442, %v2326, %v2328
    %v2333 = vsel %vm1448, %v2328, %v1514
    %v2334 = vrot.slane %v1336, 4
    %v2337 = vsel %vm1436, %v1335, %v2334
    %v2338 = vsel %vm1442, %v2334, %v1337
    %v2339 = vsel %vm1448, %v1338, %v1528
    %v2340 = vrot.slane %v1340, 2
    %v2342 = vrot.slane %v1341, 4
    %v2344 = vrot.slane %v1342, 6
    %v2346 = vsel %vm1436, %v2340, %v2342
    %v2347 = vsel %vm1442, %v2342, %v2344
    %v2348 = vsel %vm1448, %v2344, %v1343
    %v2349 = vrot.slane %v1359, 2
    %v2351 = vrot.slane %v1360, 4
    %v2353 = vrot.slane %v1361, 6
    %v2355 = vsel %vm1436, %v1358, %v2349
    %v2356 = vsel %vm1442, %v2349, %v2351
    %v2357 = vsel %vm1448, %v2351, %v2353
    %v2358 = vrot.slane %v1363, 2
    %v2360 = vrot.slane %v1364, 4
    %v2362 = vrot.slane %v1365, 6
    %v2364 = vsel %vm1436, %v1362, %v2358
    %v2365 = vsel %vm1442, %v2358, %v2360
    %v2366 = vsel %vm1448, %v2360, %v2362
    %v2368 = vrot.slane %v1349, 6
    %v2369 = vsel %vm1448, %v2368, %v1568
    %v2372 = vrot.slane %v1351, 2
    %v2373 = vsel %vm1436, %v1540, %v2372
    %v2377 = vsel %vm1436, %v1564, %v2368
    %v2378 = vsel %vm1442, %v2369, %v2373
    %v2379 = vsel %vm1448, %v2372, %v1548
    %v2380 = vrot.slane %v1353, 2
    %v2382 = vrot.slane %v1354, 6
    %v2383 = vrot.slane %v1355, 6
    %v2384 = vsel %vm1448, %v2382, %v2383
    %v2387 = vrot.slane %v1356, 2
    %v2388 = vsel %vm1436, %v1553, %v2387
    %v2392 = vsel %vm1436, %v2380, %v2382
    %v2393 = vsel %vm1442, %v2384, %v2388
    %v2394 = vsel %vm1448, %v2387, %v1561
    %v2395 = vrot.slane %v1358, 2
    %v2397 = vrot.slane %v1359, 4
    %v2399 = vrot.slane %v1360, 6
    %v2401 = vsel %vm1436, %v2395, %v2397
    %v2402 = vsel %vm1442, %v2397, %v2399
    %v2403 = vsel %vm1448, %v2399, %v1361
    %v2404 = vrot.slane %v1377, 2
    %v2406 = vrot.slane %v1378, 4
    %v2408 = vrot.slane %v1379, 6
    %v2410 = vsel %vm1436, %v1376, %v2404
    %v2411 = vsel %vm1442, %v2404, %v2406
    %v2412 = vsel %vm1448, %v2406, %v2408
    %v2413 = vrot.slane %v1381, 2
    %v2415 = vrot.slane %v1382, 4
    %v2417 = vrot.slane %v1383, 6
    %v2419 = vsel %vm1436, %v1380, %v2413
    %v2420 = vsel %vm1442, %v2413, %v2415
    %v2421 = vsel %vm1448, %v2415, %v2417
    %v2423 = vrot.slane %v1367, 6
    %v2424 = vsel %vm1448, %v2423, %v1604
    %v2427 = vrot.slane %v1369, 2
    %v2428 = vsel %vm1436, %v1573, %v2427
    %v2432 = vsel %vm1436, %v1600, %v2423
    %v2433 = vsel %vm1442, %v2424, %v2428
    %v2434 = vsel %vm1448, %v2427, %v1581
    %v2436 = vrot.slane %v1371, 2
    %v2438 = vrot.slane %v1372, 6
    %v2439 = vrot.slane %v1373, 6
    %v2440 = vsel %vm1448, %v2438, %v2439
    %v2443 = vrot.slane %v1374, 2
    %v2444 = vsel %vm1436, %v1586, %v2443
    %v2448 = vsel %vm1436, %v2436, %v2438
    %v2449 = vsel %vm1442, %v2440, %v2444
    %v2450 = vsel %vm1448, %v2443, %v1596
    %v2451 = vrot.slane %v1376, 2
    %v2453 = vrot.slane %v1377, 4
    %v2455 = vrot.slane %v1378, 6
    %v2457 = vsel %vm1436, %v2451, %v2453
    %v2458 = vsel %vm1442, %v2453, %v2455
    %v2459 = vsel %vm1448, %v2455, %v1379
    %v2461 = vrot.slane %v1321, 6
    %v2462 = vsel %vm1448, %v2248, %v2461
    %v2465 = vrot.slane %v1323, 2
    %v2466 = vsel %vm1436, %v2253, %v2465
    %v2468 = vsel %vm1436, %v1473, %v2248
    %v2469 = vsel %vm1442, %v2462, %v1321
    %v2470 = vsel %vm1448, %v1322, %v2466
    %v2472 = vrot.slane %v1326, 6
    %v2473 = vsel %vm1448, %v2261, %v2472
    %v2476 = vrot.slane %v1328, 2
    %v2477 = vsel %vm1436, %v2266, %v2476
    %v2479 = vsel %vm1436, %v1487, %v2261
    %v2480 = vsel %vm1442, %v2473, %v1326
    %v2481 = vsel %vm1448, %v1327, %v2477
    %v2482 = vrot.slane %v1310, 4
    %v2484 = vsel %vm1436, %v1498, %v1308
    %v2485 = vsel %vm1442, %v1309, %v2482
    %v2486 = vsel %vm1448, %v2482, %v1311
    %v2487 = vrot.slane %v1313, 6
    %v2488 = vsel %vm1448, %v2487, %v1463
    %v2490 = vrot.slane %v1315, 2
    %v2492 = vrot.slane %v1316, 6
    %v2495 = vsel %vm1436, %v2488, %v2490
    %v2496 = vsel %vm1442, %v2490, %v2492
    %v2497 = vsel %vm1448, %v2492, %v1609
    %v2500 = vsel %vm1436, %v2249, %v1320
    %v2501 = vsel %vm1442, %v1321, %v2254
    %v2502 = vsel %vm1448, %v2253, %v1610
    %2506 = vrot.lane.b32.xlu0 %v2269, 16
    %v2507 = vpop.permute.xlu0 %2506
    %2508 = vrot.lane.b32.xlu0 %v2270, 16
    %v2509 = vpop.permute.xlu0 %2508
    %2510 = vrot.lane.b32.xlu0 %v2271, 16
    %v2511 = vpop.permute.xlu0 %2510
    %2518 = vrot.lane.b32.xlu0 %v2282, 32
    %v2519 = vpop.permute.xlu0 %2518
    %2520 = vrot.lane.b32.xlu0 %v2283, 32
    %v2521 = vpop.permute.xlu0 %2520
    %2522 = vrot.lane.b32.xlu0 %v2284, 32
    %v2523 = vpop.permute.xlu0 %2522
    %2530 = vrot.lane.b32.xlu0 %v2290, 48
    %v2531 = vpop.permute.xlu0 %2530
    %2532 = vrot.lane.b32.xlu0 %v2291, 48
    %v2533 = vpop.permute.xlu0 %2532
    %2534 = vrot.lane.b32.xlu0 %v2292, 48
    %v2535 = vpop.permute.xlu0 %2534
    %2542 = vrot.lane.b32.xlu0 %v2301, 64
    %v2543 = vpop.permute.xlu0 %2542
    %2544 = vrot.lane.b32.xlu0 %v2302, 64
    %v2545 = vpop.permute.xlu0 %2544
    %2546 = vrot.lane.b32.xlu0 %v2303, 64
    %v2547 = vpop.permute.xlu0 %2546
    %2554 = vrot.lane.b32.xlu0 %v2310, 80
    %v2555 = vpop.permute.xlu0 %2554
    %2556 = vrot.lane.b32.xlu0 %v2311, 80
    %v2557 = vpop.permute.xlu0 %2556
    %2558 = vrot.lane.b32.xlu0 %v2312, 80
    %v2559 = vpop.permute.xlu0 %2558
    %2566 = vrot.lane.b32.xlu0 %v2322, 96
    %v2567 = vpop.permute.xlu0 %2566
    %2568 = vrot.lane.b32.xlu0 %v2323, 96
    %v2569 = vpop.permute.xlu0 %2568
    %2570 = vrot.lane.b32.xlu0 %v2324, 96
    %v2571 = vpop.permute.xlu0 %2570
    %2578 = vrot.lane.b32.xlu0 %v2331, 112
    %v2579 = vpop.permute.xlu0 %2578
    %2580 = vrot.lane.b32.xlu0 %v2332, 112
    %v2581 = vpop.permute.xlu0 %2580
    %2582 = vrot.lane.b32.xlu0 %v2333, 112
    %v2583 = vpop.permute.xlu0 %2582
    %2590 = vrot.lane.b32.xlu0 %v2346, 16
    %v2591 = vpop.permute.xlu0 %2590
    %2592 = vrot.lane.b32.xlu0 %v2347, 16
    %v2593 = vpop.permute.xlu0 %2592
    %2594 = vrot.lane.b32.xlu0 %v2348, 16
    %v2595 = vpop.permute.xlu0 %2594
    %2602 = vrot.lane.b32.xlu0 %v2355, 32
    %v2603 = vpop.permute.xlu0 %2602
    %2604 = vrot.lane.b32.xlu0 %v2356, 32
    %v2605 = vpop.permute.xlu0 %2604
    %2606 = vrot.lane.b32.xlu0 %v2357, 32
    %v2607 = vpop.permute.xlu0 %2606
    %2614 = vrot.lane.b32.xlu0 %v2364, 48
    %v2615 = vpop.permute.xlu0 %2614
    %2616 = vrot.lane.b32.xlu0 %v2365, 48
    %v2617 = vpop.permute.xlu0 %2616
    %2618 = vrot.lane.b32.xlu0 %v2366, 48
    %v2619 = vpop.permute.xlu0 %2618
    %2626 = vrot.lane.b32.xlu0 %v2377, 64
    %v2627 = vpop.permute.xlu0 %2626
    %2628 = vrot.lane.b32.xlu0 %v2378, 64
    %v2629 = vpop.permute.xlu0 %2628
    %2630 = vrot.lane.b32.xlu0 %v2379, 64
    %v2631 = vpop.permute.xlu0 %2630
    %2638 = vrot.lane.b32.xlu0 %v2392, 80
    %v2639 = vpop.permute.xlu0 %2638
    %2640 = vrot.lane.b32.xlu0 %v2393, 80
    %v2641 = vpop.permute.xlu0 %2640
    %2642 = vrot.lane.b32.xlu0 %v2394, 80
    %v2643 = vpop.permute.xlu0 %2642
    %2650 = vrot.lane.b32.xlu0 %v2401, 96
    %v2651 = vpop.permute.xlu0 %2650
    %2652 = vrot.lane.b32.xlu0 %v2402, 96
    %v2653 = vpop.permute.xlu0 %2652
    %2654 = vrot.lane.b32.xlu0 %v2403, 96
    %v2655 = vpop.permute.xlu0 %2654
    %2662 = vrot.lane.b32.xlu0 %v2410, 112
    %v2663 = vpop.permute.xlu0 %2662
    %2664 = vrot.lane.b32.xlu0 %v2411, 112
    %v2665 = vpop.permute.xlu0 %2664
    %2666 = vrot.lane.b32.xlu0 %v2412, 112
    %v2667 = vpop.permute.xlu0 %2666
    %v2671 = vsel %vm1801, %v2256, %v2507
    %v2672 = vsel %vm1801, %v2257, %v2509
    %v2673 = vsel %vm1801, %v2258, %v2511
    %v2674 = vsel %vm1806, %v2671, %v2519
    %v2675 = vsel %vm1806, %v2672, %v2521
    %v2676 = vsel %vm1806, %v2673, %v2523
    %v2677 = vsel %vm1811, %v2674, %v2531
    %v2678 = vsel %vm1811, %v2675, %v2533
    %v2679 = vsel %vm1811, %v2676, %v2535
    %v2680 = vsel %vm1816, %v2677, %v2543
    %v2681 = vsel %vm1816, %v2678, %v2545
    %v2682 = vsel %vm1816, %v2679, %v2547
    %v2683 = vsel %vm1821, %v2680, %v2555
    %v2684 = vsel %vm1821, %v2681, %v2557
    %v2685 = vsel %vm1821, %v2682, %v2559
    %v2686 = vsel %vm1826, %v2683, %v2567
    %v2687 = vsel %vm1826, %v2684, %v2569
    %v2688 = vsel %vm1826, %v2685, %v2571
    %v2689 = vsel %vm1831, %v2686, %v2579
    %v2690 = vsel %vm1831, %v2687, %v2581
    %v2691 = vsel %vm1831, %v2688, %v2583
    %v2692 = vsel %vm1801, %v2337, %v2591
    %v2693 = vsel %vm1801, %v2338, %v2593
    %v2694 = vsel %vm1801, %v2339, %v2595
    %v2695 = vsel %vm1806, %v2692, %v2603
    %v2696 = vsel %vm1806, %v2693, %v2605
    %v2697 = vsel %vm1806, %v2694, %v2607
    %v2698 = vsel %vm1811, %v2695, %v2615
    %v2699 = vsel %vm1811, %v2696, %v2617
    %v2700 = vsel %vm1811, %v2697, %v2619
    %v2701 = vsel %vm1816, %v2698, %v2627
    %v2702 = vsel %vm1816, %v2699, %v2629
    %v2703 = vsel %vm1816, %v2700, %v2631
    %v2704 = vsel %vm1821, %v2701, %v2639
    %v2705 = vsel %vm1821, %v2702, %v2641
    %v2706 = vsel %vm1821, %v2703, %v2643
    %v2707 = vsel %vm1826, %v2704, %v2651
    %v2708 = vsel %vm1826, %v2705, %v2653
    %v2709 = vsel %vm1826, %v2706, %v2655
    %v2710 = vsel %vm1831, %v2707, %v2663
    %v2711 = vsel %vm1831, %v2708, %v2665
    %v2712 = vsel %vm1831, %v2709, %v2667
    %2716 = vrot.lane.b32.xlu0 %v2432, 16
    %v2717 = vpop.permute.xlu0 %2716
    %2718 = vrot.lane.b32.xlu0 %v2433, 16
    %v2719 = vpop.permute.xlu0 %2718
    %2720 = vrot.lane.b32.xlu0 %v2434, 16
    %v2721 = vpop.permute.xlu0 %2720
    %2728 = vrot.lane.b32.xlu0 %v2448, 32
    %v2729 = vpop.permute.xlu0 %2728
    %2730 = vrot.lane.b32.xlu0 %v2449, 32
    %v2731 = vpop.permute.xlu0 %2730
    %2732 = vrot.lane.b32.xlu0 %v2450, 32
    %v2733 = vpop.permute.xlu0 %2732
    %2740 = vrot.lane.b32.xlu0 %v2457, 48
    %v2741 = vpop.permute.xlu0 %2740
    %2742 = vrot.lane.b32.xlu0 %v2458, 48
    %v2743 = vpop.permute.xlu0 %2742
    %2744 = vrot.lane.b32.xlu0 %v2459, 48
    %v2745 = vpop.permute.xlu0 %2744
    %2752 = vrot.lane.b32.xlu0 %v2468, 64
    %v2753 = vpop.permute.xlu0 %2752
    %2754 = vrot.lane.b32.xlu0 %v2469, 64
    %v2755 = vpop.permute.xlu0 %2754
    %2756 = vrot.lane.b32.xlu0 %v2470, 64
    %v2757 = vpop.permute.xlu0 %2756
    %2764 = vrot.lane.b32.xlu0 %v2479, 80
    %v2765 = vpop.permute.xlu0 %2764
    %2766 = vrot.lane.b32.xlu0 %v2480, 80
    %v2767 = vpop.permute.xlu0 %2766
    %2768 = vrot.lane.b32.xlu0 %v2481, 80
    %v2769 = vpop.permute.xlu0 %2768
    %2776 = vrot.lane.b32.xlu0 %v2484, 96
    %v2777 = vpop.permute.xlu0 %2776
    %2778 = vrot.lane.b32.xlu0 %v2485, 96
    %v2779 = vpop.permute.xlu0 %2778
    %2780 = vrot.lane.b32.xlu0 %v2486, 96
    %v2781 = vpop.permute.xlu0 %2780
    %2788 = vrot.lane.b32.xlu0 %v2495, 112
    %v2789 = vpop.permute.xlu0 %2788
    %2790 = vrot.lane.b32.xlu0 %v2496, 112
    %v2791 = vpop.permute.xlu0 %2790
    %2792 = vrot.lane.b32.xlu0 %v2497, 112
    %v2793 = vpop.permute.xlu0 %2792
    %v2797 = vsel %vm1801, %v2419, %v2717
    %v2798 = vsel %vm1801, %v2420, %v2719
    %v2799 = vsel %vm1801, %v2421, %v2721
    %v2800 = vsel %vm1806, %v2797, %v2729
    %v2801 = vsel %vm1806, %v2798, %v2731
    %v2802 = vsel %vm1806, %v2799, %v2733
    %v2803 = vsel %vm1811, %v2800, %v2741
    %v2804 = vsel %vm1811, %v2801, %v2743
    %v2805 = vsel %vm1811, %v2802, %v2745
    %v2806 = vsel %vm1816, %v2803, %v2753
    %v2807 = vsel %vm1816, %v2804, %v2755
    %v2808 = vsel %vm1816, %v2805, %v2757
    %v2809 = vsel %vm1821, %v2806, %v2765
    %v2810 = vsel %vm1821, %v2807, %v2767
    %v2811 = vsel %vm1821, %v2808, %v2769
    %v2812 = vsel %vm1826, %v2809, %v2777
    %v2813 = vsel %vm1826, %v2810, %v2779
    %v2814 = vsel %vm1826, %v2811, %v2781
    %v2815 = vsel %vm1831, %v2812, %v2789
    %v2816 = vsel %vm1831, %v2813, %v2791
    %v2817 = vsel %vm1831, %v2814, %v2793
    %v2818 = vpack.c.bf16 %v2690, %v2689
    %v2819 = vpack.c.bf16 %v2711, %v2710
    %v2820 = vpack.c.bf16 %v2816, %v2815
    %v2821 = vpack.c.bf16 %v2501, %v2500
    %v2822 = vpack.c.bf16 %v2691, %v2691
    %v2823 = vpack.c.bf16 %v2712, %v2712
    %v2824 = vpack.c.bf16 %v2817, %v2817
    %v2825 = vpack.c.bf16 %v2502, %v2502
    %v2827 = vsel %vm1801, %v2821, 0
    %v2830 = vsel %vm1801, %v2825, 0
    %2832 = vmatprep.subr.bf16.mxu0 0
    %2833 = vmatpush1.bf16.msra.mxu0 %v2099
    %2834 = vmatprep.subr.bf16.mxu0 0
    %2835 = vmatpush1.bf16.msra.mxu0 %v2098
    %2836 = vmatprep.subr.bf16.mxu0 0
    %2837 = vmatpush1.bf16.msra.mxu0 %v2097
    %2838 = vmatprep.subr.bf16.mxu0 0
    %2839 = vmatpush1.bf16.msra.mxu0 %v2096
    %2840 = vmatprep.subr.bf16.mxu0 0
    %2841 = vmatpush1.bf16.msra.mxu0 %v2095
    %2842 = vmatprep.subr.bf16.mxu0 0
    %2843 = vmatpush1.bf16.msra.mxu0 %v2094
    %2844 = vmatprep.subr.bf16.mxu0 0
    %2845 = vmatpush1.bf16.msra.mxu0 %v2093
    %2846 = vmatprep.subr.bf16.mxu0 0
    %2847 = vmatpush1.bf16.msra.mxu0 %v2092
    %2848 = vmatprep.subr.bf16.mxu0 0
    %2849 = vmatpush2.bf16.msra.mxu0 %v2107
    %2850 = vmatprep.subr.bf16.mxu0 0
    %2851 = vmatpush2.bf16.msra.mxu0 %v2106
    %2852 = vmatprep.subr.bf16.mxu0 0
    %2853 = vmatpush2.bf16.msra.mxu0 %v2105
    %2854 = vmatprep.subr.bf16.mxu0 0
    %2855 = vmatpush2.bf16.msra.mxu0 %v2104
    %2856 = vmatprep.subr.bf16.mxu0 0
    %2857 = vmatpush2.bf16.msra.mxu0 %v2103
    %2858 = vmatprep.subr.bf16.mxu0 0
    %2859 = vmatpush2.bf16.msra.mxu0 %v2102
    %2860 = vmatprep.subr.bf16.mxu0 0
    %2861 = vmatpush2.bf16.msra.mxu0 %v2101
    %2862 = vmatprep.subr.bf16.mxu0 0
    %2863 = vmatpush2.bf16.msra.mxu0 %v2100
    %2864 = vmatprep.mubr.bf16.mxu0 %v2819
    %2865 = vmatmul.mubr.bf16.gmra.mxu0 %v2818
    %v2866 = vpop.f32.mrf.mxu0
    %v2867 = vadd.f32 0.0, %v2866
    %v2868 = vpop.f32.mrf.mxu0
    %v2869 = vpop.f32.mrf.mxu0
    %v2870 = vadd.f32 0.0, %v2869
    %v2871 = vpop.f32.mrf.mxu0
    %2872 = vmatprep.mubr.bf16.mxu0 %v2823
    %2873 = vmatmul.mubr.bf16.gmra.mxu0 %v2822
    %v2874 = vpop.f32.mrf.mxu0
    %v2875 = vadd.f32 0.0, %v2874
    %v2876 = vpop.f32.mrf.mxu0
    %v2877 = vpop.f32.mrf.mxu0
    %v2878 = vpop.f32.mrf.mxu0
    %2879 = vdwg.mxu0
    %2880 = vmatprep.subr.bf16.mxu0 0
    %2881 = vmatpush1.bf16.msra.mxu0 %v2115
    %2882 = vmatprep.subr.bf16.mxu0 0
    %2883 = vmatpush1.bf16.msra.mxu0 %v2114
    %2884 = vmatprep.subr.bf16.mxu0 0
    %2885 = vmatpush1.bf16.msra.mxu0 %v2113
    %2886 = vmatprep.subr.bf16.mxu0 0
    %2887 = vmatpush1.bf16.msra.mxu0 %v2112
    %2888 = vmatprep.subr.bf16.mxu0 0
    %2889 = vmatpush1.bf16.msra.mxu0 %v2111
    %2890 = vmatprep.subr.bf16.mxu0 0
    %2891 = vmatpush1.bf16.msra.mxu0 %v2110
    %2892 = vmatprep.subr.bf16.mxu0 0
    %2893 = vmatpush1.bf16.msra.mxu0 %v2109
    %2894 = vmatprep.subr.bf16.mxu0 0
    %2895 = vmatpush1.bf16.msra.mxu0 %v2108
    %2896 = vmatprep.subr.bf16.mxu0 0
    %2897 = vmatpush2.bf16.msra.mxu0 0
    %2898 = vmatprep.subr.bf16.mxu0 0
    %2899 = vmatpush2.bf16.msra.mxu0 0
    %2900 = vmatprep.subr.bf16.mxu0 0
    %2901 = vmatpush2.bf16.msra.mxu0 0
    %2902 = vmatprep.subr.bf16.mxu0 0
    %2903 = vmatpush2.bf16.msra.mxu0 0
    %2904 = vmatprep.subr.bf16.mxu0 0
    %2905 = vmatpush2.bf16.msra.mxu0 0
    %2906 = vmatprep.subr.bf16.mxu0 0
    %2907 = vmatpush2.bf16.msra.mxu0 0
    %2908 = vmatprep.subr.bf16.mxu0 0
    %2909 = vmatpush2.bf16.msra.mxu0 0
    %2910 = vmatprep.subr.bf16.mxu0 0
    %2911 = vmatpush2.bf16.msra.mxu0 %v2116
    %2912 = vmatprep.mubr.bf16.mxu0 %v2827
    %2913 = vmatmul.mubr.bf16.gmra.mxu0 %v2820
    %v2914 = vpop.f32.mrf.mxu0
    %v2915 = vadd.f32 %v2867, %v2914
    %v2916 = vpop.f32.mrf.mxu0
    %v2917 = vpop.f32.mrf.mxu0
    %v2918 = vadd.f32 %v2870, %v2917
    %v2919 = vpop.f32.mrf.mxu0
    %2920 = vmatprep.mubr.bf16.mxu0 %v2830
    %2921 = vmatmul.mubr.bf16.gmra.mxu0 %v2824
    %v2922 = vpop.f32.mrf.mxu0
    %v2923 = vadd.f32 %v2875, %v2922
    %v2924 = vpop.f32.mrf.mxu0
    %v2925 = vpop.f32.mrf.mxu0
    %v2926 = vpop.f32.mrf.mxu0
    %2927 = vdwg.mxu0
    %2933 = vrot.lane.b32.xlu0 %v1353, 16
    %v2934 = vpop.permute.xlu0 %2933
    %2935 = vrot.lane.b32.xlu0 %v1554, 16
    %v2936 = vpop.permute.xlu0 %2935
    %2937 = vrot.lane.b32.xlu0 %v1558, 16
    %v2938 = vpop.permute.xlu0 %2937
    %2942 = vrot.lane.b32.xlu0 %v1358, 32
    %v2943 = vpop.permute.xlu0 %2942
    %2944 = vrot.lane.b32.xlu0 %v1359, 32
    %v2945 = vpop.permute.xlu0 %2944
    %2946 = vrot.lane.b32.xlu0 %v1360, 32
    %v2947 = vpop.permute.xlu0 %2946
    %2951 = vrot.lane.b32.xlu0 %v1362, 48
    %v2952 = vpop.permute.xlu0 %2951
    %2953 = vrot.lane.b32.xlu0 %v1363, 48
    %v2954 = vpop.permute.xlu0 %2953
    %2955 = vrot.lane.b32.xlu0 %v1364, 48
    %v2956 = vpop.permute.xlu0 %2955
    %2960 = vrot.lane.b32.xlu0 %v1565, 64
    %v2961 = vpop.permute.xlu0 %2960
    %2962 = vrot.lane.b32.xlu0 %v1567, 64
    %v2963 = vpop.permute.xlu0 %2962
    %2964 = vrot.lane.b32.xlu0 %v1569, 64
    %v2965 = vpop.permute.xlu0 %2964
    %2969 = vrot.lane.b32.xlu0 %v1366, 80
    %v2970 = vpop.permute.xlu0 %2969
    %2971 = vrot.lane.b32.xlu0 %v1574, 80
    %v2972 = vpop.permute.xlu0 %2971
    %2973 = vrot.lane.b32.xlu0 %v1578, 80
    %v2974 = vpop.permute.xlu0 %2973
    %2978 = vrot.lane.b32.xlu0 %v1371, 96
    %v2979 = vpop.permute.xlu0 %2978
    %2980 = vrot.lane.b32.xlu0 %v1587, 96
    %v2981 = vpop.permute.xlu0 %2980
    %2982 = vrot.lane.b32.xlu0 %v1592, 96
    %v2983 = vpop.permute.xlu0 %2982
    %2987 = vrot.lane.b32.xlu0 %v1376, 112
    %v2988 = vpop.permute.xlu0 %2987
    %2989 = vrot.lane.b32.xlu0 %v1377, 112
    %v2990 = vpop.permute.xlu0 %2989
    %2991 = vrot.lane.b32.xlu0 %v1378, 112
    %v2992 = vpop.permute.xlu0 %2991
    %2996 = vrot.lane.b32.xlu0 %v1601, 16
    %v2997 = vpop.permute.xlu0 %2996
    %2998 = vrot.lane.b32.xlu0 %v1603, 16
    %v2999 = vpop.permute.xlu0 %2998
    %3000 = vrot.lane.b32.xlu0 %v1605, 16
    %v3001 = vpop.permute.xlu0 %3000
    %3005 = vrot.lane.b32.xlu0 %v1439, 32
    %v3006 = vpop.permute.xlu0 %3005
    %3007 = vrot.lane.b32.xlu0 %v1445, 32
    %v3008 = vpop.permute.xlu0 %3007
    %3009 = vrot.lane.b32.xlu0 %v1451, 32
    %v3010 = vpop.permute.xlu0 %3009
    %3014 = vrot.lane.b32.xlu0 %v1461, 48
    %v3015 = vpop.permute.xlu0 %3014
    %3016 = vrot.lane.b32.xlu0 %v1465, 48
    %v3017 = vpop.permute.xlu0 %3016
    %3018 = vrot.lane.b32.xlu0 %v1316, 48
    %v3019 = vpop.permute.xlu0 %3018
    %3023 = vrot.lane.b32.xlu0 %v1473, 64
    %v3024 = vpop.permute.xlu0 %3023
    %3025 = vrot.lane.b32.xlu0 %v1476, 64
    %v3026 = vpop.permute.xlu0 %3025
    %3027 = vrot.lane.b32.xlu0 %v1479, 64
    %v3028 = vpop.permute.xlu0 %3027
    %3032 = vrot.lane.b32.xlu0 %v1487, 80
    %v3033 = vpop.permute.xlu0 %3032
    %3034 = vrot.lane.b32.xlu0 %v1490, 80
    %v3035 = vpop.permute.xlu0 %3034
    %3036 = vrot.lane.b32.xlu0 %v1493, 80
    %v3037 = vpop.permute.xlu0 %3036
    %3041 = vrot.lane.b32.xlu0 %v1498, 96
    %v3042 = vpop.permute.xlu0 %3041
    %3043 = vrot.lane.b32.xlu0 %v1500, 96
    %v3044 = vpop.permute.xlu0 %3043
    %3045 = vrot.lane.b32.xlu0 %v1310, 96
    %v3046 = vpop.permute.xlu0 %3045
    %3050 = vrot.lane.b32.xlu0 %v1509, 112
    %v3051 = vpop.permute.xlu0 %3050
    %3052 = vrot.lane.b32.xlu0 %v1331, 112
    %v3053 = vpop.permute.xlu0 %3052
    %3054 = vrot.lane.b32.xlu0 %v1514, 112
    %v3055 = vpop.permute.xlu0 %3054
    %v3059 = vsel %vm1801, %v1348, %v2934
    %v3060 = vsel %vm1801, %v1541, %v2936
    %v3061 = vsel %vm1801, %v1545, %v2938
    %v3062 = vsel %vm1806, %v3059, %v2943
    %v3063 = vsel %vm1806, %v3060, %v2945
    %v3064 = vsel %vm1806, %v3061, %v2947
    %v3065 = vsel %vm1811, %v3062, %v2952
    %v3066 = vsel %vm1811, %v3063, %v2954
    %v3067 = vsel %vm1811, %v3064, %v2956
    %v3068 = vsel %vm1816, %v3065, %v2961
    %v3069 = vsel %vm1816, %v3066, %v2963
    %v3070 = vsel %vm1816, %v3067, %v2965
    %v3071 = vsel %vm1821, %v3068, %v2970
    %v3072 = vsel %vm1821, %v3069, %v2972
    %v3073 = vsel %vm1821, %v3070, %v2974
    %v3074 = vsel %vm1826, %v3071, %v2979
    %v3075 = vsel %vm1826, %v3072, %v2981
    %v3076 = vsel %vm1826, %v3073, %v2983
    %v3077 = vsel %vm1831, %v3074, %v2988
    %v3078 = vsel %vm1831, %v3075, %v2990
    %v3079 = vsel %vm1831, %v3076, %v2992
    %v3080 = vsel %vm1801, %v1380, %v2997
    %v3081 = vsel %vm1801, %v1381, %v2999
    %v3082 = vsel %vm1801, %v1382, %v3001
    %v3083 = vsel %vm1806, %v3080, %v3006
    %v3084 = vsel %vm1806, %v3081, %v3008
    %v3085 = vsel %vm1806, %v3082, %v3010
    %v3086 = vsel %vm1811, %v3083, %v3015
    %v3087 = vsel %vm1811, %v3084, %v3017
    %v3088 = vsel %vm1811, %v3085, %v3019
    %v3089 = vsel %vm1816, %v3086, %v3024
    %v3090 = vsel %vm1816, %v3087, %v3026
    %v3091 = vsel %vm1816, %v3088, %v3028
    %v3092 = vsel %vm1821, %v3089, %v3033
    %v3093 = vsel %vm1821, %v3090, %v3035
    %v3094 = vsel %vm1821, %v3091, %v3037
    %v3095 = vsel %vm1826, %v3092, %v3042
    %v3096 = vsel %vm1826, %v3093, %v3044
    %v3097 = vsel %vm1826, %v3094, %v3046
    %v3098 = vsel %vm1831, %v3095, %v3051
    %v3099 = vsel %vm1831, %v3096, %v3053
    %v3100 = vsel %vm1831, %v3097, %v3055
    %3101 = vrot.lane.b32.xlu0 %v1341, 16
    %v3102 = vpop.permute.xlu0 %3101
    %3103 = vrot.lane.b32.xlu0 %v1342, 16
    %v3104 = vpop.permute.xlu0 %3103
    %3105 = vrot.lane.b32.xlu0 %v1343, 16
    %v3106 = vpop.permute.xlu0 %3105
    %3110 = vrot.lane.b32.xlu0 %v1345, 32
    %v3111 = vpop.permute.xlu0 %3110
    %3112 = vrot.lane.b32.xlu0 %v1346, 32
    %v3113 = vpop.permute.xlu0 %3112
    %3114 = vrot.lane.b32.xlu0 %v1347, 32
    %v3115 = vpop.permute.xlu0 %3114
    %3119 = vrot.lane.b32.xlu0 %v1330, 48
    %v3120 = vpop.permute.xlu0 %3119
    %3121 = vrot.lane.b32.xlu0 %v1533, 48
    %v3122 = vpop.permute.xlu0 %3121
    %3123 = vrot.lane.b32.xlu0 %v1536, 48
    %v3124 = vpop.permute.xlu0 %3123
    %3128 = vrot.lane.b32.xlu0 %v1541, 64
    %v3129 = vpop.permute.xlu0 %3128
    %3130 = vrot.lane.b32.xlu0 %v1545, 64
    %v3131 = vpop.permute.xlu0 %3130
    %3132 = vrot.lane.b32.xlu0 %v1549, 64
    %v3133 = vpop.permute.xlu0 %3132
    %3137 = vrot.lane.b32.xlu0 %v1554, 80
    %v3138 = vpop.permute.xlu0 %3137
    %3139 = vrot.lane.b32.xlu0 %v1558, 80
    %v3140 = vpop.permute.xlu0 %3139
    %3141 = vrot.lane.b32.xlu0 %v1562, 80
    %v3142 = vpop.permute.xlu0 %3141
    %3146 = vrot.lane.b32.xlu0 %v1359, 96
    %v3147 = vpop.permute.xlu0 %3146
    %3148 = vrot.lane.b32.xlu0 %v1360, 96
    %v3149 = vpop.permute.xlu0 %3148
    %3150 = vrot.lane.b32.xlu0 %v1361, 96
    %v3151 = vpop.permute.xlu0 %3150
    %3155 = vrot.lane.b32.xlu0 %v1363, 112
    %v3156 = vpop.permute.xlu0 %3155
    %3157 = vrot.lane.b32.xlu0 %v1364, 112
    %v3158 = vpop.permute.xlu0 %3157
    %3159 = vrot.lane.b32.xlu0 %v1365, 112
    %v3160 = vpop.permute.xlu0 %3159
    %v3164 = vsel %vm1801, %v1336, %v3102
    %v3165 = vsel %vm1801, %v1524, %v3104
    %v3166 = vsel %vm1801, %v1528, %v3106
    %v3167 = vsel %vm1806, %v3164, %v3111
    %v3168 = vsel %vm1806, %v3165, %v3113
    %v3169 = vsel %vm1806, %v3166, %v3115
    %v3170 = vsel %vm1811, %v3167, %v3120
    %v3171 = vsel %vm1811, %v3168, %v3122
    %v3172 = vsel %vm1811, %v3169, %v3124
    %v3173 = vsel %vm1816, %v3170, %v3129
    %v3174 = vsel %vm1816, %v3171, %v3131
    %v3175 = vsel %vm1816, %v3172, %v3133
    %v3176 = vsel %vm1821, %v3173, %v3138
    %v3177 = vsel %vm1821, %v3174, %v3140
    %v3178 = vsel %vm1821, %v3175, %v3142
    %v3179 = vsel %vm1826, %v3176, %v3147
    %v3180 = vsel %vm1826, %v3177, %v3149
    %v3181 = vsel %vm1826, %v3178, %v3151
    %v3182 = vsel %vm1831, %v3179, %v3156
    %v3183 = vsel %vm1831, %v3180, %v3158
    %v3184 = vsel %vm1831, %v3181, %v3160
    %v3185 = vpack.c.bf16 %v3078, %v3077
    %v3186 = vpack.c.bf16 %v3099, %v3098
    %v3187 = vpack.c.bf16 %v3183, %v3182
    %v3188 = vpack.c.bf16 %v1569, %v1567
    %v3189 = vpack.c.bf16 %v3079, %v3079
    %v3190 = vpack.c.bf16 %v3100, %v3100
    %v3191 = vpack.c.bf16 %v3184, %v3184
    %v3192 = vpack.c.bf16 %v1352, %v1352
    %v3194 = vsel %vm1801, %v3188, 0
    %v3197 = vsel %vm1801, %v3192, 0
    %3199 = vmatprep.subr.bf16.mxu0 0
    %3200 = vmatpush1.bf16.msra.mxu0 %v2099
    %3201 = vmatprep.subr.bf16.mxu0 0
    %3202 = vmatpush1.bf16.msra.mxu0 %v2098
    %3203 = vmatprep.subr.bf16.mxu0 0
    %3204 = vmatpush1.bf16.msra.mxu0 %v2097
    %3205 = vmatprep.subr.bf16.mxu0 0
    %3206 = vmatpush1.bf16.msra.mxu0 %v2096
    %3207 = vmatprep.subr.bf16.mxu0 0
    %3208 = vmatpush1.bf16.msra.mxu0 %v2095
    %3209 = vmatprep.subr.bf16.mxu0 0
    %3210 = vmatpush1.bf16.msra.mxu0 %v2094
    %3211 = vmatprep.subr.bf16.mxu0 0
    %3212 = vmatpush1.bf16.msra.mxu0 %v2093
    %3213 = vmatprep.subr.bf16.mxu0 0
    %3214 = vmatpush1.bf16.msra.mxu0 %v2092
    %3215 = vmatprep.subr.bf16.mxu0 0
    %3216 = vmatpush2.bf16.msra.mxu0 %v2107
    %3217 = vmatprep.subr.bf16.mxu0 0
    %3218 = vmatpush2.bf16.msra.mxu0 %v2106
    %3219 = vmatprep.subr.bf16.mxu0 0
    %3220 = vmatpush2.bf16.msra.mxu0 %v2105
    %3221 = vmatprep.subr.bf16.mxu0 0
    %3222 = vmatpush2.bf16.msra.mxu0 %v2104
    %3223 = vmatprep.subr.bf16.mxu0 0
    %3224 = vmatpush2.bf16.msra.mxu0 %v2103
    %3225 = vmatprep.subr.bf16.mxu0 0
    %3226 = vmatpush2.bf16.msra.mxu0 %v2102
    %3227 = vmatprep.subr.bf16.mxu0 0
    %3228 = vmatpush2.bf16.msra.mxu0 %v2101
    %3229 = vmatprep.subr.bf16.mxu0 0
    %3230 = vmatpush2.bf16.msra.mxu0 %v2100
    %3231 = vmatprep.mubr.bf16.mxu0 %v3186
    %3232 = vmatmul.mubr.bf16.gmra.mxu0 %v3185
    %v3233 = vpop.f32.mrf.mxu0
    %v3234 = vadd.f32 0.0, %v3233
    %v3235 = vpop.f32.mrf.mxu0
    %v3236 = vpop.f32.mrf.mxu0
    %v3237 = vadd.f32 0.0, %v3236
    %v3238 = vpop.f32.mrf.mxu0
    %3239 = vmatprep.mubr.bf16.mxu0 %v3190
    %3240 = vmatmul.mubr.bf16.gmra.mxu0 %v3189
    %v3241 = vpop.f32.mrf.mxu0
    %v3242 = vadd.f32 0.0, %v3241
    %v3243 = vpop.f32.mrf.mxu0
    %v3244 = vpop.f32.mrf.mxu0
    %v3245 = vpop.f32.mrf.mxu0
    %3246 = vdwg.mxu0
    %3247 = vmatprep.subr.bf16.mxu0 0
    %3248 = vmatpush1.bf16.msra.mxu0 %v2115
    %3249 = vmatprep.subr.bf16.mxu0 0
    %3250 = vmatpush1.bf16.msra.mxu0 %v2114
    %3251 = vmatprep.subr.bf16.mxu0 0
    %3252 = vmatpush1.bf16.msra.mxu0 %v2113
    %3253 = vmatprep.subr.bf16.mxu0 0
    %3254 = vmatpush1.bf16.msra.mxu0 %v2112
    %3255 = vmatprep.subr.bf16.mxu0 0
    %3256 = vmatpush1.bf16.msra.mxu0 %v2111
    %3257 = vmatprep.subr.bf16.mxu0 0
    %3258 = vmatpush1.bf16.msra.mxu0 %v2110
    %3259 = vmatprep.subr.bf16.mxu0 0
    %3260 = vmatpush1.bf16.msra.mxu0 %v2109
    %3261 = vmatprep.subr.bf16.mxu0 0
    %3262 = vmatpush1.bf16.msra.mxu0 %v2108
    %3263 = vmatprep.subr.bf16.mxu0 0
    %3264 = vmatpush2.bf16.msra.mxu0 0
    %3265 = vmatprep.subr.bf16.mxu0 0
    %3266 = vmatpush2.bf16.msra.mxu0 0
    %3267 = vmatprep.subr.bf16.mxu0 0
    %3268 = vmatpush2.bf16.msra.mxu0 0
    %3269 = vmatprep.subr.bf16.mxu0 0
    %3270 = vmatpush2.bf16.msra.mxu0 0
    %3271 = vmatprep.subr.bf16.mxu0 0
    %3272 = vmatpush2.bf16.msra.mxu0 0
    %3273 = vmatprep.subr.bf16.mxu0 0
    %3274 = vmatpush2.bf16.msra.mxu0 0
    %3275 = vmatprep.subr.bf16.mxu0 0
    %3276 = vmatpush2.bf16.msra.mxu0 0
    %3277 = vmatprep.subr.bf16.mxu0 0
    %3278 = vmatpush2.bf16.msra.mxu0 %v2116
    %3279 = vmatprep.mubr.bf16.mxu0 %v3194
    %3280 = vmatmul.mubr.bf16.gmra.mxu0 %v3187
    %v3281 = vpop.f32.mrf.mxu0
    %v3282 = vadd.f32 %v3234, %v3281
    %v3283 = vpop.f32.mrf.mxu0
    %v3284 = vpop.f32.mrf.mxu0
    %v3285 = vadd.f32 %v3237, %v3284
    %v3286 = vpop.f32.mrf.mxu0
    %3287 = vmatprep.mubr.bf16.mxu0 %v3197
    %3288 = vmatmul.mubr.bf16.gmra.mxu0 %v3191
    %v3289 = vpop.f32.mrf.mxu0
    %v3290 = vadd.f32 %v3242, %v3289
    %v3291 = vpop.f32.mrf.mxu0
    %v3292 = vpop.f32.mrf.mxu0
    %v3293 = vpop.f32.mrf.mxu0
    %3294 = vdwg.mxu0
    %v3295 = vrot.slane %v1342, 2
    %v3297 = vrot.slane %v1343, 4
    %v3299 = vsel %vm1436, %v1341, %v3295
    %v3300 = vsel %vm1442, %v3295, %v3297
    %v3301 = vrot.slane %v1346, 2
    %v3303 = vrot.slane %v1347, 4
    %v3305 = vsel %vm1436, %v1345, %v3301
    %v3306 = vsel %vm1442, %v3301, %v3303
    %v3307 = vrot.slane %v1331, 4
    %v3309 = vsel %vm1436, %v1330, %v3307
    %v3310 = vsel %vm1442, %v3307, %v1332
    %v3311 = vrot.slane %v1336, 2
    %v3313 = vrot.slane %v1337, 6
    %v3314 = vrot.slane %v1338, 6
    %v3315 = vsel %vm1448, %v3313, %v3314
    %v3318 = vrot.slane %v1339, 2
    %v3319 = vsel %vm1436, %v1523, %v3318
    %v3321 = vsel %vm1436, %v3311, %v3313
    %v3322 = vsel %vm1442, %v3315, %v3319
    %v3323 = vsel %vm1436, %v2304, %v2306
    %v3324 = vsel %vm1442, %v2306, %v2308
    %v3325 = vrot.slane %v1360, 2
    %v3327 = vrot.slane %v1361, 4
    %v3329 = vsel %vm1436, %v1359, %v3325
    %v3330 = vsel %vm1442, %v3325, %v3327
    %v3331 = vrot.slane %v1364, 2
    %v3333 = vrot.slane %v1365, 4
    %v3335 = vsel %vm1436, %v1363, %v3331
    %v3336 = vsel %vm1442, %v3331, %v3333
    %v3337 = vrot.slane %v1352, 4
    %v3339 = vsel %vm1436, %v1567, %v1350
    %v3340 = vsel %vm1442, %v1351, %v3337
    %v3341 = vrot.slane %v1354, 4
    %v3342 = vsel %vm1442, %v3341, %v1556
    %v3344 = vrot.slane %v1357, 4
    %v3346 = vsel %vm1436, %v3342, %v1355
    %v3347 = vsel %vm1442, %v1356, %v3344
    %v3348 = vsel %vm1436, %v2349, %v2351
    %v3349 = vsel %vm1442, %v2351, %v2353
    %3350 = vrot.lane.b32.xlu0 %v2364, 16
    %v3351 = vpop.permute.xlu0 %3350
    %3352 = vrot.lane.b32.xlu0 %v2365, 16
    %v3353 = vpop.permute.xlu0 %3352
    %3354 = vrot.lane.b32.xlu0 %v2360, 16
    %v3355 = vpop.permute.xlu0 %3354
    %3359 = vrot.lane.b32.xlu0 %v2377, 32
    %v3360 = vpop.permute.xlu0 %3359
    %3361 = vrot.lane.b32.xlu0 %v2378, 32
    %v3362 = vpop.permute.xlu0 %3361
    %3363 = vrot.lane.b32.xlu0 %v2372, 32
    %v3364 = vpop.permute.xlu0 %3363
    %3368 = vrot.lane.b32.xlu0 %v2392, 48
    %v3369 = vpop.permute.xlu0 %3368
    %3370 = vrot.lane.b32.xlu0 %v2393, 48
    %v3371 = vpop.permute.xlu0 %3370
    %3372 = vrot.lane.b32.xlu0 %v2387, 48
    %v3373 = vpop.permute.xlu0 %3372
    %3377 = vrot.lane.b32.xlu0 %v2401, 64
    %v3378 = vpop.permute.xlu0 %3377
    %3379 = vrot.lane.b32.xlu0 %v2402, 64
    %v3380 = vpop.permute.xlu0 %3379
    %3381 = vrot.lane.b32.xlu0 %v2399, 64
    %v3382 = vpop.permute.xlu0 %3381
    %3386 = vrot.lane.b32.xlu0 %v2410, 80
    %v3387 = vpop.permute.xlu0 %3386
    %3388 = vrot.lane.b32.xlu0 %v2411, 80
    %v3389 = vpop.permute.xlu0 %3388
    %3390 = vrot.lane.b32.xlu0 %v2406, 80
    %v3391 = vpop.permute.xlu0 %3390
    %3397 = vrot.lane.b32.xlu0 %v2419, 96
    %v3398 = vpop.permute.xlu0 %3397
    %3399 = vrot.lane.b32.xlu0 %v2420, 96
    %v3400 = vpop.permute.xlu0 %3399
    %3401 = vrot.lane.b32.xlu0 %v2415, 96
    %v3402 = vpop.permute.xlu0 %3401
    %3406 = vrot.lane.b32.xlu0 %v2432, 112
    %v3407 = vpop.permute.xlu0 %3406
    %3408 = vrot.lane.b32.xlu0 %v2433, 112
    %v3409 = vpop.permute.xlu0 %3408
    %3410 = vrot.lane.b32.xlu0 %v2427, 112
    %v3411 = vpop.permute.xlu0 %3410
    %3415 = vrot.lane.b32.xlu0 %v2457, 16
    %v3416 = vpop.permute.xlu0 %3415
    %3417 = vrot.lane.b32.xlu0 %v2458, 16
    %v3418 = vpop.permute.xlu0 %3417
    %3419 = vrot.lane.b32.xlu0 %v2455, 16
    %v3420 = vpop.permute.xlu0 %3419
    %3424 = vrot.lane.b32.xlu0 %v2468, 32
    %v3425 = vpop.permute.xlu0 %3424
    %3426 = vrot.lane.b32.xlu0 %v2469, 32
    %v3427 = vpop.permute.xlu0 %3426
    %3428 = vrot.lane.b32.xlu0 %v1322, 32
    %v3429 = vpop.permute.xlu0 %3428
    %3433 = vrot.lane.b32.xlu0 %v2479, 48
    %v3434 = vpop.permute.xlu0 %3433
    %3435 = vrot.lane.b32.xlu0 %v2480, 48
    %v3436 = vpop.permute.xlu0 %3435
    %3437 = vrot.lane.b32.xlu0 %v1327, 48
    %v3438 = vpop.permute.xlu0 %3437
    %3442 = vrot.lane.b32.xlu0 %v2484, 64
    %v3443 = vpop.permute.xlu0 %3442
    %3444 = vrot.lane.b32.xlu0 %v2485, 64
    %v3445 = vpop.permute.xlu0 %3444
    %3446 = vrot.lane.b32.xlu0 %v2482, 64
    %v3447 = vpop.permute.xlu0 %3446
    %3451 = vrot.lane.b32.xlu0 %v2495, 80
    %v3452 = vpop.permute.xlu0 %3451
    %3453 = vrot.lane.b32.xlu0 %v2496, 80
    %v3454 = vpop.permute.xlu0 %3453
    %3455 = vrot.lane.b32.xlu0 %v2492, 80
    %v3456 = vpop.permute.xlu0 %3455
    %3462 = vrot.lane.b32.xlu0 %v2500, 96
    %v3463 = vpop.permute.xlu0 %3462
    %3464 = vrot.lane.b32.xlu0 %v2501, 96
    %v3465 = vpop.permute.xlu0 %3464
    %3466 = vrot.lane.b32.xlu0 %v2253, 96
    %v3467 = vpop.permute.xlu0 %3466
    %3473 = vrot.lane.b32.xlu0 %v3299, 112
    %v3474 = vpop.permute.xlu0 %3473
    %3475 = vrot.lane.b32.xlu0 %v3300, 112
    %v3476 = vpop.permute.xlu0 %3475
    %3477 = vrot.lane.b32.xlu0 %v3297, 112
    %v3478 = vpop.permute.xlu0 %3477
    %v3482 = vsel %vm1801, %v2355, %v3351
    %v3483 = vsel %vm1801, %v2356, %v3353
    %v3484 = vsel %vm1801, %v2351, %v3355
    %v3485 = vsel %vm1806, %v3482, %v3360
    %v3486 = vsel %vm1806, %v3483, %v3362
    %v3487 = vsel %vm1806, %v3484, %v3364
    %v3488 = vsel %vm1811, %v3485, %v3369
    %v3489 = vsel %vm1811, %v3486, %v3371
    %v3490 = vsel %vm1811, %v3487, %v3373
    %v3491 = vsel %vm1816, %v3488, %v3378
    %v3492 = vsel %vm1816, %v3489, %v3380
    %v3493 = vsel %vm1816, %v3490, %v3382
    %v3494 = vsel %vm1821, %v3491, %v3387
    %v3495 = vsel %vm1821, %v3492, %v3389
    %v3496 = vsel %vm1821, %v3493, %v3391
    %v3497 = vsel %vm1826, %v3494, %v3398
    %v3498 = vsel %vm1826, %v3495, %v3400
    %v3499 = vsel %vm1826, %v3496, %v3402
    %v3500 = vsel %vm1831, %v3497, %v3407
    %v3501 = vsel %vm1831, %v3498, %v3409
    %v3502 = vsel %vm1831, %v3499, %v3411
    %v3503 = vsel %vm1801, %v2448, %v3416
    %v3504 = vsel %vm1801, %v2449, %v3418
    %v3505 = vsel %vm1801, %v2443, %v3420
    %v3506 = vsel %vm1806, %v3503, %v3425
    %v3507 = vsel %vm1806, %v3504, %v3427
    %v3508 = vsel %vm1806, %v3505, %v3429
    %v3509 = vsel %vm1811, %v3506, %v3434
    %v3510 = vsel %vm1811, %v3507, %v3436
    %v3511 = vsel %vm1811, %v3508, %v3438
    %v3512 = vsel %vm1816, %v3509, %v3443
    %v3513 = vsel %vm1816, %v3510, %v3445
    %v3514 = vsel %vm1816, %v3511, %v3447
    %v3515 = vsel %vm1821, %v3512, %v3452
    %v3516 = vsel %vm1821, %v3513, %v3454
    %v3517 = vsel %vm1821, %v3514, %v3456
    %v3518 = vsel %vm1826, %v3515, %v3463
    %v3519 = vsel %vm1826, %v3516, %v3465
    %v3520 = vsel %vm1826, %v3517, %v3467
    %v3521 = vsel %vm1831, %v3518, %v3474
    %v3522 = vsel %vm1831, %v3519, %v3476
    %v3523 = vsel %vm1831, %v3520, %v3478
    %3526 = vrot.lane.b32.xlu0 %v3309, 16
    %v3527 = vpop.permute.xlu0 %3526
    %3528 = vrot.lane.b32.xlu0 %v3310, 16
    %v3529 = vpop.permute.xlu0 %3528
    %3530 = vrot.lane.b32.xlu0 %v1333, 16
    %v3531 = vpop.permute.xlu0 %3530
    %3537 = vrot.lane.b32.xlu0 %v3321, 32
    %v3538 = vpop.permute.xlu0 %3537
    %3539 = vrot.lane.b32.xlu0 %v3322, 32
    %v3540 = vpop.permute.xlu0 %3539
    %3541 = vrot.lane.b32.xlu0 %v3318, 32
    %v3542 = vpop.permute.xlu0 %3541
    %3548 = vrot.lane.b32.xlu0 %v3323, 48
    %v3549 = vpop.permute.xlu0 %3548
    %3550 = vrot.lane.b32.xlu0 %v3324, 48
    %v3551 = vpop.permute.xlu0 %3550
    %3552 = vrot.lane.b32.xlu0 %v2308, 48
    %v3553 = vpop.permute.xlu0 %3552
    %3559 = vrot.lane.b32.xlu0 %v3329, 64
    %v3560 = vpop.permute.xlu0 %3559
    %3561 = vrot.lane.b32.xlu0 %v3330, 64
    %v3562 = vpop.permute.xlu0 %3561
    %3563 = vrot.lane.b32.xlu0 %v3327, 64
    %v3564 = vpop.permute.xlu0 %3563
    %3570 = vrot.lane.b32.xlu0 %v3335, 80
    %v3571 = vpop.permute.xlu0 %3570
    %3572 = vrot.lane.b32.xlu0 %v3336, 80
    %v3573 = vpop.permute.xlu0 %3572
    %3574 = vrot.lane.b32.xlu0 %v3333, 80
    %v3575 = vpop.permute.xlu0 %3574
    %3581 = vrot.lane.b32.xlu0 %v3339, 96
    %v3582 = vpop.permute.xlu0 %3581
    %3583 = vrot.lane.b32.xlu0 %v3340, 96
    %v3584 = vpop.permute.xlu0 %3583
    %3585 = vrot.lane.b32.xlu0 %v3337, 96
    %v3586 = vpop.permute.xlu0 %3585
    %3592 = vrot.lane.b32.xlu0 %v3346, 112
    %v3593 = vpop.permute.xlu0 %3592
    %3594 = vrot.lane.b32.xlu0 %v3347, 112
    %v3595 = vpop.permute.xlu0 %3594
    %3596 = vrot.lane.b32.xlu0 %v3344, 112
    %v3597 = vpop.permute.xlu0 %3596
    %v3601 = vsel %vm1801, %v3305, %v3527
    %v3602 = vsel %vm1801, %v3306, %v3529
    %v3603 = vsel %vm1801, %v3303, %v3531
    %v3604 = vsel %vm1806, %v3601, %v3538
    %v3605 = vsel %vm1806, %v3602, %v3540
    %v3606 = vsel %vm1806, %v3603, %v3542
    %v3607 = vsel %vm1811, %v3604, %v3549
    %v3608 = vsel %vm1811, %v3605, %v3551
    %v3609 = vsel %vm1811, %v3606, %v3553
    %v3610 = vsel %vm1816, %v3607, %v3560
    %v3611 = vsel %vm1816, %v3608, %v3562
    %v3612 = vsel %vm1816, %v3609, %v3564
    %v3613 = vsel %vm1821, %v3610, %v3571
    %v3614 = vsel %vm1821, %v3611, %v3573
    %v3615 = vsel %vm1821, %v3612, %v3575
    %v3616 = vsel %vm1826, %v3613, %v3582
    %v3617 = vsel %vm1826, %v3614, %v3584
    %v3618 = vsel %vm1826, %v3615, %v3586
    %v3619 = vsel %vm1831, %v3616, %v3593
    %v3620 = vsel %vm1831, %v3617, %v3595
    %v3621 = vsel %vm1831, %v3618, %v3597
    %v3622 = vpack.c.bf16 %v3501, %v3500
    %v3623 = vpack.c.bf16 %v3522, %v3521
    %v3624 = vpack.c.bf16 %v3620, %v3619
    %v3625 = vpack.c.bf16 %v3349, %v3348
    %v3626 = vpack.c.bf16 %v3502, %v3502
    %v3627 = vpack.c.bf16 %v3523, %v3523
    %v3628 = vpack.c.bf16 %v3621, %v3621
    %v3629 = vpack.c.bf16 %v2353, %v2353
    %v3631 = vsel %vm1801, %v3625, 0
    %v3634 = vsel %vm1801, %v3629, 0
    %3636 = vmatprep.subr.bf16.mxu0 0
    %3637 = vmatpush1.bf16.msra.mxu0 %v2099
    %3638 = vmatprep.subr.bf16.mxu0 0
    %3639 = vmatpush1.bf16.msra.mxu0 %v2098
    %3640 = vmatprep.subr.bf16.mxu0 0
    %3641 = vmatpush1.bf16.msra.mxu0 %v2097
    %3642 = vmatprep.subr.bf16.mxu0 0
    %3643 = vmatpush1.bf16.msra.mxu0 %v2096
    %3644 = vmatprep.subr.bf16.mxu0 0
    %3645 = vmatpush1.bf16.msra.mxu0 %v2095
    %3646 = vmatprep.subr.bf16.mxu0 0
    %3647 = vmatpush1.bf16.msra.mxu0 %v2094
    %3648 = vmatprep.subr.bf16.mxu0 0
    %3649 = vmatpush1.bf16.msra.mxu0 %v2093
    %3650 = vmatprep.subr.bf16.mxu0 0
    %3651 = vmatpush1.bf16.msra.mxu0 %v2092
    %3652 = vmatprep.subr.bf16.mxu0 0
    %3653 = vmatpush2.bf16.msra.mxu0 %v2107
    %3654 = vmatprep.subr.bf16.mxu0 0
    %3655 = vmatpush2.bf16.msra.mxu0 %v2106
    %3656 = vmatprep.subr.bf16.mxu0 0
    %3657 = vmatpush2.bf16.msra.mxu0 %v2105
    %3658 = vmatprep.subr.bf16.mxu0 0
    %3659 = vmatpush2.bf16.msra.mxu0 %v2104
    %3660 = vmatprep.subr.bf16.mxu0 0
    %3661 = vmatpush2.bf16.msra.mxu0 %v2103
    %3662 = vmatprep.subr.bf16.mxu0 0
    %3663 = vmatpush2.bf16.msra.mxu0 %v2102
    %3664 = vmatprep.subr.bf16.mxu0 0
    %3665 = vmatpush2.bf16.msra.mxu0 %v2101
    %3666 = vmatprep.subr.bf16.mxu0 0
    %3667 = vmatpush2.bf16.msra.mxu0 %v2100
    %3668 = vmatprep.mubr.bf16.mxu0 %v3623
    %3669 = vmatmul.mubr.bf16.gmra.mxu0 %v3622
    %v3670 = vpop.f32.mrf.mxu0
    %v3671 = vadd.f32 0.0, %v3670
    %v3672 = vpop.f32.mrf.mxu0
    %v3673 = vpop.f32.mrf.mxu0
    %v3674 = vadd.f32 0.0, %v3673
    %v3675 = vpop.f32.mrf.mxu0
    %3676 = vmatprep.mubr.bf16.mxu0 %v3627
    %3677 = vmatmul.mubr.bf16.gmra.mxu0 %v3626
    %v3678 = vpop.f32.mrf.mxu0
    %v3679 = vadd.f32 0.0, %v3678
    %v3680 = vpop.f32.mrf.mxu0
    %v3681 = vpop.f32.mrf.mxu0
    %v3682 = vpop.f32.mrf.mxu0
    %3683 = vdwg.mxu0
    %3684 = vmatprep.subr.bf16.mxu0 0
    %3685 = vmatpush1.bf16.msra.mxu0 %v2115
    %3686 = vmatprep.subr.bf16.mxu0 0
    %3687 = vmatpush1.bf16.msra.mxu0 %v2114
    %3688 = vmatprep.subr.bf16.mxu0 0
    %3689 = vmatpush1.bf16.msra.mxu0 %v2113
    %3690 = vmatprep.subr.bf16.mxu0 0
    %3691 = vmatpush1.bf16.msra.mxu0 %v2112
    %3692 = vmatprep.subr.bf16.mxu0 0
    %3693 = vmatpush1.bf16.msra.mxu0 %v2111
    %3694 = vmatprep.subr.bf16.mxu0 0
    %3695 = vmatpush1.bf16.msra.mxu0 %v2110
    %3696 = vmatprep.subr.bf16.mxu0 0
    %3697 = vmatpush1.bf16.msra.mxu0 %v2109
    %3698 = vmatprep.subr.bf16.mxu0 0
    %3699 = vmatpush1.bf16.msra.mxu0 %v2108
    %3700 = vmatprep.subr.bf16.mxu0 0
    %3701 = vmatpush2.bf16.msra.mxu0 0
    %3702 = vmatprep.subr.bf16.mxu0 0
    %3703 = vmatpush2.bf16.msra.mxu0 0
    %3704 = vmatprep.subr.bf16.mxu0 0
    %3705 = vmatpush2.bf16.msra.mxu0 0
    %3706 = vmatprep.subr.bf16.mxu0 0
    %3707 = vmatpush2.bf16.msra.mxu0 0
    %3708 = vmatprep.subr.bf16.mxu0 0
    %3709 = vmatpush2.bf16.msra.mxu0 0
    %3710 = vmatprep.subr.bf16.mxu0 0
    %3711 = vmatpush2.bf16.msra.mxu0 0
    %3712 = vmatprep.subr.bf16.mxu0 0
    %3713 = vmatpush2.bf16.msra.mxu0 0
    %3714 = vmatprep.subr.bf16.mxu0 0
    %3715 = vmatpush2.bf16.msra.mxu0 %v2116
    %3716 = vmatprep.mubr.bf16.mxu0 %v3631
    %3717 = vmatmul.mubr.bf16.gmra.mxu0 %v3624
    %v3718 = vpop.f32.mrf.mxu0
    %v3719 = vadd.f32 %v3671, %v3718
    %v3720 = vpop.f32.mrf.mxu0
    %v3721 = vpop.f32.mrf.mxu0
    %v3722 = vadd.f32 %v3674, %v3721
    %v3723 = vpop.f32.mrf.mxu0
    %3724 = vmatprep.mubr.bf16.mxu0 %v3634
    %3725 = vmatmul.mubr.bf16.gmra.mxu0 %v3628
    %v3726 = vpop.f32.mrf.mxu0
    %v3727 = vadd.f32 %v3679, %v3726
    %v3728 = vpop.f32.mrf.mxu0
    %v3729 = vpop.f32.mrf.mxu0
    %v3730 = vpop.f32.mrf.mxu0
    %3731 = vdwg.mxu0
    %v3732 = vld [vmem:[%s5] sm:$0x1]
    %v3733 = vld [vmem:[%s6] sm:$0x1]
    %v3734 = vadd.f32 %v2232, %v2235
    %v3735 = vadd.f32 %v3734, %v2240
    %v3736 = vadd.f32 %v3735, %v2243
    %v3737 = vadd.f32 %v3736, %v2915
    %v3738 = vadd.f32 %v3737, %v2918
    %v3739 = vadd.f32 %v3738, %v2923
    %v3740 = vadd.f32 %v3739, %v3282
    %v3741 = vadd.f32 %v3740, %v3285
    %v3742 = vadd.f32 %v3741, %v3290
    %v3743 = vadd.f32 %v3742, %v3719
    %v3744 = vadd.f32 %v3743, %v3722
    %v3745 = vsel %vm1448, %v3727, 0.0
    %v3746 = vadd.f32 %v3744, %v3745
    %v3747 = vrot.slane %v3746, 4
    %v3748 = vadd.f32 %v3746, %v3747
    %v3749 = vrot.slane %v3748, 2
    %v3750 = vadd.f32 %v3748, %v3749
    %v3751 = vrot.slane %v3750, 1
    %v3752 = vadd.f32 %v3750, %v3751
    %v3753 = vmul.f32 %v3752, 0.010204081
    %v3754 = vmul.f32 %v2232, %v2232
    %v3755 = vmul.f32 %v2235, %v2235
    %v3756 = vmul.f32 %v2240, %v2240
    %v3757 = vmul.f32 %v2243, %v2243
    %v3758 = vmul.f32 %v2915, %v2915
    %v3759 = vmul.f32 %v2918, %v2918
    %v3760 = vmul.f32 %v2923, %v2923
    %v3761 = vmul.f32 %v3282, %v3282
    %v3762 = vmul.f32 %v3285, %v3285
    %v3763 = vmul.f32 %v3290, %v3290
    %v3764 = vmul.f32 %v3719, %v3719
    %v3765 = vmul.f32 %v3722, %v3722
    %v3766 = vmul.f32 %v3727, %v3727
    %v3767 = vadd.f32 %v3754, %v3755
    %v3768 = vadd.f32 %v3767, %v3756
    %v3769 = vadd.f32 %v3768, %v3757
    %v3770 = vadd.f32 %v3769, %v3758
    %v3771 = vadd.f32 %v3770, %v3759
    %v3772 = vadd.f32 %v3771, %v3760
    %v3773 = vadd.f32 %v3772, %v3761
    %v3774 = vadd.f32 %v3773, %v3762
    %v3775 = vadd.f32 %v3774, %v3763
    %v3776 = vadd.f32 %v3775, %v3764
    %v3777 = vadd.f32 %v3776, %v3765
    %v3778 = vsel %vm1448, %v3766, 0.0
    %v3779 = vadd.f32 %v3777, %v3778
    %v3780 = vrot.slane %v3779, 4
    %v3781 = vadd.f32 %v3779, %v3780
    %v3782 = vrot.slane %v3781, 2
    %v3783 = vadd.f32 %v3781, %v3782
    %v3784 = vrot.slane %v3783, 1
    %v3785 = vadd.f32 %v3783, %v3784
    %v3786 = vmul.f32 %v3785, 0.010204081
    %v3787 = vmul.f32 %v3753, %v3753
    %v3788 = vsub.f32 %v3786, %v3787
    %v3789 = vmax.f32 %v3788, 0.0
    %v3790 = vsub.f32 %v2232, %v3753
    %v3791 = vsub.f32 %v2235, %v3753
    %v3792 = vsub.f32 %v2240, %v3753
    %v3793 = vsub.f32 %v2243, %v3753
    %v3794 = vsub.f32 %v2915, %v3753
    %v3795 = vsub.f32 %v2918, %v3753
    %v3796 = vsub.f32 %v2923, %v3753
    %v3797 = vsub.f32 %v3282, %v3753
    %v3798 = vsub.f32 %v3285, %v3753
    %v3799 = vsub.f32 %v3290, %v3753
    %v3800 = vsub.f32 %v3719, %v3753
    %v3801 = vsub.f32 %v3722, %v3753
    %v3802 = vsub.f32 %v3727, %v3753
    %v3803 = vadd.f32 %v3789, 1e-05
    %v3804 = vrsqrt.pop %v3803
    %v3805 = vmul.f32 %v3790, %v3804
    %v3806 = vmul.f32 %v3791, %v3804
    %v3807 = vmul.f32 %v3792, %v3804
    %v3808 = vmul.f32 %v3793, %v3804
    %v3809 = vmul.f32 %v3794, %v3804
    %v3810 = vmul.f32 %v3795, %v3804
    %v3811 = vmul.f32 %v3796, %v3804
    %v3812 = vmul.f32 %v3797, %v3804
    %v3813 = vmul.f32 %v3798, %v3804
    %v3814 = vmul.f32 %v3799, %v3804
    %v3815 = vmul.f32 %v3800, %v3804
    %v3816 = vmul.f32 %v3801, %v3804
    %v3817 = vmul.f32 %v3802, %v3804
    %v3819 = vlaneseq
    %v3820 = vshrl.u32 %v3819, 7
    %v3821 = vsub.s32 0, %v3820
    %v3822 = vrot.slane %v3732, %v3821
    %v3824 = vmul.f32 %v3805, %v3822
    %v3825 = vmul.f32 %v3806, %v3822
    %v3826 = vmul.f32 %v3807, %v3822
    %v3827 = vmul.f32 %v3808, %v3822
    %v3828 = vmul.f32 %v3809, %v3822
    %v3829 = vmul.f32 %v3810, %v3822
    %v3830 = vmul.f32 %v3811, %v3822
    %v3831 = vmul.f32 %v3812, %v3822
    %v3832 = vmul.f32 %v3813, %v3822
    %v3833 = vmul.f32 %v3814, %v3822
    %v3834 = vmul.f32 %v3815, %v3822
    %v3835 = vmul.f32 %v3816, %v3822
    %v3836 = vmul.f32 %v3817, %v3822
    %v3838 = vlaneseq
    %v3839 = vshrl.u32 %v3838, 7
    %v3840 = vsub.s32 0, %v3839
    %v3841 = vrot.slane %v3733, %v3840
    %v3843 = vadd.f32 %v3824, %v3841
    %v3844 = vadd.f32 %v3825, %v3841
    %v3845 = vadd.f32 %v3826, %v3841
    %v3846 = vadd.f32 %v3827, %v3841
    %v3847 = vadd.f32 %v3828, %v3841
    %v3848 = vadd.f32 %v3829, %v3841
    %v3849 = vadd.f32 %v3830, %v3841
    %v3850 = vadd.f32 %v3831, %v3841
    %v3851 = vadd.f32 %v3832, %v3841
    %v3852 = vadd.f32 %v3833, %v3841
    %v3853 = vadd.f32 %v3834, %v3841
    %v3854 = vadd.f32 %v3835, %v3841
    %v3855 = vadd.f32 %v3836, %v3841
    %v3857 = vrot.slane %v3844, 4
    %v3859 = vsel %vm1442, %v3843, %v3857
    %v3862 = vrot.slane %v3847, 2
    %v3863 = vrot.slane %v3848, 2
    %v3864 = vsel %vm1436, %v3862, %v3863
    %v3866 = vsel %vm1442, %v3847, %v3864
    %v3868 = vrot.slane %v3843, 2
    %v3870 = vrot.slane %v3844, 6
    %v3872 = vsel %vm1442, %v3868, %v3870
    %v3874 = vrot.slane %v3848, 4
    %v3876 = vsel %vm1442, %v3862, %v3874
    %v3877 = vrot.slane %v3843, 4
    %v3879 = vsel %vm1442, %v3877, %v3844
    %v3881 = vrot.slane %v3851, 4
    %v3883 = vsel %vm1442, %v3850, %v3881
    %v3886 = vrot.slane %v3853, 2
    %v3887 = vrot.slane %v3854, 2
    %v3888 = vsel %vm1436, %v3886, %v3887
    %v3890 = vsel %vm1442, %v3853, %v3888
    %v3892 = vrot.slane %v3850, 2
    %v3894 = vrot.slane %v3851, 6
    %v3896 = vsel %vm1442, %v3892, %v3894
    %v3898 = vrot.slane %v3854, 4
    %v3900 = vsel %vm1442, %v3886, %v3898
    %v3901 = vrot.slane %v3850, 4
    %v3903 = vsel %vm1442, %v3901, %v3851
    %v3905 = vrot.slane %v3845, 4
    %v3907 = vsel %vm1442, %v3844, %v3905
    %v3908 = vrot.slane %v3847, 6
    %v3909 = vrot.slane %v3848, 6
    %v3910 = vsel %vm1448, %v3908, %v3909
    %v3912 = vsel %vm1442, %v3910, %v3848
    %v3913 = vrot.slane %v3844, 2
    %v3915 = vrot.slane %v3845, 6
    %v3917 = vsel %vm1442, %v3913, %v3915
    %v3919 = vrot.slane %v3849, 2
    %v3920 = vsel %vm1436, %v3863, %v3919
    %v3922 = vsel %vm1442, %v3848, %v3920
    %v3923 = vsel %vm1442, %v3857, %v3845
    %v3925 = vrot.slane %v3852, 4
    %v3927 = vsel %vm1442, %v3851, %v3925
    %v3928 = vrot.slane %v3853, 6
    %v3929 = vrot.slane %v3854, 6
    %v3930 = vsel %vm1448, %v3928, %v3929
    %v3932 = vsel %vm1442, %v3930, %v3854
    %v3933 = vrot.slane %v3851, 2
    %v3935 = vrot.slane %v3852, 6
    %v3937 = vsel %vm1442, %v3933, %v3935
    %v3939 = vrot.slane %v3855, 2
    %v3940 = vsel %vm1436, %v3887, %v3939
    %v3942 = vsel %vm1442, %v3854, %v3940
    %v3943 = vsel %vm1442, %v3881, %v3852
    %v3945 = vrot.slane %v3846, 4
    %v3947 = vsel %vm1442, %v3845, %v3945
    %v3948 = vrot.slane %v3849, 6
    %v3950 = vsel %vm1442, %v3874, %v3948
    %v3951 = vrot.slane %v3845, 2
    %v3953 = vrot.slane %v3846, 6
    %v3955 = vsel %vm1442, %v3951, %v3953
    %v3956 = vsel %vm1448, %v3909, %v3948
    %v3958 = vsel %vm1442, %v3956, %v3849
    %v3959 = vsel %vm1442, %v3905, %v3846
    %3961 = vrot.lane.b32.xlu0 %v3866, 32
    %v3962 = vpop.permute.xlu0 %3961
    %3965 = vrot.lane.b32.xlu0 %v3872, 64
    %v3966 = vpop.permute.xlu0 %3965
    %3969 = vrot.lane.b32.xlu0 %v3876, 96
    %v3970 = vpop.permute.xlu0 %3969
    %3973 = vrot.lane.b32.xlu0 %v3883, 32
    %v3974 = vpop.permute.xlu0 %3973
    %3977 = vrot.lane.b32.xlu0 %v3890, 64
    %v3978 = vpop.permute.xlu0 %3977
    %3981 = vrot.lane.b32.xlu0 %v3896, 96
    %v3982 = vpop.permute.xlu0 %3981
    %3985 = vrot.lane.b32.xlu0 %v3903, 32
    %v3986 = vpop.permute.xlu0 %3985
    %3989 = vrot.lane.b32.xlu0 %v3907, 64
    %v3990 = vpop.permute.xlu0 %3989
    %3993 = vrot.lane.b32.xlu0 %v3912, 96
    %v3994 = vpop.permute.xlu0 %3993
    %3997 = vrot.lane.b32.xlu0 %v3922, 32
    %v3998 = vpop.permute.xlu0 %3997
    %4001 = vrot.lane.b32.xlu0 %v3923, 64
    %v4002 = vpop.permute.xlu0 %4001
    %4005 = vrot.lane.b32.xlu0 %v3927, 96
    %v4006 = vpop.permute.xlu0 %4005
    %v4008 = vsel %vm1806, %v3859, %v3962
    %v4009 = vsel %vm1816, %v4008, %v3966
    %v4010 = vsel %vm1826, %v4009, %v3970
    %v4011 = vsel %vm1806, %v3879, %v3974
    %v4012 = vsel %vm1816, %v4011, %v3978
    %v4013 = vsel %vm1826, %v4012, %v3982
    %v4014 = vsel %vm1806, %v3900, %v3986
    %v4015 = vsel %vm1816, %v4014, %v3990
    %v4016 = vsel %vm1826, %v4015, %v3994
    %v4017 = vsel %vm1806, %v3917, %v3998
    %v4018 = vsel %vm1816, %v4017, %v4002
    %v4019 = vsel %vm1826, %v4018, %v4006
    %4021 = vrot.lane.b32.xlu0 %v3937, 32
    %v4022 = vpop.permute.xlu0 %4021
    %4025 = vrot.lane.b32.xlu0 %v3942, 64
    %v4026 = vpop.permute.xlu0 %4025
    %4029 = vrot.lane.b32.xlu0 %v3943, 96
    %v4030 = vpop.permute.xlu0 %4029
    %4033 = vrot.lane.b32.xlu0 %v3950, 32
    %v4034 = vpop.permute.xlu0 %4033
    %4037 = vrot.lane.b32.xlu0 %v3955, 64
    %v4038 = vpop.permute.xlu0 %4037
    %4041 = vrot.lane.b32.xlu0 %v3958, 96
    %v4042 = vpop.permute.xlu0 %4041
    %v4044 = vsel %vm1806, %v3932, %v4022
    %v4045 = vsel %vm1816, %v4044, %v4026
    %v4046 = vsel %vm1826, %v4045, %v4030
    %v4047 = vsel %vm1806, %v3947, %v4034
    %v4048 = vsel %vm1816, %v4047, %v4038
    %v4049 = vsel %vm1826, %v4048, %v4042
    %v4050 = vpack.c.bf16 %v4010, %v4010
    %v4051 = vpack.c.bf16 %v4013, %v4013
    %v4052 = vpack.c.bf16 %v4016, %v4016
    %v4053 = vpack.c.bf16 %v4019, %v4019
    %v4054 = vpack.c.bf16 %v4046, %v4046
    %v4055 = vpack.c.bf16 %v4049, %v4049
    %v4056 = vpack.c.bf16 %v3959, %v3959
    %v4057 = vld [vmem:[%s7] sm:$0xf]
    %v4058 = vld [vmem:[%s7 + $0x4] sm:$0xf]
    %v4059 = vld [vmem:[%s7 + $0x8] sm:$0xf]
    %v4060 = vld [vmem:[%s7 + $0xc] sm:$0xf]
    %v4061 = vld [vmem:[%s7 + $0x10] sm:$0xf]
    %v4062 = vld [vmem:[%s7 + $0x14] sm:$0xf]
    %v4063 = vld [vmem:[%s7 + $0x18] sm:$0xf]
    %v4064 = vld [vmem:[%s7 + $0x1c] sm:$0xf]
    %v4065 = vld [vmem:[%s7 + $0x20] sm:$0xf]
    %v4066 = vld [vmem:[%s7 + $0x24] sm:$0xf]
    %v4067 = vld [vmem:[%s7 + $0x28] sm:$0xf]
    %v4068 = vld [vmem:[%s7 + $0x2c] sm:$0xf]
    %v4069 = vld [vmem:[%s7 + $0x30] sm:$0xf]
    %v4070 = vld [vmem:[%s7 + $0x34] sm:$0xf]
    %v4071 = vld [vmem:[%s7 + $0x38] sm:$0xf]
    %v4072 = vld [vmem:[%s7 + $0x3c] sm:$0xf]
    %v4073 = vld [vmem:[%s7 + $0x40] sm:$0xf]
    %v4074 = vld [vmem:[%s7 + $0x44] sm:$0xf]
    %v4075 = vld [vmem:[%s7 + $0x48] sm:$0xf]
    %v4076 = vld [vmem:[%s7 + $0x4c] sm:$0xf]
    %v4077 = vld [vmem:[%s7 + $0x50] sm:$0xf]
    %v4078 = vld [vmem:[%s7 + $0x54] sm:$0xf]
    %v4079 = vld [vmem:[%s7 + $0x58] sm:$0xf]
    %v4080 = vld [vmem:[%s7 + $0x5c] sm:$0xf]
    %v4081 = vld [vmem:[%s7 + $0x60] sm:$0xf]
    %v4082 = vld [vmem:[%s7 + $0x64] sm:$0xf]
    %v4083 = vld [vmem:[%s7 + $0x68] sm:$0xf]
    %v4084 = vld [vmem:[%s7 + $0x6c] sm:$0xf]
    %v4085 = vld [vmem:[%s7 + $0x70] sm:$0xf]
    %v4086 = vld [vmem:[%s7 + $0x74] sm:$0xf]
    %v4087 = vld [vmem:[%s7 + $0x78] sm:$0xf]
    %v4088 = vld [vmem:[%s7 + $0x7c] sm:$0xf]
    %v4089 = vld [vmem:[%s7 + $0x80] sm:$0xf]
    %v4090 = vld [vmem:[%s7 + $0x84] sm:$0xf]
    %v4091 = vld [vmem:[%s7 + $0x88] sm:$0xf]
    %v4092 = vld [vmem:[%s7 + $0x8c] sm:$0xf]
    %v4093 = vld [vmem:[%s7 + $0x90] sm:$0xf]
    %v4094 = vld [vmem:[%s7 + $0x94] sm:$0xf]
    %v4095 = vld [vmem:[%s7 + $0x98] sm:$0xf]
    %v4096 = vld [vmem:[%s7 + $0x9c] sm:$0xf]
    %v4097 = vld [vmem:[%s7 + $0xa0] sm:$0xf]
    %v4098 = vld [vmem:[%s7 + $0xa4] sm:$0xf]
    %v4099 = vld [vmem:[%s7 + $0xa8] sm:$0xf]
    %v4100 = vld [vmem:[%s7 + $0xac] sm:$0xf]
    %v4101 = vld [vmem:[%s7 + $0xb0] sm:$0xf]
    %v4102 = vld [vmem:[%s7 + $0xb4] sm:$0xf]
    %v4103 = vld [vmem:[%s7 + $0xb8] sm:$0xf]
    %v4104 = vld [vmem:[%s7 + $0xbc] sm:$0xf]
    %v4105 = vld [vmem:[%s7 + $0xc0] sm:$0xf]
    %v4106 = vld [vmem:[%s7 + $0xc4] sm:$0xf]
    %v4107 = vld [vmem:[%s7 + $0xc8] sm:$0xf]
    %v4108 = vld [vmem:[%s7 + $0xcc] sm:$0xf]
    %v4109 = vld [vmem:[%s7 + $0xd0] sm:$0xf]
    %v4110 = vld [vmem:[%s7 + $0xd4] sm:$0xf]
    %v4111 = vld [vmem:[%s7 + $0xd8] sm:$0xf]
    %v4112 = vld [vmem:[%s7 + $0xdc] sm:$0xf]
    %v4113 = vld [vmem:[%s7 + $0xe0] sm:$0xf]
    %v4114 = vld [vmem:[%s7 + $0xe4] sm:$0xf]
    %v4115 = vld [vmem:[%s7 + $0xe8] sm:$0xf]
    %v4116 = vld [vmem:[%s7 + $0xec] sm:$0xf]
    %v4117 = vld [vmem:[%s7 + $0xf0] sm:$0xf]
    %v4118 = vld [vmem:[%s7 + $0xf4] sm:$0xf]
    %v4119 = vld [vmem:[%s7 + $0xf8] sm:$0xf]
    %v4120 = vld [vmem:[%s7 + $0xfc] sm:$0xf]
    %v4121 = vld [vmem:[%s7 + $0x100] sm:$0xf]
    %v4122 = vld [vmem:[%s7 + $0x104] sm:$0xf]
    %v4123 = vld [vmem:[%s7 + $0x108] sm:$0xf]
    %v4124 = vld [vmem:[%s7 + $0x10c] sm:$0xf]
    %v4125 = vld [vmem:[%s7 + $0x110] sm:$0xf]
    %v4126 = vld [vmem:[%s7 + $0x114] sm:$0xf]
    %v4127 = vld [vmem:[%s7 + $0x118] sm:$0xf]
    %v4128 = vld [vmem:[%s7 + $0x11c] sm:$0xf]
    %v4129 = vld [vmem:[%s7 + $0x120] sm:$0xf]
    %v4130 = vld [vmem:[%s7 + $0x124] sm:$0xf]
    %v4131 = vld [vmem:[%s7 + $0x128] sm:$0xf]
    %v4132 = vld [vmem:[%s7 + $0x12c] sm:$0xf]
    %v4133 = vld [vmem:[%s7 + $0x130] sm:$0xf]
    %v4134 = vld [vmem:[%s7 + $0x134] sm:$0xf]
    %v4135 = vld [vmem:[%s7 + $0x138] sm:$0xf]
    %v4136 = vld [vmem:[%s7 + $0x13c] sm:$0xf]
    %v4137 = vld [vmem:[%s7 + $0x140] sm:$0xf]
    %v4138 = vld [vmem:[%s7 + $0x144] sm:$0xf]
    %v4139 = vld [vmem:[%s7 + $0x148] sm:$0xf]
    %v4140 = vld [vmem:[%s7 + $0x14c] sm:$0xf]
    %v4141 = vld [vmem:[%s7 + $0x150] sm:$0xf]
    %v4142 = vld [vmem:[%s7 + $0x154] sm:$0xf]
    %v4143 = vld [vmem:[%s7 + $0x158] sm:$0xf]
    %v4144 = vld [vmem:[%s7 + $0x15c] sm:$0xf]
    %v4145 = vld [vmem:[%s7 + $0x160] sm:$0xf]
    %v4146 = vld [vmem:[%s7 + $0x164] sm:$0xf]
    %v4147 = vld [vmem:[%s7 + $0x168] sm:$0xf]
    %v4148 = vld [vmem:[%s7 + $0x16c] sm:$0xf]
    %v4149 = vld [vmem:[%s7 + $0x170] sm:$0xf]
    %v4150 = vld [vmem:[%s7 + $0x174] sm:$0xf]
    %v4151 = vld [vmem:[%s7 + $0x178] sm:$0xf]
    %v4152 = vld [vmem:[%s7 + $0x17c] sm:$0xf]
    %v4153 = vld [vmem:[%s7 + $0x180] sm:$0xf]
    %v4154 = vld [vmem:[%s7 + $0x184] sm:$0xf]
    %v4155 = vld [vmem:[%s7 + $0x188] sm:$0xf]
    %v4156 = vld [vmem:[%s7 + $0x18c] sm:$0xf]
    %v4257 = vunpack.c.l.b16 %v4057
    %v4258 = vunpack.c.l.b16 %v4058
    %v4259 = vunpack.c.l.b16 %v4059
    %v4260 = vunpack.c.l.b16 %v4060
    %v4261 = vunpack.c.l.b16 %v4061
    %v4262 = vunpack.c.l.b16 %v4062
    %v4263 = vunpack.c.l.b16 %v4063
    %v4264 = vunpack.c.l.b16 %v4064
    %v4265 = vunpack.c.l.b16 %v4065
    %v4266 = vunpack.c.l.b16 %v4066
    %v4267 = vunpack.c.l.b16 %v4067
    %v4268 = vunpack.c.l.b16 %v4068
    %v4269 = vunpack.c.l.b16 %v4069
    %v4270 = vunpack.c.l.b16 %v4070
    %v4271 = vunpack.c.l.b16 %v4071
    %v4272 = vunpack.c.l.b16 %v4072
    %v4273 = vunpack.c.l.b16 %v4073
    %v4274 = vunpack.c.l.b16 %v4074
    %v4275 = vunpack.c.l.b16 %v4075
    %v4276 = vunpack.c.l.b16 %v4076
    %v4277 = vunpack.c.l.b16 %v4077
    %v4278 = vunpack.c.l.b16 %v4078
    %v4279 = vunpack.c.l.b16 %v4079
    %v4280 = vunpack.c.l.b16 %v4080
    %v4281 = vunpack.c.l.b16 %v4081
    %v4282 = vunpack.c.l.b16 %v4082
    %v4283 = vunpack.c.l.b16 %v4083
    %v4284 = vunpack.c.l.b16 %v4084
    %v4285 = vunpack.c.l.b16 %v4085
    %v4286 = vunpack.c.l.b16 %v4086
    %v4287 = vunpack.c.l.b16 %v4087
    %v4288 = vunpack.c.l.b16 %v4088
    %v4289 = vunpack.c.l.b16 %v4089
    %v4290 = vunpack.c.l.b16 %v4090
    %v4291 = vunpack.c.l.b16 %v4091
    %v4292 = vunpack.c.l.b16 %v4092
    %v4293 = vunpack.c.l.b16 %v4093
    %v4294 = vunpack.c.l.b16 %v4094
    %v4295 = vunpack.c.l.b16 %v4095
    %v4296 = vunpack.c.l.b16 %v4096
    %v4297 = vunpack.c.l.b16 %v4097
    %v4298 = vunpack.c.l.b16 %v4098
    %v4299 = vunpack.c.l.b16 %v4099
    %v4300 = vunpack.c.l.b16 %v4100
    %v4301 = vunpack.c.l.b16 %v4101
    %v4302 = vunpack.c.l.b16 %v4102
    %v4303 = vunpack.c.l.b16 %v4103
    %v4304 = vunpack.c.l.b16 %v4104
    %v4305 = vunpack.c.l.b16 %v4105
    %v4306 = vunpack.c.l.b16 %v4106
    %v4307 = vunpack.c.l.b16 %v4107
    %v4308 = vunpack.c.l.b16 %v4108
    %v4309 = vunpack.c.l.b16 %v4109
    %v4310 = vunpack.c.l.b16 %v4110
    %v4311 = vunpack.c.l.b16 %v4111
    %v4312 = vunpack.c.l.b16 %v4112
    %v4313 = vunpack.c.l.b16 %v4113
    %v4314 = vunpack.c.l.b16 %v4114
    %v4315 = vunpack.c.l.b16 %v4115
    %v4316 = vunpack.c.l.b16 %v4116
    %v4317 = vunpack.c.l.b16 %v4117
    %v4318 = vunpack.c.l.b16 %v4118
    %v4319 = vunpack.c.l.b16 %v4119
    %v4320 = vunpack.c.l.b16 %v4120
    %v4321 = vunpack.c.l.b16 %v4121
    %v4322 = vunpack.c.l.b16 %v4122
    %v4323 = vunpack.c.l.b16 %v4123
    %v4324 = vunpack.c.l.b16 %v4124
    %v4325 = vunpack.c.l.b16 %v4125
    %v4326 = vunpack.c.l.b16 %v4126
    %v4327 = vunpack.c.l.b16 %v4127
    %v4328 = vunpack.c.l.b16 %v4128
    %v4329 = vunpack.c.l.b16 %v4129
    %v4330 = vunpack.c.l.b16 %v4130
    %v4331 = vunpack.c.l.b16 %v4131
    %v4332 = vunpack.c.l.b16 %v4132
    %v4333 = vunpack.c.l.b16 %v4133
    %v4334 = vunpack.c.l.b16 %v4134
    %v4335 = vunpack.c.l.b16 %v4135
    %v4336 = vunpack.c.l.b16 %v4136
    %v4337 = vunpack.c.l.b16 %v4137
    %v4338 = vunpack.c.l.b16 %v4138
    %v4339 = vunpack.c.l.b16 %v4139
    %v4340 = vunpack.c.l.b16 %v4140
    %v4341 = vunpack.c.l.b16 %v4141
    %v4342 = vunpack.c.l.b16 %v4142
    %v4343 = vunpack.c.l.b16 %v4143
    %v4344 = vunpack.c.l.b16 %v4144
    %v4345 = vunpack.c.l.b16 %v4145
    %v4346 = vunpack.c.l.b16 %v4146
    %v4347 = vunpack.c.l.b16 %v4147
    %v4348 = vunpack.c.l.b16 %v4148
    %v4349 = vunpack.c.l.b16 %v4149
    %v4350 = vunpack.c.l.b16 %v4150
    %v4351 = vunpack.c.l.b16 %v4151
    %v4352 = vunpack.c.l.b16 %v4152
    %v4353 = vunpack.c.l.b16 %v4153
    %v4354 = vunpack.c.l.b16 %v4154
    %v4355 = vunpack.c.l.b16 %v4155
    %v4356 = vunpack.c.l.b16 %v4156
    %v4357 = vpack.c.b16 %v4258, %v4257
    %v4358 = vpack.c.b16 %v4260, %v4259
    %v4359 = vpack.c.b16 %v4262, %v4261
    %v4360 = vpack.c.b16 %v4264, %v4263
    %v4361 = vpack.c.b16 %v4266, %v4265
    %v4362 = vpack.c.b16 %v4268, %v4267
    %v4363 = vpack.c.b16 %v4270, %v4269
    %v4364 = vpack.c.b16 %v4272, %v4271
    %v4365 = vpack.c.b16 %v4274, %v4273
    %v4366 = vpack.c.b16 %v4276, %v4275
    %v4367 = vpack.c.b16 %v4278, %v4277
    %v4368 = vpack.c.b16 %v4280, %v4279
    %v4369 = vpack.c.b16 %v4282, %v4281
    %v4370 = vpack.c.b16 %v4284, %v4283
    %v4371 = vpack.c.b16 %v4286, %v4285
    %v4372 = vpack.c.b16 %v4288, %v4287
    %v4373 = vpack.c.b16 %v4290, %v4289
    %v4374 = vpack.c.b16 %v4292, %v4291
    %v4375 = vpack.c.b16 %v4294, %v4293
    %v4376 = vpack.c.b16 %v4296, %v4295
    %v4377 = vpack.c.b16 %v4298, %v4297
    %v4378 = vpack.c.b16 %v4300, %v4299
    %v4379 = vpack.c.b16 %v4302, %v4301
    %v4380 = vpack.c.b16 %v4304, %v4303
    %v4381 = vpack.c.b16 %v4306, %v4305
    %v4382 = vpack.c.b16 %v4308, %v4307
    %v4383 = vpack.c.b16 %v4310, %v4309
    %v4384 = vpack.c.b16 %v4312, %v4311
    %v4385 = vpack.c.b16 %v4314, %v4313
    %v4386 = vpack.c.b16 %v4316, %v4315
    %v4387 = vpack.c.b16 %v4318, %v4317
    %v4388 = vpack.c.b16 %v4320, %v4319
    %v4389 = vpack.c.b16 %v4322, %v4321
    %v4390 = vpack.c.b16 %v4324, %v4323
    %v4391 = vpack.c.b16 %v4326, %v4325
    %v4392 = vpack.c.b16 %v4328, %v4327
    %v4393 = vpack.c.b16 %v4330, %v4329
    %v4394 = vpack.c.b16 %v4332, %v4331
    %v4395 = vpack.c.b16 %v4334, %v4333
    %v4396 = vpack.c.b16 %v4336, %v4335
    %v4397 = vpack.c.b16 %v4338, %v4337
    %v4398 = vpack.c.b16 %v4340, %v4339
    %v4399 = vpack.c.b16 %v4342, %v4341
    %v4400 = vpack.c.b16 %v4344, %v4343
    %v4401 = vpack.c.b16 %v4346, %v4345
    %v4402 = vpack.c.b16 %v4348, %v4347
    %v4403 = vpack.c.b16 %v4350, %v4349
    %v4404 = vpack.c.b16 %v4352, %v4351
    %v4405 = vpack.c.b16 %v4354, %v4353
    %v4406 = vpack.c.b16 %v4356, %v4355
    %v4458 = vsel %vm1806, %v4056, 0
    %4460 = vmatprep.subr.bf16.mxu0 0
    %4461 = vmatpush1.bf16.msra.mxu0 %v4364
    %4462 = vmatprep.subr.bf16.mxu0 0
    %4463 = vmatpush1.bf16.msra.mxu0 %v4363
    %4464 = vmatprep.subr.bf16.mxu0 0
    %4465 = vmatpush1.bf16.msra.mxu0 %v4362
    %4466 = vmatprep.subr.bf16.mxu0 0
    %4467 = vmatpush1.bf16.msra.mxu0 %v4361
    %4468 = vmatprep.subr.bf16.mxu0 0
    %4469 = vmatpush1.bf16.msra.mxu0 %v4360
    %4470 = vmatprep.subr.bf16.mxu0 0
    %4471 = vmatpush1.bf16.msra.mxu0 %v4359
    %4472 = vmatprep.subr.bf16.mxu0 0
    %4473 = vmatpush1.bf16.msra.mxu0 %v4358
    %4474 = vmatprep.subr.bf16.mxu0 0
    %4475 = vmatpush1.bf16.msra.mxu0 %v4357
    %4476 = vmatprep.subr.bf16.mxu0 0
    %4477 = vmatpush2.bf16.msra.mxu0 %v4372
    %4478 = vmatprep.subr.bf16.mxu0 0
    %4479 = vmatpush2.bf16.msra.mxu0 %v4371
    %4480 = vmatprep.subr.bf16.mxu0 0
    %4481 = vmatpush2.bf16.msra.mxu0 %v4370
    %4482 = vmatprep.subr.bf16.mxu0 0
    %4483 = vmatpush2.bf16.msra.mxu0 %v4369
    %4484 = vmatprep.subr.bf16.mxu0 0
    %4485 = vmatpush2.bf16.msra.mxu0 %v4368
    %4486 = vmatprep.subr.bf16.mxu0 0
    %4487 = vmatpush2.bf16.msra.mxu0 %v4367
    %4488 = vmatprep.subr.bf16.mxu0 0
    %4489 = vmatpush2.bf16.msra.mxu0 %v4366
    %4490 = vmatprep.subr.bf16.mxu0 0
    %4491 = vmatpush2.bf16.msra.mxu0 %v4365
    %4492 = vmatprep.mubr.bf16.mxu0 %v4051
    %4493 = vmatmul.mubr.bf16.gmra.mxu0 %v4050
    %v4494 = vpop.f32.mrf.mxu0
    %v4495 = vadd.f32 0.0, %v4494
    %v4496 = vpop.f32.mrf.mxu0
    %v4497 = vpop.f32.mrf.mxu0
    %v4498 = vpop.f32.mrf.mxu0
    %4499 = vdwg.mxu0
    %4500 = vmatprep.subr.bf16.mxu0 0
    %4501 = vmatpush1.bf16.msra.mxu0 %v4380
    %4502 = vmatprep.subr.bf16.mxu0 0
    %4503 = vmatpush1.bf16.msra.mxu0 %v4379
    %4504 = vmatprep.subr.bf16.mxu0 0
    %4505 = vmatpush1.bf16.msra.mxu0 %v4378
    %4506 = vmatprep.subr.bf16.mxu0 0
    %4507 = vmatpush1.bf16.msra.mxu0 %v4377
    %4508 = vmatprep.subr.bf16.mxu0 0
    %4509 = vmatpush1.bf16.msra.mxu0 %v4376
    %4510 = vmatprep.subr.bf16.mxu0 0
    %4511 = vmatpush1.bf16.msra.mxu0 %v4375
    %4512 = vmatprep.subr.bf16.mxu0 0
    %4513 = vmatpush1.bf16.msra.mxu0 %v4374
    %4514 = vmatprep.subr.bf16.mxu0 0
    %4515 = vmatpush1.bf16.msra.mxu0 %v4373
    %4516 = vmatprep.subr.bf16.mxu0 0
    %4517 = vmatpush2.bf16.msra.mxu0 %v4388
    %4518 = vmatprep.subr.bf16.mxu0 0
    %4519 = vmatpush2.bf16.msra.mxu0 %v4387
    %4520 = vmatprep.subr.bf16.mxu0 0
    %4521 = vmatpush2.bf16.msra.mxu0 %v4386
    %4522 = vmatprep.subr.bf16.mxu0 0
    %4523 = vmatpush2.bf16.msra.mxu0 %v4385
    %4524 = vmatprep.subr.bf16.mxu0 0
    %4525 = vmatpush2.bf16.msra.mxu0 %v4384
    %4526 = vmatprep.subr.bf16.mxu0 0
    %4527 = vmatpush2.bf16.msra.mxu0 %v4383
    %4528 = vmatprep.subr.bf16.mxu0 0
    %4529 = vmatpush2.bf16.msra.mxu0 %v4382
    %4530 = vmatprep.subr.bf16.mxu0 0
    %4531 = vmatpush2.bf16.msra.mxu0 %v4381
    %4532 = vmatprep.mubr.bf16.mxu0 %v4053
    %4533 = vmatmul.mubr.bf16.gmra.mxu0 %v4052
    %v4534 = vpop.f32.mrf.mxu0
    %v4535 = vadd.f32 %v4495, %v4534
    %v4536 = vpop.f32.mrf.mxu0
    %v4537 = vpop.f32.mrf.mxu0
    %v4538 = vpop.f32.mrf.mxu0
    %4539 = vdwg.mxu0
    %4540 = vmatprep.subr.bf16.mxu0 0
    %4541 = vmatpush1.bf16.msra.mxu0 %v4396
    %4542 = vmatprep.subr.bf16.mxu0 0
    %4543 = vmatpush1.bf16.msra.mxu0 %v4395
    %4544 = vmatprep.subr.bf16.mxu0 0
    %4545 = vmatpush1.bf16.msra.mxu0 %v4394
    %4546 = vmatprep.subr.bf16.mxu0 0
    %4547 = vmatpush1.bf16.msra.mxu0 %v4393
    %4548 = vmatprep.subr.bf16.mxu0 0
    %4549 = vmatpush1.bf16.msra.mxu0 %v4392
    %4550 = vmatprep.subr.bf16.mxu0 0
    %4551 = vmatpush1.bf16.msra.mxu0 %v4391
    %4552 = vmatprep.subr.bf16.mxu0 0
    %4553 = vmatpush1.bf16.msra.mxu0 %v4390
    %4554 = vmatprep.subr.bf16.mxu0 0
    %4555 = vmatpush1.bf16.msra.mxu0 %v4389
    %4556 = vmatprep.subr.bf16.mxu0 0
    %4557 = vmatpush2.bf16.msra.mxu0 %v4404
    %4558 = vmatprep.subr.bf16.mxu0 0
    %4559 = vmatpush2.bf16.msra.mxu0 %v4403
    %4560 = vmatprep.subr.bf16.mxu0 0
    %4561 = vmatpush2.bf16.msra.mxu0 %v4402
    %4562 = vmatprep.subr.bf16.mxu0 0
    %4563 = vmatpush2.bf16.msra.mxu0 %v4401
    %4564 = vmatprep.subr.bf16.mxu0 0
    %4565 = vmatpush2.bf16.msra.mxu0 %v4400
    %4566 = vmatprep.subr.bf16.mxu0 0
    %4567 = vmatpush2.bf16.msra.mxu0 %v4399
    %4568 = vmatprep.subr.bf16.mxu0 0
    %4569 = vmatpush2.bf16.msra.mxu0 %v4398
    %4570 = vmatprep.subr.bf16.mxu0 0
    %4571 = vmatpush2.bf16.msra.mxu0 %v4397
    %4572 = vmatprep.mubr.bf16.mxu0 %v4055
    %4573 = vmatmul.mubr.bf16.gmra.mxu0 %v4054
    %v4574 = vpop.f32.mrf.mxu0
    %v4575 = vadd.f32 %v4535, %v4574
    %v4576 = vpop.f32.mrf.mxu0
    %v4577 = vpop.f32.mrf.mxu0
    %v4578 = vpop.f32.mrf.mxu0
    %4579 = vdwg.mxu0
    %4580 = vmatprep.subr.bf16.mxu0 0
    %4581 = vmatpush1.bf16.msra.mxu0 0
    %4582 = vmatprep.subr.bf16.mxu0 0
    %4583 = vmatpush1.bf16.msra.mxu0 0
    %4584 = vmatprep.subr.bf16.mxu0 0
    %4585 = vmatpush1.bf16.msra.mxu0 0
    %4586 = vmatprep.subr.bf16.mxu0 0
    %4587 = vmatpush1.bf16.msra.mxu0 0
    %4588 = vmatprep.subr.bf16.mxu0 0
    %4589 = vmatpush1.bf16.msra.mxu0 0
    %4590 = vmatprep.subr.bf16.mxu0 0
    %4591 = vmatpush1.bf16.msra.mxu0 0
    %4592 = vmatprep.subr.bf16.mxu0 0
    %4593 = vmatpush1.bf16.msra.mxu0 %v4406
    %4594 = vmatprep.subr.bf16.mxu0 0
    %4595 = vmatpush1.bf16.msra.mxu0 %v4405
    %4596 = vmatprep.subr.bf16.mxu0 0
    %4597 = vmatpush2.bf16.msra.mxu0 0
    %4598 = vmatprep.subr.bf16.mxu0 0
    %4599 = vmatpush2.bf16.msra.mxu0 0
    %4600 = vmatprep.subr.bf16.mxu0 0
    %4601 = vmatpush2.bf16.msra.mxu0 0
    %4602 = vmatprep.subr.bf16.mxu0 0
    %4603 = vmatpush2.bf16.msra.mxu0 0
    %4604 = vmatprep.subr.bf16.mxu0 0
    %4605 = vmatpush2.bf16.msra.mxu0 0
    %4606 = vmatprep.subr.bf16.mxu0 0
    %4607 = vmatpush2.bf16.msra.mxu0 0
    %4608 = vmatprep.subr.bf16.mxu0 0
    %4609 = vmatpush2.bf16.msra.mxu0 0
    %4610 = vmatprep.subr.bf16.mxu0 0
    %4611 = vmatpush2.bf16.msra.mxu0 0
    %4612 = vmatprep.mubr.bf16.mxu0 0
    %4613 = vmatmul.mubr.bf16.gmra.mxu0 %v4458
    %v4614 = vpop.f32.mrf.mxu0
    %v4615 = vadd.f32 %v4575, %v4614
    %v4616 = vpop.f32.mrf.mxu0
    %v4617 = vpop.f32.mrf.mxu0
    %v4618 = vpop.f32.mrf.mxu0
    %4619 = vdwg.mxu0
    %v4620 = vld [vmem:[%s8] sm:$0x1]
    %v4621 = vld [vmem:[%s9] sm:$0x1]
    %v4622 = vrot.slane %v4615, 4
    %v4623 = vadd.f32 %v4615, %v4622
    %v4624 = vrot.slane %v4623, 2
    %v4625 = vadd.f32 %v4623, %v4624
    %v4626 = vrot.slane %v4625, 1
    %v4627 = vadd.f32 %v4625, %v4626
    %v4628 = vmul.f32 %v4627, 0.125
    %v4629 = vmul.f32 %v4615, %v4615
    %v4630 = vrot.slane %v4629, 4
    %v4631 = vadd.f32 %v4629, %v4630
    %v4632 = vrot.slane %v4631, 2
    %v4633 = vadd.f32 %v4631, %v4632
    %v4634 = vrot.slane %v4633, 1
    %v4635 = vadd.f32 %v4633, %v4634
    %v4636 = vmul.f32 %v4635, 0.125
    %v4637 = vmul.f32 %v4628, %v4628
    %v4638 = vsub.f32 %v4636, %v4637
    %v4639 = vmax.f32 %v4638, 0.0
    %v4640 = vsub.f32 %v4615, %v4628
    %v4641 = vadd.f32 %v4639, 1e-05
    %v4642 = vrsqrt.pop %v4641
    %v4643 = vmul.f32 %v4640, %v4642
    %v4645 = vlaneseq
    %v4646 = vshrl.u32 %v4645, 7
    %v4647 = vsub.s32 0, %v4646
    %v4648 = vrot.slane %v4620, %v4647
    %v4650 = vmul.f32 %v4643, %v4648
    %v4652 = vlaneseq
    %v4653 = vshrl.u32 %v4652, 7
    %v4654 = vsub.s32 0, %v4653
    %v4655 = vrot.slane %v4621, %v4654
    %v4657 = vadd.f32 %v4650, %v4655
    %v4659 = vrot.slane %v4657, 2
    %4660 = vrot.lane.b32.xlu0 %v4659, 64
    %v4661 = vpop.permute.xlu0 %4660
    %v4663 = vrot.slane %v4657, 4
    %v4665 = vrot.slane %v4657, 6
    %4666 = vrot.lane.b32.xlu0 %v4665, 64
    %v4667 = vpop.permute.xlu0 %4666
    %v4669 = vsel %vm1816, %v4657, %v4661
    %v4670 = vsel %vm1816, %v4663, %v4667
    %v4671 = vpack.c.bf16 %v4669, %v4669
    %v4672 = vpack.c.bf16 %v4670, %v4670
    %v4673 = vld [vmem:[%s10] sm:$0xff]
    %v4674 = vld [vmem:[%s10 + $0x8] sm:$0xff]
    %v4675 = vld [vmem:[%s10 + $0x10] sm:$0xff]
    %v4676 = vld [vmem:[%s10 + $0x18] sm:$0xff]
    %v4677 = vld [vmem:[%s10 + $0x20] sm:$0xff]
    %v4678 = vld [vmem:[%s10 + $0x28] sm:$0xff]
    %v4679 = vld [vmem:[%s10 + $0x30] sm:$0xff]
    %v4680 = vld [vmem:[%s10 + $0x38] sm:$0xff]
    %v4681 = vld [vmem:[%s10 + $0x40] sm:$0xff]
    %v4682 = vld [vmem:[%s10 + $0x48] sm:$0xff]
    %v4683 = vld [vmem:[%s10 + $0x50] sm:$0xff]
    %v4684 = vld [vmem:[%s10 + $0x58] sm:$0xff]
    %v4685 = vld [vmem:[%s10 + $0x60] sm:$0xff]
    %v4686 = vld [vmem:[%s10 + $0x68] sm:$0xff]
    %v4687 = vld [vmem:[%s10 + $0x70] sm:$0xff]
    %v4688 = vld [vmem:[%s10 + $0x78] sm:$0xff]
    %v4689 = vld [vmem:[%s10 + $0x80] sm:$0xff]
    %v4690 = vld [vmem:[%s10 + $0x88] sm:$0xff]
    %v4691 = vld [vmem:[%s10 + $0x90] sm:$0xff]
    %v4692 = vld [vmem:[%s10 + $0x98] sm:$0xff]
    %v4693 = vld [vmem:[%s10 + $0xa0] sm:$0xff]
    %v4694 = vld [vmem:[%s10 + $0xa8] sm:$0xff]
    %v4695 = vld [vmem:[%s10 + $0xb0] sm:$0xff]
    %v4696 = vld [vmem:[%s10 + $0xb8] sm:$0xff]
    %v4697 = vld [vmem:[%s10 + $0xc0] sm:$0xff]
    %v4698 = vld [vmem:[%s10 + $0xc8] sm:$0xff]
    %v4699 = vld [vmem:[%s10 + $0xd0] sm:$0xff]
    %v4700 = vld [vmem:[%s10 + $0xd8] sm:$0xff]
    %v4701 = vld [vmem:[%s10 + $0xe0] sm:$0xff]
    %v4702 = vld [vmem:[%s10 + $0xe8] sm:$0xff]
    %v4703 = vld [vmem:[%s10 + $0xf0] sm:$0xff]
    %v4704 = vld [vmem:[%s10 + $0xf8] sm:$0xff]
    %v4705 = vld [vmem:[%s10 + $0x100] sm:$0xff]
    %v4706 = vld [vmem:[%s10 + $0x108] sm:$0xff]
    %v4707 = vld [vmem:[%s10 + $0x110] sm:$0xff]
    %v4708 = vld [vmem:[%s10 + $0x118] sm:$0xff]
    %v4709 = vld [vmem:[%s10 + $0x120] sm:$0xff]
    %v4710 = vld [vmem:[%s10 + $0x128] sm:$0xff]
    %v4711 = vld [vmem:[%s10 + $0x130] sm:$0xff]
    %v4712 = vld [vmem:[%s10 + $0x138] sm:$0xff]
    %v4713 = vld [vmem:[%s10 + $0x140] sm:$0xff]
    %v4714 = vld [vmem:[%s10 + $0x148] sm:$0xff]
    %v4715 = vld [vmem:[%s10 + $0x150] sm:$0xff]
    %v4716 = vld [vmem:[%s10 + $0x158] sm:$0xff]
    %v4717 = vld [vmem:[%s10 + $0x160] sm:$0xff]
    %v4718 = vld [vmem:[%s10 + $0x168] sm:$0xff]
    %v4719 = vld [vmem:[%s10 + $0x170] sm:$0xff]
    %v4720 = vld [vmem:[%s10 + $0x178] sm:$0xff]
    %v4721 = vld [vmem:[%s10 + $0x180] sm:$0xff]
    %v4722 = vld [vmem:[%s10 + $0x188] sm:$0xff]
    %v4723 = vld [vmem:[%s10 + $0x190] sm:$0xff]
    %v4724 = vld [vmem:[%s10 + $0x198] sm:$0xff]
    %v4725 = vld [vmem:[%s10 + $0x1a0] sm:$0xff]
    %v4726 = vld [vmem:[%s10 + $0x1a8] sm:$0xff]
    %v4727 = vld [vmem:[%s10 + $0x1b0] sm:$0xff]
    %v4728 = vld [vmem:[%s10 + $0x1b8] sm:$0xff]
    %v4729 = vld [vmem:[%s10 + $0x1c0] sm:$0xff]
    %v4730 = vld [vmem:[%s10 + $0x1c8] sm:$0xff]
    %v4731 = vld [vmem:[%s10 + $0x1d0] sm:$0xff]
    %v4732 = vld [vmem:[%s10 + $0x1d8] sm:$0xff]
    %v4733 = vld [vmem:[%s10 + $0x1e0] sm:$0xff]
    %v4734 = vld [vmem:[%s10 + $0x1e8] sm:$0xff]
    %v4735 = vld [vmem:[%s10 + $0x1f0] sm:$0xff]
    %v4736 = vld [vmem:[%s10 + $0x1f8] sm:$0xff]
    %v4737 = vld [vmem:[%s11] sm:$0xf]
    %v4739 = vlaneseq
    %v4740 = vshrl.u32 %v4739, 7
    %v4741 = vsub.s32 0, %v4740
    %v4742 = vrot.slane %v4737, %v4741
    %v4743 = vlaneseq
    %v4744 = vshrl.u32 %v4743, 7
    %v4745 = vsub.s32 1, %v4744
    %v4746 = vrot.slane %v4737, %v4745
    %v4747 = vlaneseq
    %v4748 = vshrl.u32 %v4747, 7
    %v4749 = vsub.s32 2, %v4748
    %v4750 = vrot.slane %v4737, %v4749
    %v4751 = vlaneseq
    %v4752 = vshrl.u32 %v4751, 7
    %v4753 = vsub.s32 3, %v4752
    %v4754 = vrot.slane %v4737, %v4753
    %v4823 = vunpack.c.l.b16 %v4673
    %v4824 = vunpack.c.h.b16 %v4673
    %v4825 = vunpack.c.l.b16 %v4674
    %v4826 = vunpack.c.h.b16 %v4674
    %v4827 = vunpack.c.l.b16 %v4675
    %v4828 = vunpack.c.h.b16 %v4675
    %v4829 = vunpack.c.l.b16 %v4676
    %v4830 = vunpack.c.h.b16 %v4676
    %v4831 = vunpack.c.l.b16 %v4677
    %v4832 = vunpack.c.h.b16 %v4677
    %v4833 = vunpack.c.l.b16 %v4678
    %v4834 = vunpack.c.h.b16 %v4678
    %v4835 = vunpack.c.l.b16 %v4679
    %v4836 = vunpack.c.h.b16 %v4679
    %v4837 = vunpack.c.l.b16 %v4680
    %v4838 = vunpack.c.h.b16 %v4680
    %v4839 = vunpack.c.l.b16 %v4681
    %v4840 = vunpack.c.h.b16 %v4681
    %v4841 = vunpack.c.l.b16 %v4682
    %v4842 = vunpack.c.h.b16 %v4682
    %v4843 = vunpack.c.l.b16 %v4683
    %v4844 = vunpack.c.h.b16 %v4683
    %v4845 = vunpack.c.l.b16 %v4684
    %v4846 = vunpack.c.h.b16 %v4684
    %v4847 = vunpack.c.l.b16 %v4685
    %v4848 = vunpack.c.h.b16 %v4685
    %v4849 = vunpack.c.l.b16 %v4686
    %v4850 = vunpack.c.h.b16 %v4686
    %v4851 = vunpack.c.l.b16 %v4687
    %v4852 = vunpack.c.h.b16 %v4687
    %v4853 = vunpack.c.l.b16 %v4688
    %v4854 = vunpack.c.h.b16 %v4688
    %v4855 = vunpack.c.l.b16 %v4689
    %v4856 = vunpack.c.h.b16 %v4689
    %v4857 = vunpack.c.l.b16 %v4690
    %v4858 = vunpack.c.h.b16 %v4690
    %v4859 = vunpack.c.l.b16 %v4691
    %v4860 = vunpack.c.h.b16 %v4691
    %v4861 = vunpack.c.l.b16 %v4692
    %v4862 = vunpack.c.h.b16 %v4692
    %v4863 = vunpack.c.l.b16 %v4693
    %v4864 = vunpack.c.h.b16 %v4693
    %v4865 = vunpack.c.l.b16 %v4694
    %v4866 = vunpack.c.h.b16 %v4694
    %v4867 = vunpack.c.l.b16 %v4695
    %v4868 = vunpack.c.h.b16 %v4695
    %v4869 = vunpack.c.l.b16 %v4696
    %v4870 = vunpack.c.h.b16 %v4696
    %v4871 = vunpack.c.l.b16 %v4697
    %v4872 = vunpack.c.h.b16 %v4697
    %v4873 = vunpack.c.l.b16 %v4698
    %v4874 = vunpack.c.h.b16 %v4698
    %v4875 = vunpack.c.l.b16 %v4699
    %v4876 = vunpack.c.h.b16 %v4699
    %v4877 = vunpack.c.l.b16 %v4700
    %v4878 = vunpack.c.h.b16 %v4700
    %v4879 = vunpack.c.l.b16 %v4701
    %v4880 = vunpack.c.h.b16 %v4701
    %v4881 = vunpack.c.l.b16 %v4702
    %v4882 = vunpack.c.h.b16 %v4702
    %v4883 = vunpack.c.l.b16 %v4703
    %v4884 = vunpack.c.h.b16 %v4703
    %v4885 = vunpack.c.l.b16 %v4704
    %v4886 = vunpack.c.h.b16 %v4704
    %v4887 = vunpack.c.l.b16 %v4705
    %v4888 = vunpack.c.h.b16 %v4705
    %v4889 = vunpack.c.l.b16 %v4706
    %v4890 = vunpack.c.h.b16 %v4706
    %v4891 = vunpack.c.l.b16 %v4707
    %v4892 = vunpack.c.h.b16 %v4707
    %v4893 = vunpack.c.l.b16 %v4708
    %v4894 = vunpack.c.h.b16 %v4708
    %v4895 = vunpack.c.l.b16 %v4709
    %v4896 = vunpack.c.h.b16 %v4709
    %v4897 = vunpack.c.l.b16 %v4710
    %v4898 = vunpack.c.h.b16 %v4710
    %v4899 = vunpack.c.l.b16 %v4711
    %v4900 = vunpack.c.h.b16 %v4711
    %v4901 = vunpack.c.l.b16 %v4712
    %v4902 = vunpack.c.h.b16 %v4712
    %v4903 = vunpack.c.l.b16 %v4713
    %v4904 = vunpack.c.h.b16 %v4713
    %v4905 = vunpack.c.l.b16 %v4714
    %v4906 = vunpack.c.h.b16 %v4714
    %v4907 = vunpack.c.l.b16 %v4715
    %v4908 = vunpack.c.h.b16 %v4715
    %v4909 = vunpack.c.l.b16 %v4716
    %v4910 = vunpack.c.h.b16 %v4716
    %v4911 = vunpack.c.l.b16 %v4717
    %v4912 = vunpack.c.h.b16 %v4717
    %v4913 = vunpack.c.l.b16 %v4718
    %v4914 = vunpack.c.h.b16 %v4718
    %v4915 = vunpack.c.l.b16 %v4719
    %v4916 = vunpack.c.h.b16 %v4719
    %v4917 = vunpack.c.l.b16 %v4720
    %v4918 = vunpack.c.h.b16 %v4720
    %v4919 = vunpack.c.l.b16 %v4721
    %v4920 = vunpack.c.h.b16 %v4721
    %v4921 = vunpack.c.l.b16 %v4722
    %v4922 = vunpack.c.h.b16 %v4722
    %v4923 = vunpack.c.l.b16 %v4723
    %v4924 = vunpack.c.h.b16 %v4723
    %v4925 = vunpack.c.l.b16 %v4724
    %v4926 = vunpack.c.h.b16 %v4724
    %v4927 = vunpack.c.l.b16 %v4725
    %v4928 = vunpack.c.h.b16 %v4725
    %v4929 = vunpack.c.l.b16 %v4726
    %v4930 = vunpack.c.h.b16 %v4726
    %v4931 = vunpack.c.l.b16 %v4727
    %v4932 = vunpack.c.h.b16 %v4727
    %v4933 = vunpack.c.l.b16 %v4728
    %v4934 = vunpack.c.h.b16 %v4728
    %v4935 = vunpack.c.l.b16 %v4729
    %v4936 = vunpack.c.h.b16 %v4729
    %v4937 = vunpack.c.l.b16 %v4730
    %v4938 = vunpack.c.h.b16 %v4730
    %v4939 = vunpack.c.l.b16 %v4731
    %v4940 = vunpack.c.h.b16 %v4731
    %v4941 = vunpack.c.l.b16 %v4732
    %v4942 = vunpack.c.h.b16 %v4732
    %v4943 = vunpack.c.l.b16 %v4733
    %v4944 = vunpack.c.h.b16 %v4733
    %v4945 = vunpack.c.l.b16 %v4734
    %v4946 = vunpack.c.h.b16 %v4734
    %v4947 = vunpack.c.l.b16 %v4735
    %v4948 = vunpack.c.h.b16 %v4735
    %v4949 = vunpack.c.l.b16 %v4736
    %v4950 = vunpack.c.h.b16 %v4736
    %v4951 = vpack.c.b16 %v4827, %v4823
    %v4952 = vpack.c.b16 %v4828, %v4824
    %v4953 = vpack.c.b16 %v4829, %v4825
    %v4954 = vpack.c.b16 %v4830, %v4826
    %v4955 = vpack.c.b16 %v4835, %v4831
    %v4956 = vpack.c.b16 %v4836, %v4832
    %v4957 = vpack.c.b16 %v4837, %v4833
    %v4958 = vpack.c.b16 %v4838, %v4834
    %v4959 = vpack.c.b16 %v4843, %v4839
    %v4960 = vpack.c.b16 %v4844, %v4840
    %v4961 = vpack.c.b16 %v4845, %v4841
    %v4962 = vpack.c.b16 %v4846, %v4842
    %v4963 = vpack.c.b16 %v4851, %v4847
    %v4964 = vpack.c.b16 %v4852, %v4848
    %v4965 = vpack.c.b16 %v4853, %v4849
    %v4966 = vpack.c.b16 %v4854, %v4850
    %v4967 = vpack.c.b16 %v4859, %v4855
    %v4968 = vpack.c.b16 %v4860, %v4856
    %v4969 = vpack.c.b16 %v4861, %v4857
    %v4970 = vpack.c.b16 %v4862, %v4858
    %v4971 = vpack.c.b16 %v4867, %v4863
    %v4972 = vpack.c.b16 %v4868, %v4864
    %v4973 = vpack.c.b16 %v4869, %v4865
    %v4974 = vpack.c.b16 %v4870, %v4866
    %v4975 = vpack.c.b16 %v4875, %v4871
    %v4976 = vpack.c.b16 %v4876, %v4872
    %v4977 = vpack.c.b16 %v4877, %v4873
    %v4978 = vpack.c.b16 %v4878, %v4874
    %v4979 = vpack.c.b16 %v4883, %v4879
    %v4980 = vpack.c.b16 %v4884, %v4880
    %v4981 = vpack.c.b16 %v4885, %v4881
    %v4982 = vpack.c.b16 %v4886, %v4882
    %v4983 = vpack.c.b16 %v4891, %v4887
    %v4984 = vpack.c.b16 %v4892, %v4888
    %v4985 = vpack.c.b16 %v4893, %v4889
    %v4986 = vpack.c.b16 %v4894, %v4890
    %v4987 = vpack.c.b16 %v4899, %v4895
    %v4988 = vpack.c.b16 %v4900, %v4896
    %v4989 = vpack.c.b16 %v4901, %v4897
    %v4990 = vpack.c.b16 %v4902, %v4898
    %v4991 = vpack.c.b16 %v4907, %v4903
    %v4992 = vpack.c.b16 %v4908, %v4904
    %v4993 = vpack.c.b16 %v4909, %v4905
    %v4994 = vpack.c.b16 %v4910, %v4906
    %v4995 = vpack.c.b16 %v4915, %v4911
    %v4996 = vpack.c.b16 %v4916, %v4912
    %v4997 = vpack.c.b16 %v4917, %v4913
    %v4998 = vpack.c.b16 %v4918, %v4914
    %v4999 = vpack.c.b16 %v4923, %v4919
    %v5000 = vpack.c.b16 %v4924, %v4920
    %v5001 = vpack.c.b16 %v4925, %v4921
    %v5002 = vpack.c.b16 %v4926, %v4922
    %v5003 = vpack.c.b16 %v4931, %v4927
    %v5004 = vpack.c.b16 %v4932, %v4928
    %v5005 = vpack.c.b16 %v4933, %v4929
    %v5006 = vpack.c.b16 %v4934, %v4930
    %v5007 = vpack.c.b16 %v4939, %v4935
    %v5008 = vpack.c.b16 %v4940, %v4936
    %v5009 = vpack.c.b16 %v4941, %v4937
    %v5010 = vpack.c.b16 %v4942, %v4938
    %v5011 = vpack.c.b16 %v4947, %v4943
    %v5012 = vpack.c.b16 %v4948, %v4944
    %v5013 = vpack.c.b16 %v4949, %v4945
    %v5014 = vpack.c.b16 %v4950, %v4946
    %5079 = vmatprep.subr.bf16.mxu0 %v4980
    %5080 = vmatpush1.bf16.msra.mxu0 %v4979
    %5081 = vmatprep.subr.bf16.mxu0 %v4976
    %5082 = vmatpush1.bf16.msra.mxu0 %v4975
    %5083 = vmatprep.subr.bf16.mxu0 %v4972
    %5084 = vmatpush1.bf16.msra.mxu0 %v4971
    %5085 = vmatprep.subr.bf16.mxu0 %v4968
    %5086 = vmatpush1.bf16.msra.mxu0 %v4967
    %5087 = vmatprep.subr.bf16.mxu0 %v4964
    %5088 = vmatpush1.bf16.msra.mxu0 %v4963
    %5089 = vmatprep.subr.bf16.mxu0 %v4960
    %5090 = vmatpush1.bf16.msra.mxu0 %v4959
    %5091 = vmatprep.subr.bf16.mxu0 %v4956
    %5092 = vmatpush1.bf16.msra.mxu0 %v4955
    %5093 = vmatprep.subr.bf16.mxu0 %v4952
    %5094 = vmatpush1.bf16.msra.mxu0 %v4951
    %5095 = vmatprep.subr.bf16.mxu0 %v5012
    %5096 = vmatpush2.bf16.msra.mxu0 %v5011
    %5097 = vmatprep.subr.bf16.mxu0 %v5008
    %5098 = vmatpush2.bf16.msra.mxu0 %v5007
    %5099 = vmatprep.subr.bf16.mxu0 %v5004
    %5100 = vmatpush2.bf16.msra.mxu0 %v5003
    %5101 = vmatprep.subr.bf16.mxu0 %v5000
    %5102 = vmatpush2.bf16.msra.mxu0 %v4999
    %5103 = vmatprep.subr.bf16.mxu0 %v4996
    %5104 = vmatpush2.bf16.msra.mxu0 %v4995
    %5105 = vmatprep.subr.bf16.mxu0 %v4992
    %5106 = vmatpush2.bf16.msra.mxu0 %v4991
    %5107 = vmatprep.subr.bf16.mxu0 %v4988
    %5108 = vmatpush2.bf16.msra.mxu0 %v4987
    %5109 = vmatprep.subr.bf16.mxu0 %v4984
    %5110 = vmatpush2.bf16.msra.mxu0 %v4983
    %5111 = vmatprep.mubr.bf16.mxu0 %v4672
    %5112 = vmatmul.mubr.bf16.gmra.mxu0 %v4671
    %v5113 = vpop.f32.mrf.mxu0
    %v5114 = vadd.f32 %v4742, %v5113
    %v5115 = vpop.f32.mrf.mxu0
    %v5116 = vadd.f32 %v4746, %v5115
    %v5117 = vpop.f32.mrf.mxu0
    %v5118 = vpop.f32.mrf.mxu0
    %5119 = vdwg.mxu0
    %5120 = vmatprep.subr.bf16.mxu0 %v4982
    %5121 = vmatpush1.bf16.msra.mxu0 %v4981
    %5122 = vmatprep.subr.bf16.mxu0 %v4978
    %5123 = vmatpush1.bf16.msra.mxu0 %v4977
    %5124 = vmatprep.subr.bf16.mxu0 %v4974
    %5125 = vmatpush1.bf16.msra.mxu0 %v4973
    %5126 = vmatprep.subr.bf16.mxu0 %v4970
    %5127 = vmatpush1.bf16.msra.mxu0 %v4969
    %5128 = vmatprep.subr.bf16.mxu0 %v4966
    %5129 = vmatpush1.bf16.msra.mxu0 %v4965
    %5130 = vmatprep.subr.bf16.mxu0 %v4962
    %5131 = vmatpush1.bf16.msra.mxu0 %v4961
    %5132 = vmatprep.subr.bf16.mxu0 %v4958
    %5133 = vmatpush1.bf16.msra.mxu0 %v4957
    %5134 = vmatprep.subr.bf16.mxu0 %v4954
    %5135 = vmatpush1.bf16.msra.mxu0 %v4953
    %5136 = vmatprep.subr.bf16.mxu0 %v5014
    %5137 = vmatpush2.bf16.msra.mxu0 %v5013
    %5138 = vmatprep.subr.bf16.mxu0 %v5010
    %5139 = vmatpush2.bf16.msra.mxu0 %v5009
    %5140 = vmatprep.subr.bf16.mxu0 %v5006
    %5141 = vmatpush2.bf16.msra.mxu0 %v5005
    %5142 = vmatprep.subr.bf16.mxu0 %v5002
    %5143 = vmatpush2.bf16.msra.mxu0 %v5001
    %5144 = vmatprep.subr.bf16.mxu0 %v4998
    %5145 = vmatpush2.bf16.msra.mxu0 %v4997
    %5146 = vmatprep.subr.bf16.mxu0 %v4994
    %5147 = vmatpush2.bf16.msra.mxu0 %v4993
    %5148 = vmatprep.subr.bf16.mxu0 %v4990
    %5149 = vmatpush2.bf16.msra.mxu0 %v4989
    %5150 = vmatprep.subr.bf16.mxu0 %v4986
    %5151 = vmatpush2.bf16.msra.mxu0 %v4985
    %5152 = vmatprep.mubr.bf16.mxu0 %v4672
    %5153 = vmatmul.mubr.bf16.gmra.mxu0 %v4671
    %v5154 = vpop.f32.mrf.mxu0
    %v5155 = vadd.f32 %v4750, %v5154
    %v5156 = vpop.f32.mrf.mxu0
    %v5157 = vadd.f32 %v4754, %v5156
    %v5158 = vpop.f32.mrf.mxu0
    %v5159 = vpop.f32.mrf.mxu0
    %5160 = vdwg.mxu0
    %v5161 = vmax.f32 %v5114, 0.0
    %v5162 = vmax.f32 %v5116, 0.0
    %v5163 = vmax.f32 %v5155, 0.0
    %v5164 = vmax.f32 %v5157, 0.0
    %v5165 = vpack.c.bf16 %v5161, %v5161
    %v5166 = vpack.c.bf16 %v5162, %v5162
    %v5167 = vpack.c.bf16 %v5163, %v5163
    %v5168 = vpack.c.bf16 %v5164, %v5164
    %v5169 = vld [vmem:[%s12] sm:$0xf]
    %v5170 = vld [vmem:[%s12 + $0x4] sm:$0xf]
    %v5171 = vld [vmem:[%s12 + $0x8] sm:$0xf]
    %v5172 = vld [vmem:[%s12 + $0xc] sm:$0xf]
    %v5173 = vld [vmem:[%s12 + $0x10] sm:$0xf]
    %v5174 = vld [vmem:[%s12 + $0x14] sm:$0xf]
    %v5175 = vld [vmem:[%s12 + $0x18] sm:$0xf]
    %v5176 = vld [vmem:[%s12 + $0x1c] sm:$0xf]
    %v5177 = vld [vmem:[%s12 + $0x20] sm:$0xf]
    %v5178 = vld [vmem:[%s12 + $0x24] sm:$0xf]
    %v5179 = vld [vmem:[%s12 + $0x28] sm:$0xf]
    %v5180 = vld [vmem:[%s12 + $0x2c] sm:$0xf]
    %v5181 = vld [vmem:[%s12 + $0x30] sm:$0xf]
    %v5182 = vld [vmem:[%s12 + $0x34] sm:$0xf]
    %v5183 = vld [vmem:[%s12 + $0x38] sm:$0xf]
    %v5184 = vld [vmem:[%s12 + $0x3c] sm:$0xf]
    %v5185 = vld [vmem:[%s12 + $0x40] sm:$0xf]
    %v5186 = vld [vmem:[%s12 + $0x44] sm:$0xf]
    %v5187 = vld [vmem:[%s12 + $0x48] sm:$0xf]
    %v5188 = vld [vmem:[%s12 + $0x4c] sm:$0xf]
    %v5189 = vld [vmem:[%s12 + $0x50] sm:$0xf]
    %v5190 = vld [vmem:[%s12 + $0x54] sm:$0xf]
    %v5191 = vld [vmem:[%s12 + $0x58] sm:$0xf]
    %v5192 = vld [vmem:[%s12 + $0x5c] sm:$0xf]
    %v5193 = vld [vmem:[%s12 + $0x60] sm:$0xf]
    %v5194 = vld [vmem:[%s12 + $0x64] sm:$0xf]
    %v5195 = vld [vmem:[%s12 + $0x68] sm:$0xf]
    %v5196 = vld [vmem:[%s12 + $0x6c] sm:$0xf]
    %v5197 = vld [vmem:[%s12 + $0x70] sm:$0xf]
    %v5198 = vld [vmem:[%s12 + $0x74] sm:$0xf]
    %v5199 = vld [vmem:[%s12 + $0x78] sm:$0xf]
    %v5200 = vld [vmem:[%s12 + $0x7c] sm:$0xf]
    %v5201 = vld [vmem:[%s12 + $0x80] sm:$0xf]
    %v5202 = vld [vmem:[%s12 + $0x84] sm:$0xf]
    %v5203 = vld [vmem:[%s12 + $0x88] sm:$0xf]
    %v5204 = vld [vmem:[%s12 + $0x8c] sm:$0xf]
    %v5205 = vld [vmem:[%s12 + $0x90] sm:$0xf]
    %v5206 = vld [vmem:[%s12 + $0x94] sm:$0xf]
    %v5207 = vld [vmem:[%s12 + $0x98] sm:$0xf]
    %v5208 = vld [vmem:[%s12 + $0x9c] sm:$0xf]
    %v5209 = vld [vmem:[%s12 + $0xa0] sm:$0xf]
    %v5210 = vld [vmem:[%s12 + $0xa4] sm:$0xf]
    %v5211 = vld [vmem:[%s12 + $0xa8] sm:$0xf]
    %v5212 = vld [vmem:[%s12 + $0xac] sm:$0xf]
    %v5213 = vld [vmem:[%s12 + $0xb0] sm:$0xf]
    %v5214 = vld [vmem:[%s12 + $0xb4] sm:$0xf]
    %v5215 = vld [vmem:[%s12 + $0xb8] sm:$0xf]
    %v5216 = vld [vmem:[%s12 + $0xbc] sm:$0xf]
    %v5217 = vld [vmem:[%s12 + $0xc0] sm:$0xf]
    %v5218 = vld [vmem:[%s12 + $0xc4] sm:$0xf]
    %v5219 = vld [vmem:[%s12 + $0xc8] sm:$0xf]
    %v5220 = vld [vmem:[%s12 + $0xcc] sm:$0xf]
    %v5221 = vld [vmem:[%s12 + $0xd0] sm:$0xf]
    %v5222 = vld [vmem:[%s12 + $0xd4] sm:$0xf]
    %v5223 = vld [vmem:[%s12 + $0xd8] sm:$0xf]
    %v5224 = vld [vmem:[%s12 + $0xdc] sm:$0xf]
    %v5225 = vld [vmem:[%s12 + $0xe0] sm:$0xf]
    %v5226 = vld [vmem:[%s12 + $0xe4] sm:$0xf]
    %v5227 = vld [vmem:[%s12 + $0xe8] sm:$0xf]
    %v5228 = vld [vmem:[%s12 + $0xec] sm:$0xf]
    %v5229 = vld [vmem:[%s12 + $0xf0] sm:$0xf]
    %v5230 = vld [vmem:[%s12 + $0xf4] sm:$0xf]
    %v5231 = vld [vmem:[%s12 + $0xf8] sm:$0xf]
    %v5232 = vld [vmem:[%s12 + $0xfc] sm:$0xf]
    %v5233 = vld [vmem:[%s13] sm:$0x1]
    %v5235 = vlaneseq
    %v5236 = vshrl.u32 %v5235, 7
    %v5237 = vsub.s32 0, %v5236
    %v5238 = vrot.slane %v5233, %v5237
    %v5304 = vunpack.c.l.b16 %v5169
    %v5305 = vunpack.c.l.b16 %v5170
    %v5306 = vunpack.c.l.b16 %v5171
    %v5307 = vunpack.c.l.b16 %v5172
    %v5308 = vunpack.c.l.b16 %v5173
    %v5309 = vunpack.c.l.b16 %v5174
    %v5310 = vunpack.c.l.b16 %v5175
    %v5311 = vunpack.c.l.b16 %v5176
    %v5312 = vunpack.c.l.b16 %v5177
    %v5313 = vunpack.c.l.b16 %v5178
    %v5314 = vunpack.c.l.b16 %v5179
    %v5315 = vunpack.c.l.b16 %v5180
    %v5316 = vunpack.c.l.b16 %v5181
    %v5317 = vunpack.c.l.b16 %v5182
    %v5318 = vunpack.c.l.b16 %v5183
    %v5319 = vunpack.c.l.b16 %v5184
    %v5320 = vunpack.c.l.b16 %v5185
    %v5321 = vunpack.c.l.b16 %v5186
    %v5322 = vunpack.c.l.b16 %v5187
    %v5323 = vunpack.c.l.b16 %v5188
    %v5324 = vunpack.c.l.b16 %v5189
    %v5325 = vunpack.c.l.b16 %v5190
    %v5326 = vunpack.c.l.b16 %v5191
    %v5327 = vunpack.c.l.b16 %v5192
    %v5328 = vunpack.c.l.b16 %v5193
    %v5329 = vunpack.c.l.b16 %v5194
    %v5330 = vunpack.c.l.b16 %v5195
    %v5331 = vunpack.c.l.b16 %v5196
    %v5332 = vunpack.c.l.b16 %v5197
    %v5333 = vunpack.c.l.b16 %v5198
    %v5334 = vunpack.c.l.b16 %v5199
    %v5335 = vunpack.c.l.b16 %v5200
    %v5336 = vunpack.c.l.b16 %v5201
    %v5337 = vunpack.c.l.b16 %v5202
    %v5338 = vunpack.c.l.b16 %v5203
    %v5339 = vunpack.c.l.b16 %v5204
    %v5340 = vunpack.c.l.b16 %v5205
    %v5341 = vunpack.c.l.b16 %v5206
    %v5342 = vunpack.c.l.b16 %v5207
    %v5343 = vunpack.c.l.b16 %v5208
    %v5344 = vunpack.c.l.b16 %v5209
    %v5345 = vunpack.c.l.b16 %v5210
    %v5346 = vunpack.c.l.b16 %v5211
    %v5347 = vunpack.c.l.b16 %v5212
    %v5348 = vunpack.c.l.b16 %v5213
    %v5349 = vunpack.c.l.b16 %v5214
    %v5350 = vunpack.c.l.b16 %v5215
    %v5351 = vunpack.c.l.b16 %v5216
    %v5352 = vunpack.c.l.b16 %v5217
    %v5353 = vunpack.c.l.b16 %v5218
    %v5354 = vunpack.c.l.b16 %v5219
    %v5355 = vunpack.c.l.b16 %v5220
    %v5356 = vunpack.c.l.b16 %v5221
    %v5357 = vunpack.c.l.b16 %v5222
    %v5358 = vunpack.c.l.b16 %v5223
    %v5359 = vunpack.c.l.b16 %v5224
    %v5360 = vunpack.c.l.b16 %v5225
    %v5361 = vunpack.c.l.b16 %v5226
    %v5362 = vunpack.c.l.b16 %v5227
    %v5363 = vunpack.c.l.b16 %v5228
    %v5364 = vunpack.c.l.b16 %v5229
    %v5365 = vunpack.c.l.b16 %v5230
    %v5366 = vunpack.c.l.b16 %v5231
    %v5367 = vunpack.c.l.b16 %v5232
    %v5368 = vpack.c.b16 %v5305, %v5304
    %v5369 = vpack.c.b16 %v5307, %v5306
    %v5370 = vpack.c.b16 %v5309, %v5308
    %v5371 = vpack.c.b16 %v5311, %v5310
    %v5372 = vpack.c.b16 %v5313, %v5312
    %v5373 = vpack.c.b16 %v5315, %v5314
    %v5374 = vpack.c.b16 %v5317, %v5316
    %v5375 = vpack.c.b16 %v5319, %v5318
    %v5376 = vpack.c.b16 %v5321, %v5320
    %v5377 = vpack.c.b16 %v5323, %v5322
    %v5378 = vpack.c.b16 %v5325, %v5324
    %v5379 = vpack.c.b16 %v5327, %v5326
    %v5380 = vpack.c.b16 %v5329, %v5328
    %v5381 = vpack.c.b16 %v5331, %v5330
    %v5382 = vpack.c.b16 %v5333, %v5332
    %v5383 = vpack.c.b16 %v5335, %v5334
    %v5384 = vpack.c.b16 %v5337, %v5336
    %v5385 = vpack.c.b16 %v5339, %v5338
    %v5386 = vpack.c.b16 %v5341, %v5340
    %v5387 = vpack.c.b16 %v5343, %v5342
    %v5388 = vpack.c.b16 %v5345, %v5344
    %v5389 = vpack.c.b16 %v5347, %v5346
    %v5390 = vpack.c.b16 %v5349, %v5348
    %v5391 = vpack.c.b16 %v5351, %v5350
    %v5392 = vpack.c.b16 %v5353, %v5352
    %v5393 = vpack.c.b16 %v5355, %v5354
    %v5394 = vpack.c.b16 %v5357, %v5356
    %v5395 = vpack.c.b16 %v5359, %v5358
    %v5396 = vpack.c.b16 %v5361, %v5360
    %v5397 = vpack.c.b16 %v5363, %v5362
    %v5398 = vpack.c.b16 %v5365, %v5364
    %v5399 = vpack.c.b16 %v5367, %v5366
    %5432 = vmatprep.subr.bf16.mxu0 0
    %5433 = vmatpush1.bf16.msra.mxu0 %v5375
    %5434 = vmatprep.subr.bf16.mxu0 0
    %5435 = vmatpush1.bf16.msra.mxu0 %v5374
    %5436 = vmatprep.subr.bf16.mxu0 0
    %5437 = vmatpush1.bf16.msra.mxu0 %v5373
    %5438 = vmatprep.subr.bf16.mxu0 0
    %5439 = vmatpush1.bf16.msra.mxu0 %v5372
    %5440 = vmatprep.subr.bf16.mxu0 0
    %5441 = vmatpush1.bf16.msra.mxu0 %v5371
    %5442 = vmatprep.subr.bf16.mxu0 0
    %5443 = vmatpush1.bf16.msra.mxu0 %v5370
    %5444 = vmatprep.subr.bf16.mxu0 0
    %5445 = vmatpush1.bf16.msra.mxu0 %v5369
    %5446 = vmatprep.subr.bf16.mxu0 0
    %5447 = vmatpush1.bf16.msra.mxu0 %v5368
    %5448 = vmatprep.subr.bf16.mxu0 0
    %5449 = vmatpush2.bf16.msra.mxu0 %v5383
    %5450 = vmatprep.subr.bf16.mxu0 0
    %5451 = vmatpush2.bf16.msra.mxu0 %v5382
    %5452 = vmatprep.subr.bf16.mxu0 0
    %5453 = vmatpush2.bf16.msra.mxu0 %v5381
    %5454 = vmatprep.subr.bf16.mxu0 0
    %5455 = vmatpush2.bf16.msra.mxu0 %v5380
    %5456 = vmatprep.subr.bf16.mxu0 0
    %5457 = vmatpush2.bf16.msra.mxu0 %v5379
    %5458 = vmatprep.subr.bf16.mxu0 0
    %5459 = vmatpush2.bf16.msra.mxu0 %v5378
    %5460 = vmatprep.subr.bf16.mxu0 0
    %5461 = vmatpush2.bf16.msra.mxu0 %v5377
    %5462 = vmatprep.subr.bf16.mxu0 0
    %5463 = vmatpush2.bf16.msra.mxu0 %v5376
    %5464 = vmatprep.mubr.bf16.mxu0 %v5166
    %5465 = vmatmul.mubr.bf16.gmra.mxu0 %v5165
    %v5466 = vpop.f32.mrf.mxu0
    %v5467 = vadd.f32 %v5238, %v5466
    %v5468 = vpop.f32.mrf.mxu0
    %v5469 = vpop.f32.mrf.mxu0
    %v5470 = vpop.f32.mrf.mxu0
    %5471 = vdwg.mxu0
    %5472 = vmatprep.subr.bf16.mxu0 0
    %5473 = vmatpush1.bf16.msra.mxu0 %v5391
    %5474 = vmatprep.subr.bf16.mxu0 0
    %5475 = vmatpush1.bf16.msra.mxu0 %v5390
    %5476 = vmatprep.subr.bf16.mxu0 0
    %5477 = vmatpush1.bf16.msra.mxu0 %v5389
    %5478 = vmatprep.subr.bf16.mxu0 0
    %5479 = vmatpush1.bf16.msra.mxu0 %v5388
    %5480 = vmatprep.subr.bf16.mxu0 0
    %5481 = vmatpush1.bf16.msra.mxu0 %v5387
    %5482 = vmatprep.subr.bf16.mxu0 0
    %5483 = vmatpush1.bf16.msra.mxu0 %v5386
    %5484 = vmatprep.subr.bf16.mxu0 0
    %5485 = vmatpush1.bf16.msra.mxu0 %v5385
    %5486 = vmatprep.subr.bf16.mxu0 0
    %5487 = vmatpush1.bf16.msra.mxu0 %v5384
    %5488 = vmatprep.subr.bf16.mxu0 0
    %5489 = vmatpush2.bf16.msra.mxu0 %v5399
    %5490 = vmatprep.subr.bf16.mxu0 0
    %5491 = vmatpush2.bf16.msra.mxu0 %v5398
    %5492 = vmatprep.subr.bf16.mxu0 0
    %5493 = vmatpush2.bf16.msra.mxu0 %v5397
    %5494 = vmatprep.subr.bf16.mxu0 0
    %5495 = vmatpush2.bf16.msra.mxu0 %v5396
    %5496 = vmatprep.subr.bf16.mxu0 0
    %5497 = vmatpush2.bf16.msra.mxu0 %v5395
    %5498 = vmatprep.subr.bf16.mxu0 0
    %5499 = vmatpush2.bf16.msra.mxu0 %v5394
    %5500 = vmatprep.subr.bf16.mxu0 0
    %5501 = vmatpush2.bf16.msra.mxu0 %v5393
    %5502 = vmatprep.subr.bf16.mxu0 0
    %5503 = vmatpush2.bf16.msra.mxu0 %v5392
    %5504 = vmatprep.mubr.bf16.mxu0 %v5168
    %5505 = vmatmul.mubr.bf16.gmra.mxu0 %v5167
    %v5506 = vpop.f32.mrf.mxu0
    %v5507 = vadd.f32 %v5467, %v5506
    %v5508 = vpop.f32.mrf.mxu0
    %v5509 = vpop.f32.mrf.mxu0
    %v5510 = vpop.f32.mrf.mxu0
    %5511 = vdwg.mxu0
    %5512 = vst [vmem:[#allocation2] sm:$0x3] %v5507
    // Predicated region
    $region58: #{forward.1} parent=1 // pred_check
      _
    $region59: #{forward.1} parent=1 // pred_check_branch
      %5514 = sbr.rel (0) target = $region61
    $region60: #{forward.1} parent=1 // pred_region
      %s5516 = ssub.s32 32, 32
      %5517 = vsyncadd [#allocation3], %s5516
      %s5519 = sshll.u32 [#allocation2], 4
      %s5520 = int_to_ptr.vmem [resolvable:$true] %s5519
      %5522 = dma.vmem_to_hbm [thread:$0]  %s5520, 32, %s14, [#allocation3]
    $region61: #{forward.1} parent=1 // pred_fallthru
      _
    // Predicated region
    $region62: #{forward.1} parent=1 // pred_check
      _
    $region63: #{forward.1} parent=1 // pred_check_branch
      %5524 = sbr.rel (0) target = $region65
    $region64: #{forward.1} parent=1 // pred_region
      %5525 = dma.done [#allocation3], 32
    $region65: #{forward.1} parent=1 // pred_fallthru
      _
    %5526 = vsyncpa [#allocation3], 1

</llo_original>
